<compile_context>
chip_gen: v7x
topology: tpu7x:2x2x1
jax: 0.10.0
libtpu: 0.0.40
codegen_flags: <defaults>
</compile_context>

<pallas_src>
import functools

import numpy as np
import jax
import jax.numpy as jnp
from jax import lax
from jax.experimental import pallas as pl
from jax.experimental.pallas import tpu as pltpu


def _augru_chunk_kernel(Hp, TT, TB, use_update_gate, compute_dtype,
                        bs_ref,                              # scalar-prefetch (Tp,) int32
                        x_ref, att_ref,                      # (TT,TB,IN), (TT,TB,1)
                        wx_ref, wh_ref, whh_ref, b_ref,      # (IN,NG*Hp), (Hp,NGH*Hp), (Hp,Hp), (1,NG*Hp)
                        out_ref,                             # (TT,TB,Hp)
                        *scratch):
    # scratch: gxr, (gxz if AUGRU), gxh  -- each (TT,TB,Hp) f32 ; hx (TB,Hp) f32
    if use_update_gate:
        gxr_s, gxz_s, gxh_s, hx_ref = scratch
    else:
        gxr_s, gxh_s, hx_ref = scratch
        gxz_s = None

    bi = pl.program_id(0)          # batch tile  (parallel)
    tc = pl.program_id(1)          # time chunk  (arbitrary / sequential -> hx carry)

    @pl.when(tc == 0)
    def _():
        hx_ref[...] = jnp.zeros_like(hx_ref)

    # Any valid row in this (tile, chunk)?  batch_sizes are non-increasing, so the
    # first timestep of the chunk has the chunk's maximum batch size.
    chunk_active = bs_ref[tc * TT] > bi * TB

    # ---- hoisted, state-independent x-side preactivations for the whole chunk ----
    @pl.when(chunk_active)
    def _():
        IN = x_ref.shape[2]
        x2d = x_ref[...].reshape(TT * TB, IN).astype(compute_dtype)
        gx = jnp.dot(x2d, wx_ref[...], preferred_element_type=jnp.float32) + b_ref[...]
        # All gate slices are 128-lane aligned (Hp is a multiple of 128).
        gxr_s[...] = gx[:, 0:Hp].reshape(TT, TB, Hp)
        if use_update_gate:
            gxz_s[...] = gx[:, Hp:2 * Hp].reshape(TT, TB, Hp)
            gxh_s[...] = gx[:, 2 * Hp:3 * Hp].reshape(TT, TB, Hp)
        else:
            gxh_s[...] = gx[:, Hp:2 * Hp].reshape(TT, TB, Hp)

    # global row index of each row in this batch tile
    row = lax.broadcasted_iota(jnp.int32, (TB, 1), 0) + bi * TB

    def step(tt, carry):
        bt = bs_ref[tc * TT + tt]                 # valid rows at this timestep

        @pl.when(bt > bi * TB)                    # skip fully-inactive (tile, step)
        def _():
            hx = hx_ref[...]                      # (TB, Hp) f32
            att = att_ref[tt]                     # (TB, 1)

            gh = jnp.dot(hx.astype(compute_dtype), wh_ref[...],
                         preferred_element_type=jnp.float32)     # (TB, NGH*Hp)
            if use_update_gate:
                ghr = gh[:, 0:Hp]
                ghz = gh[:, Hp:2 * Hp]
            else:
                ghr = gh
            r = jax.nn.sigmoid(gxr_s[tt] + ghr)
            # NOTE: PyTorch `r * hx @ w_hh` parses as `(r * hx) @ w_hh`.
            h_tilda = jnp.tanh(
                gxh_s[tt]
                + jnp.dot((r * hx).astype(compute_dtype), whh_ref[...],
                          preferred_element_type=jnp.float32))

            if use_update_gate:                   # AUGRU
                z = att * jax.nn.sigmoid(gxz_s[tt] + ghz)
            else:                                 # AGRU
                z = att

            hy = (1.0 - z) * hx + z * h_tilda

            valid = row < bt                      # (TB, 1) bool
            hx_ref[...] = jnp.where(valid, hy, hx)         # padded rows keep state
            out_ref[tt] = jnp.where(valid, hy, 0.0).astype(out_ref.dtype)
        return carry

    lax.fori_loop(0, TT, step, 0, unroll=(TT if TT <= 8 else 8))
    # TODO(synk): the cuDNN-style r*(hx@w_hh) variant would fuse wh/whh into one
    # per-step matmul but changes the GRU variant; not applied.


def dynamic_gru_packed(packed_x, packed_att, params, gru_type="AUGRU",
                       time_chunk=16, batch_tile=None,
                       compute_dtype=jnp.bfloat16):
    """Mirrors DynamicGRU.forward over a PackedSequence-like tuple."""
    x_data, batch_sizes, sorted_indices, unsorted_indices = packed_x
    att_data, _, _, _ = packed_att
    batch_sizes = np.asarray(batch_sizes, dtype=np.int32)
    # hx-carry trick requires a true PackedSequence (non-increasing batch sizes)
    assert np.all(np.diff(batch_sizes) <= 0), "batch_sizes must be non-increasing"

    T = int(batch_sizes.shape[0])
    B = int(batch_sizes[0])
    IN = int(x_data.shape[1])
    H = int(params["w_hr"].shape[0])
    Hp = ((H + 127) // 128) * 128                       # lane-aligned gate width
    use_z = (gru_type == "AUGRU")
    NG = 3 if use_z else 2                              # gates in the x-side matmul
    NGH = 2 if use_z else 1                             # gates in the hx-side matmul

    TT = int(time_chunk)
    Tp = int(pl.cdiv(T, TT)) * TT                       # padded time, multiple of TT
    Bp = max(8, -(-B // 8) * 8)                         # padded batch, multiple of 8
    if batch_tile is None:
        if Bp < 256:
            TB = Bp                                     # too small to split usefully
        else:
            # keep NB >= 2 so v7x can shard the "parallel" axis across its 2 TCs,
            # with a tile large enough that per-step MXU pushes are throughput-bound.
            TB = min(256, max(128, (Bp // 2 // 8) * 8))
    else:
        TB = int(batch_tile)
        assert TB % 8 == 0
    Bp = -(-Bp // TB) * TB
    NB, NT = Bp // TB, Tp // TT

    # ---- glue: packed -> dense via a single gather (index math host-side, static) ----
    bs_pad = np.zeros((Tp,), np.int32)
    bs_pad[:T] = batch_sizes
    offsets = np.zeros((Tp,), np.int32)
    offsets[:T] = np.cumsum(np.concatenate([[0], batch_sizes[:-1]])).astype(np.int32)
    col = np.arange(Bp)[None, :]
    valid_np = col < bs_pad[:, None]                              # (Tp, Bp)
    gidx = np.where(valid_np, offsets[:, None] + col, 0).astype(np.int32)
    valid = jnp.asarray(valid_np)
    x_dense = jnp.where(valid[..., None], jnp.asarray(x_data)[gidx], 0.0).astype(compute_dtype)
    att_dense = jnp.where(valid, jnp.asarray(att_data)[gidx], 0.0)[..., None].astype(jnp.float32)

    # ---- weights: zero-pad H -> Hp (lane-dense), gate-stack, cast for the MXU ----
    def pad_cols(w):                                   # (IN,H) -> (IN,Hp)
        return jnp.pad(jnp.asarray(w, jnp.float32), ((0, 0), (0, Hp - H)))

    def pad_sq(w):                                     # (H,H) -> (Hp,Hp)
        return jnp.pad(jnp.asarray(w, jnp.float32), ((0, Hp - H), (0, Hp - H)))

    def pad_vec(b):                                    # (H,) -> (Hp,)
        return jnp.pad(jnp.asarray(b, jnp.float32), (0, Hp - H))

    if use_z:
        wx = jnp.concatenate([pad_cols(params["w_xr"]), pad_cols(params["w_xz"]),
                              pad_cols(params["w_xh"])], axis=1).astype(compute_dtype)
        wh = jnp.concatenate([pad_sq(params["w_hr"]), pad_sq(params["w_hz"])],
                             axis=1).astype(compute_dtype)
        b_all = jnp.concatenate([pad_vec(params["b_r"]), pad_vec(params["b_z"]),
                                 pad_vec(params["b_h"])])[None, :]          # (1, 3Hp) f32
    else:
        wx = jnp.concatenate([pad_cols(params["w_xr"]),
                              pad_cols(params["w_xh"])], axis=1).astype(compute_dtype)
        wh = pad_sq(params["w_hr"]).astype(compute_dtype)
        b_all = jnp.concatenate([pad_vec(params["b_r"]),
                                 pad_vec(params["b_h"])])[None, :]          # (1, 2Hp) f32
    whh = pad_sq(params["w_hh"]).astype(compute_dtype)

    # ---- VMEM budget (double-buffered I/O blocks + weights + scratch) ----
    dtb = jnp.dtype(compute_dtype).itemsize
    vmem_est = (2 * TT * TB * IN * dtb                 # x blocks
                + 2 * TT * TB * 128 * 4                # att blocks (last dim pads to 128 lanes)
                + 2 * TT * TB * Hp * 4                 # out blocks (f32)
                + 2 * (IN * NG * Hp + Hp * NGH * Hp + Hp * Hp) * dtb   # weights
                + 2 * NG * Hp * 4                      # fused bias
                + NG * TT * TB * Hp * 4                # gx scratch
                + TB * Hp * 4)                         # hidden state
    vmem_limit = int(min(100 << 20, max(32 << 20, int(vmem_est * 1.25))))

    scratch = [pltpu.VMEM((TT, TB, Hp), jnp.float32)]          # gxr
    if use_z:
        scratch.append(pltpu.VMEM((TT, TB, Hp), jnp.float32))  # gxz
    scratch.append(pltpu.VMEM((TT, TB, Hp), jnp.float32))      # gxh
    scratch.append(pltpu.VMEM((TB, Hp), jnp.float32))          # hx (carried over time)

    kernel = functools.partial(_augru_chunk_kernel, Hp, TT, TB, use_z, compute_dtype)

    # NOTE: time (NT) MUST be the last grid axis and "arbitrary" — the recurrence is
    # carried in VMEM scratch across sequential time-chunk iterations.
    out_dense = pl.pallas_call(
        kernel,
        out_shape=jax.ShapeDtypeStruct((Tp, Bp, Hp), jnp.float32),
        grid_spec=pltpu.PrefetchScalarGridSpec(
            num_scalar_prefetch=1,
            grid=(NB, NT),
            in_specs=[
                pl.BlockSpec((TT, TB, IN), lambda bi, tc, bs: (tc, bi, 0)),
                pl.BlockSpec((TT, TB, 1), lambda bi, tc, bs: (tc, bi, 0)),
                pl.BlockSpec((IN, NG * Hp), lambda bi, tc, bs: (0, 0)),
                pl.BlockSpec((Hp, NGH * Hp), lambda bi, tc, bs: (0, 0)),
                pl.BlockSpec((Hp, Hp), lambda bi, tc, bs: (0, 0)),
                pl.BlockSpec((1, NG * Hp), lambda bi, tc, bs: (0, 0)),
            ],
            out_specs=pl.BlockSpec((TT, TB, Hp), lambda bi, tc, bs: (tc, bi, 0)),
            scratch_shapes=scratch,
        ),
        compiler_params=pltpu.CompilerParams(
            dimension_semantics=("parallel", "arbitrary"),
            vmem_limit_bytes=vmem_limit),
    )(jnp.asarray(bs_pad, jnp.int32), x_dense, att_dense, wx, wh, whh, b_all)

    # ---- glue: dense -> packed via a single gather; drop the Hp padding ----
    t_idx = np.repeat(np.arange(T), batch_sizes)
    b_idx = np.concatenate([np.arange(int(bt)) for bt in batch_sizes]).astype(np.int32)
    outputs = out_dense[t_idx, b_idx][:, :H].astype(x_data.dtype)
    return outputs, batch_sizes, sorted_indices, unsorted_indices


def _reference_packed(packed_x, packed_att, params, gru_type="AUGRU"):
    """Pure-numpy replica of the PyTorch DynamicGRU.forward loop (for checking)."""
    x_data, batch_sizes, _, _ = packed_x
    att_data, _, _, _ = packed_att
    x = np.asarray(x_data, np.float32)
    att = np.asarray(att_data, np.float32)
    p = {k: np.asarray(v, np.float32) for k, v in params.items()}
    H = p["w_hr"].shape[0]
    max_b = int(batch_sizes[0])
    hx = np.zeros((max_b, H), np.float32)
    outputs = np.zeros((x.shape[0], H), np.float32)

    def sigmoid(v):
        return 1.0 / (1.0 + np.exp(-v))

    begin = 0
    for bt in batch_sizes:
        bt = int(bt)
        xs = x[begin:begin + bt]
        hs = hx[:bt]
        a = att[begin:begin + bt].reshape(-1, 1)
        r = sigmoid(xs @ p["w_xr"] + hs @ p["w_hr"] + p["b_r"])
        h_t = np.tanh(xs @ p["w_xh"] + (r * hs) @ p["w_hh"] + p["b_h"])
        if gru_type == "AUGRU":
            z = sigmoid(xs @ p["w_xz"] + hs @ p["w_hz"] + p["b_z"])
            z = a * z
        else:
            z = a
        hy = (1.0 - z) * hs + z * h_t
        outputs[begin:begin + bt] = hy
        hx = hy
        begin += bt
    return outputs


if __name__ == "__main__":
    INPUT_SIZE = 32
    HIDDEN_SIZE = 32

    key = jax.random.PRNGKey(0)
    k_param, k_x, k_att = jax.random.split(key, 3)

    # deterministic parameter init, matching reset_parameters: U(-stdv, stdv)
    stdv = 1.0 / HIDDEN_SIZE ** 0.5
    shapes = {
        "w_xr": (INPUT_SIZE, HIDDEN_SIZE), "w_hr": (HIDDEN_SIZE, HIDDEN_SIZE), "b_r": (HIDDEN_SIZE,),
        "w_xh": (INPUT_SIZE, HIDDEN_SIZE), "w_hh": (HIDDEN_SIZE, HIDDEN_SIZE), "b_h": (HIDDEN_SIZE,),
        "w_xz": (INPUT_SIZE, HIDDEN_SIZE), "w_hz": (HIDDEN_SIZE, HIDDEN_SIZE), "b_z": (HIDDEN_SIZE,),
    }
    pkeys = jax.random.split(k_param, len(shapes))
    params = {name: jax.random.uniform(pk, shp, jnp.float32, -stdv, stdv)
              for pk, (name, shp) in zip(pkeys, shapes.items())}

    # PackedSequence-like input: 3 sequences, lengths [10, 7, 5] (sorted desc).
    # T=10 is NOT a multiple of the time-chunk (8) -> exercises chunk carry + padding.
    lengths = [10, 7, 5]
    B0, T = len(lengths), lengths[0]
    x_pad = jax.random.uniform(k_x, (B0, T, INPUT_SIZE), jnp.float32, -1.0, 1.0)
    att_pad = jax.random.uniform(k_att, (B0, T), jnp.float32, 0.0, 1.0)
    batch_sizes = np.array([sum(1 for L in lengths if L > t) for t in range(T)], np.int32)
    x_rows, att_rows = [], []
    for t in range(T):
        bt = int(batch_sizes[t])
        x_rows.append(x_pad[:bt, t, :])
        att_rows.append(att_pad[:bt, t])
    x_data = jnp.concatenate(x_rows, axis=0)      # (sum(batch_sizes), INPUT_SIZE)
    att_data = jnp.concatenate(att_rows, axis=0)  # (sum(batch_sizes),)
    sorted_indices = np.arange(B0)
    unsorted_indices = np.arange(B0)

    packed_x = (x_data, batch_sizes, sorted_indices, unsorted_indices)
    packed_att = (att_data, batch_sizes, sorted_indices, unsorted_indices)

    for gtype in ("AUGRU", "AGRU"):
        ref = _reference_packed(packed_x, packed_att, params, gru_type=gtype)

        # f32 MXU path: exact check.
        out_f32, out_bs, _, _ = dynamic_gru_packed(
            packed_x, packed_att, params, gru_type=gtype,
            time_chunk=8, compute_dtype=jnp.float32)
        out_f32 = jax.block_until_ready(out_f32)
        np.testing.assert_allclose(np.asarray(out_f32), ref, rtol=1e-5, atol=1e-5)
        assert out_f32.shape == (int(batch_sizes.sum()), HIDDEN_SIZE)

        # bf16 MXU path (default, 2x MXU throughput on v6e/v7x): looser tolerance.
        out_bf16, _, _, _ = dynamic_gru_packed(
            packed_x, packed_att, params, gru_type=gtype, time_chunk=8)
        out_bf16 = jax.block_until_ready(out_bf16)
        np.testing.assert_allclose(np.asarray(out_bf16), ref, rtol=0, atol=3e-2)

    print("KERNEL_OK")
</pallas_src>

<mosaic_0001>
module attributes {stable_mosaic.version = 11 : i64} {
  func.func @_augru_chunk_kernel(%arg0: i32, %arg1: i32, %arg2: memref<16xi32, #tpu.memory_space<smem>>, %arg3: memref<8x8x32xf32, #tpu.memory_space<vmem>>, %arg4: memref<8x8x1xf32, #tpu.memory_space<vmem>>, %arg5: memref<32x384xf32, #tpu.memory_space<vmem>>, %arg6: memref<128x256xf32, #tpu.memory_space<vmem>>, %arg7: memref<128x128xf32, #tpu.memory_space<vmem>>, %arg8: memref<1x384xf32, #tpu.memory_space<vmem>>, %arg9: memref<8x8x128xf32, #tpu.memory_space<vmem>>, %arg10: memref<8x8x128xf32, #tpu.memory_space<vmem>>, %arg11: memref<8x8x128xf32, #tpu.memory_space<vmem>>, %arg12: memref<8x8x128xf32, #tpu.memory_space<vmem>>, %arg13: memref<8x128xf32, #tpu.memory_space<vmem>>) attributes {dimension_semantics = [#tpu.dimension_semantics<parallel>, #tpu.dimension_semantics<arbitrary>], iteration_bounds = array<i64: 1, 2>, scalar_prefetch = 1 : i64, scratch_operands = 4 : i64, tpu.core_type = #tpu.core_type<tc>, window_params = [{transform_indices = @transform_0, window_bounds = array<i64: 8, 8, 32>}, {transform_indices = @transform_1, window_bounds = array<i64: 8, 8, 1>}, {pipeline_mode = #tpu.pipeline_mode<synchronous>, transform_indices = @transform_2, window_bounds = array<i64: 32, 384>}, {pipeline_mode = #tpu.pipeline_mode<synchronous>, transform_indices = @transform_3, window_bounds = array<i64: 128, 256>}, {pipeline_mode = #tpu.pipeline_mode<synchronous>, transform_indices = @transform_4, window_bounds = array<i64: 128, 128>}, {pipeline_mode = #tpu.pipeline_mode<synchronous>, transform_indices = @transform_5, window_bounds = array<i64: 1, 384>}, {transform_indices = @transform_6, window_bounds = array<i64: 8, 8, 128>}]} {
    %c0_i32 = arith.constant 0 : i32
    %0 = arith.cmpi eq, %arg1, %c0_i32 : i32
    %1 = arith.extui %0 : i1 to i32
    %c0_i32_0 = arith.constant 0 : i32
    %2 = arith.cmpi ne, %1, %c0_i32_0 : i32
    scf.if %2 {
      %cst = arith.constant 0.000000e+00 : f32
      %78 = vector.broadcast %cst : f32 to vector<8x128xf32>
      %c0 = arith.constant 0 : index
      %c0_30 = arith.constant 0 : index
      %79 = vector.load %arg13[%c0, %c0_30] : memref<8x128xf32, #tpu.memory_space<vmem>>, vector<8x128xf32>
      tpu.vector_store %arg13[%c0, %c0_30], %78 {strides = array<i32>} : memref<8x128xf32, #tpu.memory_space<vmem>>, vector<8x128xf32>,
    } else {
    }
    %c8_i32 = arith.constant 8 : i32
    %3 = arith.muli %arg1, %c8_i32 : i32
    %4 = arith.index_cast %3 : i32 to index
    %5 = memref.load %arg2[%4] : memref<16xi32, #tpu.memory_space<smem>>
    %c8_i32_1 = arith.constant 8 : i32
    %6 = arith.muli %arg0, %c8_i32_1 : i32
    %7 = arith.cmpi sgt, %5, %6 : i32
    %8 = arith.extui %7 : i1 to i32
    %c0_i32_2 = arith.constant 0 : i32
    %9 = arith.cmpi ne, %8, %c0_i32_2 : i32
    scf.if %9 {
      %c0 = arith.constant 0 : index
      %c0_30 = arith.constant 0 : index
      %c0_31 = arith.constant 0 : index
      %78 = vector.load %arg3[%c0, %c0_30, %c0_31] : memref<8x8x32xf32, #tpu.memory_space<vmem>>, vector<8x8x32xf32>
      %79 = vector.shape_cast %78 : vector<8x8x32xf32> to vector<64x32xf32>
      %c0_32 = arith.constant 0 : index
      %c0_33 = arith.constant 0 : index
      %80 = vector.load %arg5[%c0_32, %c0_33] : memref<32x384xf32, #tpu.memory_space<vmem>>, vector<32x384xf32>
      %cst = arith.constant dense<0.000000e+00> : vector<64x384xf32>
      %81 = tpu.matmul %79, %80, %cst {dimension_numbers = #tpu.dot_dimension_numbers<[1], [0], [0], [1], [0, 0, 1, 1], [], []>} : vector<64x32xf32>, vector<32x384xf32>, vector<64x384xf32> -> vector<64x384xf32>
      %c0_34 = arith.constant 0 : index
      %c0_35 = arith.constant 0 : index
      %82 = vector.load %arg8[%c0_34, %c0_35] : memref<1x384xf32, #tpu.memory_space<vmem>>, vector<1x384xf32>
      %83 = vector.broadcast %82 : vector<1x384xf32> to vector<64x384xf32>
      %84 = arith.addf %81, %83 : vector<64x384xf32>
      %85 = vector.extract_strided_slice %84 {offsets = [0, 0], sizes = [64, 128], strides = [1, 1]} : vector<64x384xf32> to vector<64x128xf32>
      %86 = vector.shape_cast %85 : vector<64x128xf32> to vector<8x8x128xf32>
      %c0_36 = arith.constant 0 : index
      %c0_37 = arith.constant 0 : index
      %c0_38 = arith.constant 0 : index
      %87 = vector.load %arg10[%c0_36, %c0_37, %c0_38] : memref<8x8x128xf32, #tpu.memory_space<vmem>>, vector<8x8x128xf32>
      tpu.vector_store %arg10[%c0_36, %c0_37, %c0_38], %86 {strides = array<i32>} : memref<8x8x128xf32, #tpu.memory_space<vmem>>, vector<8x8x128xf32>,
      %88 = vector.extract_strided_slice %84 {offsets = [0, 128], sizes = [64, 128], strides = [1, 1]} : vector<64x384xf32> to vector<64x128xf32>
      %89 = vector.shape_cast %88 : vector<64x128xf32> to vector<8x8x128xf32>
      %c0_39 = arith.constant 0 : index
      %c0_40 = arith.constant 0 : index
      %c0_41 = arith.constant 0 : index
      %90 = vector.load %arg11[%c0_39, %c0_40, %c0_41] : memref<8x8x128xf32, #tpu.memory_space<vmem>>, vector<8x8x128xf32>
      tpu.vector_store %arg11[%c0_39, %c0_40, %c0_41], %89 {strides = array<i32>} : memref<8x8x128xf32, #tpu.memory_space<vmem>>, vector<8x8x128xf32>,
      %91 = vector.extract_strided_slice %84 {offsets = [0, 256], sizes = [64, 128], strides = [1, 1]} : vector<64x384xf32> to vector<64x128xf32>
      %92 = vector.shape_cast %91 : vector<64x128xf32> to vector<8x8x128xf32>
      %c0_42 = arith.constant 0 : index
      %c0_43 = arith.constant 0 : index
      %c0_44 = arith.constant 0 : index
      %93 = vector.load %arg12[%c0_42, %c0_43, %c0_44] : memref<8x8x128xf32, #tpu.memory_space<vmem>>, vector<8x8x128xf32>
      tpu.vector_store %arg12[%c0_42, %c0_43, %c0_44], %92 {strides = array<i32>} : memref<8x8x128xf32, #tpu.memory_space<vmem>>, vector<8x8x128xf32>,
    } else {
    }
    %10 = tpu.iota {dimensions = array<i32: 0>} : vector<8x1xi32>
    %c8_i32_3 = arith.constant 8 : i32
    %11 = arith.muli %arg0, %c8_i32_3 : i32
    %12 = vector.broadcast %11 : i32 to vector<8x1xi32>
    %13 = arith.addi %10, %12 : vector<8x1xi32>
    %c0_i32_4 = arith.constant 0 : i32
    %c8_i32_5 = arith.constant 8 : i32
    %14 = arith.muli %arg1, %c8_i32_5 : i32
    %15 = arith.addi %14, %c0_i32_4 : i32
    %16 = arith.index_cast %15 : i32 to index
    %17 = memref.load %arg2[%16] : memref<16xi32, #tpu.memory_space<smem>>
    %c8_i32_6 = arith.constant 8 : i32
    %18 = arith.muli %arg0, %c8_i32_6 : i32
    %19 = arith.cmpi sgt, %17, %18 : i32
    %20 = arith.extui %19 : i1 to i32
    %c0_i32_7 = arith.constant 0 : i32
    %21 = arith.cmpi ne, %20, %c0_i32_7 : i32
    scf.if %21 {
      %c0 = arith.constant 0 : index
      %c0_30 = arith.constant 0 : index
      %78 = vector.load %arg13[%c0, %c0_30] : memref<8x128xf32, #tpu.memory_space<vmem>>, vector<8x128xf32>
      %79 = arith.index_cast %c0_i32_4 : i32 to index
      %c0_31 = arith.constant 0 : index
      %c0_32 = arith.constant 0 : index
      %80 = vector.load %arg4[%79, %c0_31, %c0_32] : memref<8x8x1xf32, #tpu.memory_space<vmem>>, vector<1x8x1xf32>
      %81 = vector.shape_cast %80 : vector<1x8x1xf32> to vector<8x1xf32>
      %c0_33 = arith.constant 0 : index
      %c0_34 = arith.constant 0 : index
      %82 = vector.load %arg6[%c0_33, %c0_34] : memref<128x256xf32, #tpu.memory_space<vmem>>, vector<128x256xf32>
      %cst = arith.constant dense<0.000000e+00> : vector<8x256xf32>
      %83 = tpu.matmul %78, %82, %cst {dimension_numbers = #tpu.dot_dimension_numbers<[1], [0], [0], [1], [0, 0, 1, 1], [], []>} : vector<8x128xf32>, vector<128x256xf32>, vector<8x256xf32> -> vector<8x256xf32>
      %84 = vector.extract_strided_slice %83 {offsets = [0, 0], sizes = [8, 128], strides = [1, 1]} : vector<8x256xf32> to vector<8x128xf32>
      %85 = vector.extract_strided_slice %83 {offsets = [0, 128], sizes = [8, 128], strides = [1, 1]} : vector<8x256xf32> to vector<8x128xf32>
      %86 = arith.index_cast %c0_i32_4 : i32 to index
      %c0_35 = arith.constant 0 : index
      %c0_36 = arith.constant 0 : index
      %87 = vector.load %arg10[%86, %c0_35, %c0_36] : memref<8x8x128xf32, #tpu.memory_space<vmem>>, vector<1x8x128xf32>
      %88 = vector.shape_cast %87 : vector<1x8x128xf32> to vector<8x128xf32>
      %89 = arith.addf %88, %84 : vector<8x128xf32>
      %90 = arith.negf %89 : vector<8x128xf32>
      %91 = math.exp %90 : vector<8x128xf32>
      %cst_37 = arith.constant 1.000000e+00 : f32
      %92 = vector.broadcast %cst_37 : f32 to vector<8x128xf32>
      %93 = arith.addf %92, %91 : vector<8x128xf32>
      %94 = arith.divf %92, %93 : vector<8x128xf32>
      %95 = arith.index_cast %c0_i32_4 : i32 to index
      %c0_38 = arith.constant 0 : index
      %c0_39 = arith.constant 0 : index
      %96 = vector.load %arg12[%95, %c0_38, %c0_39] : memref<8x8x128xf32, #tpu.memory_space<vmem>>, vector<1x8x128xf32>
      %97 = vector.shape_cast %96 : vector<1x8x128xf32> to vector<8x128xf32>
      %98 = arith.mulf %94, %78 : vector<8x128xf32>
      %c0_40 = arith.constant 0 : index
      %c0_41 = arith.constant 0 : index
      %99 = vector.load %arg7[%c0_40, %c0_41] : memref<128x128xf32, #tpu.memory_space<vmem>>, vector<128x128xf32>
      %cst_42 = arith.constant dense<0.000000e+00> : vector<8x128xf32>
      %100 = tpu.matmul %98, %99, %cst_42 {dimension_numbers = #tpu.dot_dimension_numbers<[1], [0], [0], [1], [0, 0, 1, 1], [], []>} : vector<8x128xf32>, vector<128x128xf32>, vector<8x128xf32> -> vector<8x128xf32>
      %101 = arith.addf %97, %100 : vector<8x128xf32>
      %102 = math.tanh %101 : vector<8x128xf32>
      %103 = arith.index_cast %c0_i32_4 : i32 to index
      %c0_43 = arith.constant 0 : index
      %c0_44 = arith.constant 0 : index
      %104 = vector.load %arg11[%103, %c0_43, %c0_44] : memref<8x8x128xf32, #tpu.memory_space<vmem>>, vector<1x8x128xf32>
      %105 = vector.shape_cast %104 : vector<1x8x128xf32> to vector<8x128xf32>
      %106 = arith.addf %105, %85 : vector<8x128xf32>
      %107 = arith.negf %106 : vector<8x128xf32>
      %108 = math.exp %107 : vector<8x128xf32>
      %cst_45 = arith.constant 1.000000e+00 : f32
      %109 = vector.broadcast %cst_45 : f32 to vector<8x128xf32>
      %110 = arith.addf %109, %108 : vector<8x128xf32>
      %111 = arith.divf %109, %110 : vector<8x128xf32>
      %112 = vector.broadcast %81 : vector<8x1xf32> to vector<8x128xf32>
      %113 = arith.mulf %112, %111 : vector<8x128xf32>
      %cst_46 = arith.constant 1.000000e+00 : f32
      %114 = vector.broadcast %cst_46 : f32 to vector<8x128xf32>
      %115 = arith.subf %114, %113 : vector<8x128xf32>
      %116 = arith.mulf %115, %78 : vector<8x128xf32>
      %117 = arith.mulf %113, %102 : vector<8x128xf32>
      %118 = arith.addf %116, %117 : vector<8x128xf32>
      %119 = vector.broadcast %17 : i32 to vector<8x1xi32>
      %120 = arith.cmpi slt, %13, %119 : vector<8x1xi32>
      %121 = vector.shape_cast %120 : vector<8x1xi1> to vector<8x1xi1>
      %122 = vector.broadcast %121 : vector<8x1xi1> to vector<8x128xi1>
      %123 = arith.select %122, %118, %78 : vector<8x128xi1>, vector<8x128xf32>
      %c0_47 = arith.constant 0 : index
      %c0_48 = arith.constant 0 : index
      %124 = vector.load %arg13[%c0_47, %c0_48] : memref<8x128xf32, #tpu.memory_space<vmem>>, vector<8x128xf32>
      tpu.vector_store %arg13[%c0_47, %c0_48], %123 {strides = array<i32>} : memref<8x128xf32, #tpu.memory_space<vmem>>, vector<8x128xf32>,
      %cst_49 = arith.constant 0.000000e+00 : f32
      %125 = vector.shape_cast %120 : vector<8x1xi1> to vector<8x1xi1>
      %126 = vector.broadcast %125 : vector<8x1xi1> to vector<8x128xi1>
      %127 = vector.broadcast %cst_49 : f32 to vector<8x128xf32>
      %128 = arith.select %126, %118, %127 : vector<8x128xi1>, vector<8x128xf32>
      %129 = arith.index_cast %c0_i32_4 : i32 to index
      %c0_50 = arith.constant 0 : index
      %c0_51 = arith.constant 0 : index
      %130 = vector.load %arg9[%129, %c0_50, %c0_51] : memref<8x8x128xf32, #tpu.memory_space<vmem>>, vector<1x8x128xf32>
      %131 = vector.shape_cast %130 : vector<1x8x128xf32> to vector<8x128xf32>
      %132 = vector.shape_cast %128 : vector<8x128xf32> to vector<1x8x128xf32>
      tpu.vector_store %arg9[%129, %c0_50, %c0_51], %132 {strides = array<i32>} : memref<8x8x128xf32, #tpu.memory_space<vmem>>, vector<1x8x128xf32>,
    } else {
    }
    %c1_i32 = arith.constant 1 : i32
    %c8_i32_8 = arith.constant 8 : i32
    %22 = arith.muli %arg1, %c8_i32_8 : i32
    %23 = arith.addi %22, %c1_i32 : i32
    %24 = arith.index_cast %23 : i32 to index
    %25 = memref.load %arg2[%24] : memref<16xi32, #tpu.memory_space<smem>>
    %c8_i32_9 = arith.constant 8 : i32
    %26 = arith.muli %arg0, %c8_i32_9 : i32
    %27 = arith.cmpi sgt, %25, %26 : i32
    %28 = arith.extui %27 : i1 to i32
    %c0_i32_10 = arith.constant 0 : i32
    %29 = arith.cmpi ne, %28, %c0_i32_10 : i32
    scf.if %29 {
      %c0 = arith.constant 0 : index
      %c0_30 = arith.constant 0 : index
      %78 = vector.load %arg13[%c0, %c0_30] : memref<8x128xf32, #tpu.memory_space<vmem>>, vector<8x128xf32>
      %79 = arith.index_cast %c1_i32 : i32 to index
      %c0_31 = arith.constant 0 : index
      %c0_32 = arith.constant 0 : index
      %80 = vector.load %arg4[%79, %c0_31, %c0_32] : memref<8x8x1xf32, #tpu.memory_space<vmem>>, vector<1x8x1xf32>
      %81 = vector.shape_cast %80 : vector<1x8x1xf32> to vector<8x1xf32>
      %c0_33 = arith.constant 0 : index
      %c0_34 = arith.constant 0 : index
      %82 = vector.load %arg6[%c0_33, %c0_34] : memref<128x256xf32, #tpu.memory_space<vmem>>, vector<128x256xf32>
      %cst = arith.constant dense<0.000000e+00> : vector<8x256xf32>
      %83 = tpu.matmul %78, %82, %cst {dimension_numbers = #tpu.dot_dimension_numbers<[1], [0], [0], [1], [0, 0, 1, 1], [], []>} : vector<8x128xf32>, vector<128x256xf32>, vector<8x256xf32> -> vector<8x256xf32>
      %84 = vector.extract_strided_slice %83 {offsets = [0, 0], sizes = [8, 128], strides = [1, 1]} : vector<8x256xf32> to vector<8x128xf32>
      %85 = vector.extract_strided_slice %83 {offsets = [0, 128], sizes = [8, 128], strides = [1, 1]} : vector<8x256xf32> to vector<8x128xf32>
      %86 = arith.index_cast %c1_i32 : i32 to index
      %c0_35 = arith.constant 0 : index
      %c0_36 = arith.constant 0 : index
      %87 = vector.load %arg10[%86, %c0_35, %c0_36] : memref<8x8x128xf32, #tpu.memory_space<vmem>>, vector<1x8x128xf32>
      %88 = vector.shape_cast %87 : vector<1x8x128xf32> to vector<8x128xf32>
      %89 = arith.addf %88, %84 : vector<8x128xf32>
      %90 = arith.negf %89 : vector<8x128xf32>
      %91 = math.exp %90 : vector<8x128xf32>
      %cst_37 = arith.constant 1.000000e+00 : f32
      %92 = vector.broadcast %cst_37 : f32 to vector<8x128xf32>
      %93 = arith.addf %92, %91 : vector<8x128xf32>
      %94 = arith.divf %92, %93 : vector<8x128xf32>
      %95 = arith.index_cast %c1_i32 : i32 to index
      %c0_38 = arith.constant 0 : index
      %c0_39 = arith.constant 0 : index
      %96 = vector.load %arg12[%95, %c0_38, %c0_39] : memref<8x8x128xf32, #tpu.memory_space<vmem>>, vector<1x8x128xf32>
      %97 = vector.shape_cast %96 : vector<1x8x128xf32> to vector<8x128xf32>
      %98 = arith.mulf %94, %78 : vector<8x128xf32>
      %c0_40 = arith.constant 0 : index
      %c0_41 = arith.constant 0 : index
      %99 = vector.load %arg7[%c0_40, %c0_41] : memref<128x128xf32, #tpu.memory_space<vmem>>, vector<128x128xf32>
      %cst_42 = arith.constant dense<0.000000e+00> : vector<8x128xf32>
      %100 = tpu.matmul %98, %99, %cst_42 {dimension_numbers = #tpu.dot_dimension_numbers<[1], [0], [0], [1], [0, 0, 1, 1], [], []>} : vector<8x128xf32>, vector<128x128xf32>, vector<8x128xf32> -> vector<8x128xf32>
      %101 = arith.addf %97, %100 : vector<8x128xf32>
      %102 = math.tanh %101 : vector<8x128xf32>
      %103 = arith.index_cast %c1_i32 : i32 to index
      %c0_43 = arith.constant 0 : index
      %c0_44 = arith.constant 0 : index
      %104 = vector.load %arg11[%103, %c0_43, %c0_44] : memref<8x8x128xf32, #tpu.memory_space<vmem>>, vector<1x8x128xf32>
      %105 = vector.shape_cast %104 : vector<1x8x128xf32> to vector<8x128xf32>
      %106 = arith.addf %105, %85 : vector<8x128xf32>
      %107 = arith.negf %106 : vector<8x128xf32>
      %108 = math.exp %107 : vector<8x128xf32>
      %cst_45 = arith.constant 1.000000e+00 : f32
      %109 = vector.broadcast %cst_45 : f32 to vector<8x128xf32>
      %110 = arith.addf %109, %108 : vector<8x128xf32>
      %111 = arith.divf %109, %110 : vector<8x128xf32>
      %112 = vector.broadcast %81 : vector<8x1xf32> to vector<8x128xf32>
      %113 = arith.mulf %112, %111 : vector<8x128xf32>
      %cst_46 = arith.constant 1.000000e+00 : f32
      %114 = vector.broadcast %cst_46 : f32 to vector<8x128xf32>
      %115 = arith.subf %114, %113 : vector<8x128xf32>
      %116 = arith.mulf %115, %78 : vector<8x128xf32>
      %117 = arith.mulf %113, %102 : vector<8x128xf32>
      %118 = arith.addf %116, %117 : vector<8x128xf32>
      %119 = vector.broadcast %25 : i32 to vector<8x1xi32>
      %120 = arith.cmpi slt, %13, %119 : vector<8x1xi32>
      %121 = vector.shape_cast %120 : vector<8x1xi1> to vector<8x1xi1>
      %122 = vector.broadcast %121 : vector<8x1xi1> to vector<8x128xi1>
      %123 = arith.select %122, %118, %78 : vector<8x128xi1>, vector<8x128xf32>
      %c0_47 = arith.constant 0 : index
      %c0_48 = arith.constant 0 : index
      %124 = vector.load %arg13[%c0_47, %c0_48] : memref<8x128xf32, #tpu.memory_space<vmem>>, vector<8x128xf32>
      tpu.vector_store %arg13[%c0_47, %c0_48], %123 {strides = array<i32>} : memref<8x128xf32, #tpu.memory_space<vmem>>, vector<8x128xf32>,
      %cst_49 = arith.constant 0.000000e+00 : f32
      %125 = vector.shape_cast %120 : vector<8x1xi1> to vector<8x1xi1>
      %126 = vector.broadcast %125 : vector<8x1xi1> to vector<8x128xi1>
      %127 = vector.broadcast %cst_49 : f32 to vector<8x128xf32>
      %128 = arith.select %126, %118, %127 : vector<8x128xi1>, vector<8x128xf32>
      %129 = arith.index_cast %c1_i32 : i32 to index
      %c0_50 = arith.constant 0 : index
      %c0_51 = arith.constant 0 : index
      %130 = vector.load %arg9[%129, %c0_50, %c0_51] : memref<8x8x128xf32, #tpu.memory_space<vmem>>, vector<1x8x128xf32>
      %131 = vector.shape_cast %130 : vector<1x8x128xf32> to vector<8x128xf32>
      %132 = vector.shape_cast %128 : vector<8x128xf32> to vector<1x8x128xf32>
      tpu.vector_store %arg9[%129, %c0_50, %c0_51], %132 {strides = array<i32>} : memref<8x8x128xf32, #tpu.memory_space<vmem>>, vector<1x8x128xf32>,
    } else {
    }
    %c2_i32 = arith.constant 2 : i32
    %c8_i32_11 = arith.constant 8 : i32
    %30 = arith.muli %arg1, %c8_i32_11 : i32
    %31 = arith.addi %30, %c2_i32 : i32
    %32 = arith.index_cast %31 : i32 to index
    %33 = memref.load %arg2[%32] : memref<16xi32, #tpu.memory_space<smem>>
    %c8_i32_12 = arith.constant 8 : i32
    %34 = arith.muli %arg0, %c8_i32_12 : i32
    %35 = arith.cmpi sgt, %33, %34 : i32
    %36 = arith.extui %35 : i1 to i32
    %c0_i32_13 = arith.constant 0 : i32
    %37 = arith.cmpi ne, %36, %c0_i32_13 : i32
    scf.if %37 {
      %c0 = arith.constant 0 : index
      %c0_30 = arith.constant 0 : index
      %78 = vector.load %arg13[%c0, %c0_30] : memref<8x128xf32, #tpu.memory_space<vmem>>, vector<8x128xf32>
      %79 = arith.index_cast %c2_i32 : i32 to index
      %c0_31 = arith.constant 0 : index
      %c0_32 = arith.constant 0 : index
      %80 = vector.load %arg4[%79, %c0_31, %c0_32] : memref<8x8x1xf32, #tpu.memory_space<vmem>>, vector<1x8x1xf32>
      %81 = vector.shape_cast %80 : vector<1x8x1xf32> to vector<8x1xf32>
      %c0_33 = arith.constant 0 : index
      %c0_34 = arith.constant 0 : index
      %82 = vector.load %arg6[%c0_33, %c0_34] : memref<128x256xf32, #tpu.memory_space<vmem>>, vector<128x256xf32>
      %cst = arith.constant dense<0.000000e+00> : vector<8x256xf32>
      %83 = tpu.matmul %78, %82, %cst {dimension_numbers = #tpu.dot_dimension_numbers<[1], [0], [0], [1], [0, 0, 1, 1], [], []>} : vector<8x128xf32>, vector<128x256xf32>, vector<8x256xf32> -> vector<8x256xf32>
      %84 = vector.extract_strided_slice %83 {offsets = [0, 0], sizes = [8, 128], strides = [1, 1]} : vector<8x256xf32> to vector<8x128xf32>
      %85 = vector.extract_strided_slice %83 {offsets = [0, 128], sizes = [8, 128], strides = [1, 1]} : vector<8x256xf32> to vector<8x128xf32>
      %86 = arith.index_cast %c2_i32 : i32 to index
      %c0_35 = arith.constant 0 : index
      %c0_36 = arith.constant 0 : index
      %87 = vector.load %arg10[%86, %c0_35, %c0_36] : memref<8x8x128xf32, #tpu.memory_space<vmem>>, vector<1x8x128xf32>
      %88 = vector.shape_cast %87 : vector<1x8x128xf32> to vector<8x128xf32>
      %89 = arith.addf %88, %84 : vector<8x128xf32>
      %90 = arith.negf %89 : vector<8x128xf32>
      %91 = math.exp %90 : vector<8x128xf32>
      %cst_37 = arith.constant 1.000000e+00 : f32
      %92 = vector.broadcast %cst_37 : f32 to vector<8x128xf32>
      %93 = arith.addf %92, %91 : vector<8x128xf32>
      %94 = arith.divf %92, %93 : vector<8x128xf32>
      %95 = arith.index_cast %c2_i32 : i32 to index
      %c0_38 = arith.constant 0 : index
      %c0_39 = arith.constant 0 : index
      %96 = vector.load %arg12[%95, %c0_38, %c0_39] : memref<8x8x128xf32, #tpu.memory_space<vmem>>, vector<1x8x128xf32>
      %97 = vector.shape_cast %96 : vector<1x8x128xf32> to vector<8x128xf32>
      %98 = arith.mulf %94, %78 : vector<8x128xf32>
      %c0_40 = arith.constant 0 : index
      %c0_41 = arith.constant 0 : index
      %99 = vector.load %arg7[%c0_40, %c0_41] : memref<128x128xf32, #tpu.memory_space<vmem>>, vector<128x128xf32>
      %cst_42 = arith.constant dense<0.000000e+00> : vector<8x128xf32>
      %100 = tpu.matmul %98, %99, %cst_42 {dimension_numbers = #tpu.dot_dimension_numbers<[1], [0], [0], [1], [0, 0, 1, 1], [], []>} : vector<8x128xf32>, vector<128x128xf32>, vector<8x128xf32> -> vector<8x128xf32>
      %101 = arith.addf %97, %100 : vector<8x128xf32>
      %102 = math.tanh %101 : vector<8x128xf32>
      %103 = arith.index_cast %c2_i32 : i32 to index
      %c0_43 = arith.constant 0 : index
      %c0_44 = arith.constant 0 : index
      %104 = vector.load %arg11[%103, %c0_43, %c0_44] : memref<8x8x128xf32, #tpu.memory_space<vmem>>, vector<1x8x128xf32>
      %105 = vector.shape_cast %104 : vector<1x8x128xf32> to vector<8x128xf32>
      %106 = arith.addf %105, %85 : vector<8x128xf32>
      %107 = arith.negf %106 : vector<8x128xf32>
      %108 = math.exp %107 : vector<8x128xf32>
      %cst_45 = arith.constant 1.000000e+00 : f32
      %109 = vector.broadcast %cst_45 : f32 to vector<8x128xf32>
      %110 = arith.addf %109, %108 : vector<8x128xf32>
      %111 = arith.divf %109, %110 : vector<8x128xf32>
      %112 = vector.broadcast %81 : vector<8x1xf32> to vector<8x128xf32>
      %113 = arith.mulf %112, %111 : vector<8x128xf32>
      %cst_46 = arith.constant 1.000000e+00 : f32
      %114 = vector.broadcast %cst_46 : f32 to vector<8x128xf32>
      %115 = arith.subf %114, %113 : vector<8x128xf32>
      %116 = arith.mulf %115, %78 : vector<8x128xf32>
      %117 = arith.mulf %113, %102 : vector<8x128xf32>
      %118 = arith.addf %116, %117 : vector<8x128xf32>
      %119 = vector.broadcast %33 : i32 to vector<8x1xi32>
      %120 = arith.cmpi slt, %13, %119 : vector<8x1xi32>
      %121 = vector.shape_cast %120 : vector<8x1xi1> to vector<8x1xi1>
      %122 = vector.broadcast %121 : vector<8x1xi1> to vector<8x128xi1>
      %123 = arith.select %122, %118, %78 : vector<8x128xi1>, vector<8x128xf32>
      %c0_47 = arith.constant 0 : index
      %c0_48 = arith.constant 0 : index
      %124 = vector.load %arg13[%c0_47, %c0_48] : memref<8x128xf32, #tpu.memory_space<vmem>>, vector<8x128xf32>
      tpu.vector_store %arg13[%c0_47, %c0_48], %123 {strides = array<i32>} : memref<8x128xf32, #tpu.memory_space<vmem>>, vector<8x128xf32>,
      %cst_49 = arith.constant 0.000000e+00 : f32
      %125 = vector.shape_cast %120 : vector<8x1xi1> to vector<8x1xi1>
      %126 = vector.broadcast %125 : vector<8x1xi1> to vector<8x128xi1>
      %127 = vector.broadcast %cst_49 : f32 to vector<8x128xf32>
      %128 = arith.select %126, %118, %127 : vector<8x128xi1>, vector<8x128xf32>
      %129 = arith.index_cast %c2_i32 : i32 to index
      %c0_50 = arith.constant 0 : index
      %c0_51 = arith.constant 0 : index
      %130 = vector.load %arg9[%129, %c0_50, %c0_51] : memref<8x8x128xf32, #tpu.memory_space<vmem>>, vector<1x8x128xf32>
      %131 = vector.shape_cast %130 : vector<1x8x128xf32> to vector<8x128xf32>
      %132 = vector.shape_cast %128 : vector<8x128xf32> to vector<1x8x128xf32>
      tpu.vector_store %arg9[%129, %c0_50, %c0_51], %132 {strides = array<i32>} : memref<8x8x128xf32, #tpu.memory_space<vmem>>, vector<1x8x128xf32>,
    } else {
    }
    %c3_i32 = arith.constant 3 : i32
    %c8_i32_14 = arith.constant 8 : i32
    %38 = arith.muli %arg1, %c8_i32_14 : i32
    %39 = arith.addi %38, %c3_i32 : i32
    %40 = arith.index_cast %39 : i32 to index
    %41 = memref.load %arg2[%40] : memref<16xi32, #tpu.memory_space<smem>>
    %c8_i32_15 = arith.constant 8 : i32
    %42 = arith.muli %arg0, %c8_i32_15 : i32
    %43 = arith.cmpi sgt, %41, %42 : i32
    %44 = arith.extui %43 : i1 to i32
    %c0_i32_16 = arith.constant 0 : i32
    %45 = arith.cmpi ne, %44, %c0_i32_16 : i32
    scf.if %45 {
      %c0 = arith.constant 0 : index
      %c0_30 = arith.constant 0 : index
      %78 = vector.load %arg13[%c0, %c0_30] : memref<8x128xf32, #tpu.memory_space<vmem>>, vector<8x128xf32>
      %79 = arith.index_cast %c3_i32 : i32 to index
      %c0_31 = arith.constant 0 : index
      %c0_32 = arith.constant 0 : index
      %80 = vector.load %arg4[%79, %c0_31, %c0_32] : memref<8x8x1xf32, #tpu.memory_space<vmem>>, vector<1x8x1xf32>
      %81 = vector.shape_cast %80 : vector<1x8x1xf32> to vector<8x1xf32>
      %c0_33 = arith.constant 0 : index
      %c0_34 = arith.constant 0 : index
      %82 = vector.load %arg6[%c0_33, %c0_34] : memref<128x256xf32, #tpu.memory_space<vmem>>, vector<128x256xf32>
      %cst = arith.constant dense<0.000000e+00> : vector<8x256xf32>
      %83 = tpu.matmul %78, %82, %cst {dimension_numbers = #tpu.dot_dimension_numbers<[1], [0], [0], [1], [0, 0, 1, 1], [], []>} : vector<8x128xf32>, vector<128x256xf32>, vector<8x256xf32> -> vector<8x256xf32>
      %84 = vector.extract_strided_slice %83 {offsets = [0, 0], sizes = [8, 128], strides = [1, 1]} : vector<8x256xf32> to vector<8x128xf32>
      %85 = vector.extract_strided_slice %83 {offsets = [0, 128], sizes = [8, 128], strides = [1, 1]} : vector<8x256xf32> to vector<8x128xf32>
      %86 = arith.index_cast %c3_i32 : i32 to index
      %c0_35 = arith.constant 0 : index
      %c0_36 = arith.constant 0 : index
      %87 = vector.load %arg10[%86, %c0_35, %c0_36] : memref<8x8x128xf32, #tpu.memory_space<vmem>>, vector<1x8x128xf32>
      %88 = vector.shape_cast %87 : vector<1x8x128xf32> to vector<8x128xf32>
      %89 = arith.addf %88, %84 : vector<8x128xf32>
      %90 = arith.negf %89 : vector<8x128xf32>
      %91 = math.exp %90 : vector<8x128xf32>
      %cst_37 = arith.constant 1.000000e+00 : f32
      %92 = vector.broadcast %cst_37 : f32 to vector<8x128xf32>
      %93 = arith.addf %92, %91 : vector<8x128xf32>
      %94 = arith.divf %92, %93 : vector<8x128xf32>
      %95 = arith.index_cast %c3_i32 : i32 to index
      %c0_38 = arith.constant 0 : index
      %c0_39 = arith.constant 0 : index
      %96 = vector.load %arg12[%95, %c0_38, %c0_39] : memref<8x8x128xf32, #tpu.memory_space<vmem>>, vector<1x8x128xf32>
      %97 = vector.shape_cast %96 : vector<1x8x128xf32> to vector<8x128xf32>
      %98 = arith.mulf %94, %78 : vector<8x128xf32>
      %c0_40 = arith.constant 0 : index
      %c0_41 = arith.constant 0 : index
      %99 = vector.load %arg7[%c0_40, %c0_41] : memref<128x128xf32, #tpu.memory_space<vmem>>, vector<128x128xf32>
      %cst_42 = arith.constant dense<0.000000e+00> : vector<8x128xf32>
      %100 = tpu.matmul %98, %99, %cst_42 {dimension_numbers = #tpu.dot_dimension_numbers<[1], [0], [0], [1], [0, 0, 1, 1], [], []>} : vector<8x128xf32>, vector<128x128xf32>, vector<8x128xf32> -> vector<8x128xf32>
      %101 = arith.addf %97, %100 : vector<8x128xf32>
      %102 = math.tanh %101 : vector<8x128xf32>
      %103 = arith.index_cast %c3_i32 : i32 to index
      %c0_43 = arith.constant 0 : index
      %c0_44 = arith.constant 0 : index
      %104 = vector.load %arg11[%103, %c0_43, %c0_44] : memref<8x8x128xf32, #tpu.memory_space<vmem>>, vector<1x8x128xf32>
      %105 = vector.shape_cast %104 : vector<1x8x128xf32> to vector<8x128xf32>
      %106 = arith.addf %105, %85 : vector<8x128xf32>
      %107 = arith.negf %106 : vector<8x128xf32>
      %108 = math.exp %107 : vector<8x128xf32>
      %cst_45 = arith.constant 1.000000e+00 : f32
      %109 = vector.broadcast %cst_45 : f32 to vector<8x128xf32>
      %110 = arith.addf %109, %108 : vector<8x128xf32>
      %111 = arith.divf %109, %110 : vector<8x128xf32>
      %112 = vector.broadcast %81 : vector<8x1xf32> to vector<8x128xf32>
      %113 = arith.mulf %112, %111 : vector<8x128xf32>
      %cst_46 = arith.constant 1.000000e+00 : f32
      %114 = vector.broadcast %cst_46 : f32 to vector<8x128xf32>
      %115 = arith.subf %114, %113 : vector<8x128xf32>
      %116 = arith.mulf %115, %78 : vector<8x128xf32>
      %117 = arith.mulf %113, %102 : vector<8x128xf32>
      %118 = arith.addf %116, %117 : vector<8x128xf32>
      %119 = vector.broadcast %41 : i32 to vector<8x1xi32>
      %120 = arith.cmpi slt, %13, %119 : vector<8x1xi32>
      %121 = vector.shape_cast %120 : vector<8x1xi1> to vector<8x1xi1>
      %122 = vector.broadcast %121 : vector<8x1xi1> to vector<8x128xi1>
      %123 = arith.select %122, %118, %78 : vector<8x128xi1>, vector<8x128xf32>
      %c0_47 = arith.constant 0 : index
      %c0_48 = arith.constant 0 : index
      %124 = vector.load %arg13[%c0_47, %c0_48] : memref<8x128xf32, #tpu.memory_space<vmem>>, vector<8x128xf32>
      tpu.vector_store %arg13[%c0_47, %c0_48], %123 {strides = array<i32>} : memref<8x128xf32, #tpu.memory_space<vmem>>, vector<8x128xf32>,
      %cst_49 = arith.constant 0.000000e+00 : f32
      %125 = vector.shape_cast %120 : vector<8x1xi1> to vector<8x1xi1>
      %126 = vector.broadcast %125 : vector<8x1xi1> to vector<8x128xi1>
      %127 = vector.broadcast %cst_49 : f32 to vector<8x128xf32>
      %128 = arith.select %126, %118, %127 : vector<8x128xi1>, vector<8x128xf32>
      %129 = arith.index_cast %c3_i32 : i32 to index
      %c0_50 = arith.constant 0 : index
      %c0_51 = arith.constant 0 : index
      %130 = vector.load %arg9[%129, %c0_50, %c0_51] : memref<8x8x128xf32, #tpu.memory_space<vmem>>, vector<1x8x128xf32>
      %131 = vector.shape_cast %130 : vector<1x8x128xf32> to vector<8x128xf32>
      %132 = vector.shape_cast %128 : vector<8x128xf32> to vector<1x8x128xf32>
      tpu.vector_store %arg9[%129, %c0_50, %c0_51], %132 {strides = array<i32>} : memref<8x8x128xf32, #tpu.memory_space<vmem>>, vector<1x8x128xf32>,
    } else {
    }
    %c4_i32 = arith.constant 4 : i32
    %c8_i32_17 = arith.constant 8 : i32
    %46 = arith.muli %arg1, %c8_i32_17 : i32
    %47 = arith.addi %46, %c4_i32 : i32
    %48 = arith.index_cast %47 : i32 to index
    %49 = memref.load %arg2[%48] : memref<16xi32, #tpu.memory_space<smem>>
    %c8_i32_18 = arith.constant 8 : i32
    %50 = arith.muli %arg0, %c8_i32_18 : i32
    %51 = arith.cmpi sgt, %49, %50 : i32
    %52 = arith.extui %51 : i1 to i32
    %c0_i32_19 = arith.constant 0 : i32
    %53 = arith.cmpi ne, %52, %c0_i32_19 : i32
    scf.if %53 {
      %c0 = arith.constant 0 : index
      %c0_30 = arith.constant 0 : index
      %78 = vector.load %arg13[%c0, %c0_30] : memref<8x128xf32, #tpu.memory_space<vmem>>, vector<8x128xf32>
      %79 = arith.index_cast %c4_i32 : i32 to index
      %c0_31 = arith.constant 0 : index
      %c0_32 = arith.constant 0 : index
      %80 = vector.load %arg4[%79, %c0_31, %c0_32] : memref<8x8x1xf32, #tpu.memory_space<vmem>>, vector<1x8x1xf32>
      %81 = vector.shape_cast %80 : vector<1x8x1xf32> to vector<8x1xf32>
      %c0_33 = arith.constant 0 : index
      %c0_34 = arith.constant 0 : index
      %82 = vector.load %arg6[%c0_33, %c0_34] : memref<128x256xf32, #tpu.memory_space<vmem>>, vector<128x256xf32>
      %cst = arith.constant dense<0.000000e+00> : vector<8x256xf32>
      %83 = tpu.matmul %78, %82, %cst {dimension_numbers = #tpu.dot_dimension_numbers<[1], [0], [0], [1], [0, 0, 1, 1], [], []>} : vector<8x128xf32>, vector<128x256xf32>, vector<8x256xf32> -> vector<8x256xf32>
      %84 = vector.extract_strided_slice %83 {offsets = [0, 0], sizes = [8, 128], strides = [1, 1]} : vector<8x256xf32> to vector<8x128xf32>
      %85 = vector.extract_strided_slice %83 {offsets = [0, 128], sizes = [8, 128], strides = [1, 1]} : vector<8x256xf32> to vector<8x128xf32>
      %86 = arith.index_cast %c4_i32 : i32 to index
      %c0_35 = arith.constant 0 : index
      %c0_36 = arith.constant 0 : index
      %87 = vector.load %arg10[%86, %c0_35, %c0_36] : memref<8x8x128xf32, #tpu.memory_space<vmem>>, vector<1x8x128xf32>
      %88 = vector.shape_cast %87 : vector<1x8x128xf32> to vector<8x128xf32>
      %89 = arith.addf %88, %84 : vector<8x128xf32>
      %90 = arith.negf %89 : vector<8x128xf32>
      %91 = math.exp %90 : vector<8x128xf32>
      %cst_37 = arith.constant 1.000000e+00 : f32
      %92 = vector.broadcast %cst_37 : f32 to vector<8x128xf32>
      %93 = arith.addf %92, %91 : vector<8x128xf32>
      %94 = arith.divf %92, %93 : vector<8x128xf32>
      %95 = arith.index_cast %c4_i32 : i32 to index
      %c0_38 = arith.constant 0 : index
      %c0_39 = arith.constant 0 : index
      %96 = vector.load %arg12[%95, %c0_38, %c0_39] : memref<8x8x128xf32, #tpu.memory_space<vmem>>, vector<1x8x128xf32>
      %97 = vector.shape_cast %96 : vector<1x8x128xf32> to vector<8x128xf32>
      %98 = arith.mulf %94, %78 : vector<8x128xf32>
      %c0_40 = arith.constant 0 : index
      %c0_41 = arith.constant 0 : index
      %99 = vector.load %arg7[%c0_40, %c0_41] : memref<128x128xf32, #tpu.memory_space<vmem>>, vector<128x128xf32>
      %cst_42 = arith.constant dense<0.000000e+00> : vector<8x128xf32>
      %100 = tpu.matmul %98, %99, %cst_42 {dimension_numbers = #tpu.dot_dimension_numbers<[1], [0], [0], [1], [0, 0, 1, 1], [], []>} : vector<8x128xf32>, vector<128x128xf32>, vector<8x128xf32> -> vector<8x128xf32>
      %101 = arith.addf %97, %100 : vector<8x128xf32>
      %102 = math.tanh %101 : vector<8x128xf32>
      %103 = arith.index_cast %c4_i32 : i32 to index
      %c0_43 = arith.constant 0 : index
      %c0_44 = arith.constant 0 : index
      %104 = vector.load %arg11[%103, %c0_43, %c0_44] : memref<8x8x128xf32, #tpu.memory_space<vmem>>, vector<1x8x128xf32>
      %105 = vector.shape_cast %104 : vector<1x8x128xf32> to vector<8x128xf32>
      %106 = arith.addf %105, %85 : vector<8x128xf32>
      %107 = arith.negf %106 : vector<8x128xf32>
      %108 = math.exp %107 : vector<8x128xf32>
      %cst_45 = arith.constant 1.000000e+00 : f32
      %109 = vector.broadcast %cst_45 : f32 to vector<8x128xf32>
      %110 = arith.addf %109, %108 : vector<8x128xf32>
      %111 = arith.divf %109, %110 : vector<8x128xf32>
      %112 = vector.broadcast %81 : vector<8x1xf32> to vector<8x128xf32>
      %113 = arith.mulf %112, %111 : vector<8x128xf32>
      %cst_46 = arith.constant 1.000000e+00 : f32
      %114 = vector.broadcast %cst_46 : f32 to vector<8x128xf32>
      %115 = arith.subf %114, %113 : vector<8x128xf32>
      %116 = arith.mulf %115, %78 : vector<8x128xf32>
      %117 = arith.mulf %113, %102 : vector<8x128xf32>
      %118 = arith.addf %116, %117 : vector<8x128xf32>
      %119 = vector.broadcast %49 : i32 to vector<8x1xi32>
      %120 = arith.cmpi slt, %13, %119 : vector<8x1xi32>
      %121 = vector.shape_cast %120 : vector<8x1xi1> to vector<8x1xi1>
      %122 = vector.broadcast %121 : vector<8x1xi1> to vector<8x128xi1>
      %123 = arith.select %122, %118, %78 : vector<8x128xi1>, vector<8x128xf32>
      %c0_47 = arith.constant 0 : index
      %c0_48 = arith.constant 0 : index
      %124 = vector.load %arg13[%c0_47, %c0_48] : memref<8x128xf32, #tpu.memory_space<vmem>>, vector<8x128xf32>
      tpu.vector_store %arg13[%c0_47, %c0_48], %123 {strides = array<i32>} : memref<8x128xf32, #tpu.memory_space<vmem>>, vector<8x128xf32>,
      %cst_49 = arith.constant 0.000000e+00 : f32
      %125 = vector.shape_cast %120 : vector<8x1xi1> to vector<8x1xi1>
      %126 = vector.broadcast %125 : vector<8x1xi1> to vector<8x128xi1>
      %127 = vector.broadcast %cst_49 : f32 to vector<8x128xf32>
      %128 = arith.select %126, %118, %127 : vector<8x128xi1>, vector<8x128xf32>
      %129 = arith.index_cast %c4_i32 : i32 to index
      %c0_50 = arith.constant 0 : index
      %c0_51 = arith.constant 0 : index
      %130 = vector.load %arg9[%129, %c0_50, %c0_51] : memref<8x8x128xf32, #tpu.memory_space<vmem>>, vector<1x8x128xf32>
      %131 = vector.shape_cast %130 : vector<1x8x128xf32> to vector<8x128xf32>
      %132 = vector.shape_cast %128 : vector<8x128xf32> to vector<1x8x128xf32>
      tpu.vector_store %arg9[%129, %c0_50, %c0_51], %132 {strides = array<i32>} : memref<8x8x128xf32, #tpu.memory_space<vmem>>, vector<1x8x128xf32>,
    } else {
    }
    %c5_i32 = arith.constant 5 : i32
    %c8_i32_20 = arith.constant 8 : i32
    %54 = arith.muli %arg1, %c8_i32_20 : i32
    %55 = arith.addi %54, %c5_i32 : i32
    %56 = arith.index_cast %55 : i32 to index
    %57 = memref.load %arg2[%56] : memref<16xi32, #tpu.memory_space<smem>>
    %c8_i32_21 = arith.constant 8 : i32
    %58 = arith.muli %arg0, %c8_i32_21 : i32
    %59 = arith.cmpi sgt, %57, %58 : i32
    %60 = arith.extui %59 : i1 to i32
    %c0_i32_22 = arith.constant 0 : i32
    %61 = arith.cmpi ne, %60, %c0_i32_22 : i32
    scf.if %61 {
      %c0 = arith.constant 0 : index
      %c0_30 = arith.constant 0 : index
      %78 = vector.load %arg13[%c0, %c0_30] : memref<8x128xf32, #tpu.memory_space<vmem>>, vector<8x128xf32>
      %79 = arith.index_cast %c5_i32 : i32 to index
      %c0_31 = arith.constant 0 : index
      %c0_32 = arith.constant 0 : index
      %80 = vector.load %arg4[%79, %c0_31, %c0_32] : memref<8x8x1xf32, #tpu.memory_space<vmem>>, vector<1x8x1xf32>
      %81 = vector.shape_cast %80 : vector<1x8x1xf32> to vector<8x1xf32>
      %c0_33 = arith.constant 0 : index
      %c0_34 = arith.constant 0 : index
      %82 = vector.load %arg6[%c0_33, %c0_34] : memref<128x256xf32, #tpu.memory_space<vmem>>, vector<128x256xf32>
      %cst = arith.constant dense<0.000000e+00> : vector<8x256xf32>
      %83 = tpu.matmul %78, %82, %cst {dimension_numbers = #tpu.dot_dimension_numbers<[1], [0], [0], [1], [0, 0, 1, 1], [], []>} : vector<8x128xf32>, vector<128x256xf32>, vector<8x256xf32> -> vector<8x256xf32>
      %84 = vector.extract_strided_slice %83 {offsets = [0, 0], sizes = [8, 128], strides = [1, 1]} : vector<8x256xf32> to vector<8x128xf32>
      %85 = vector.extract_strided_slice %83 {offsets = [0, 128], sizes = [8, 128], strides = [1, 1]} : vector<8x256xf32> to vector<8x128xf32>
      %86 = arith.index_cast %c5_i32 : i32 to index
      %c0_35 = arith.constant 0 : index
      %c0_36 = arith.constant 0 : index
      %87 = vector.load %arg10[%86, %c0_35, %c0_36] : memref<8x8x128xf32, #tpu.memory_space<vmem>>, vector<1x8x128xf32>
      %88 = vector.shape_cast %87 : vector<1x8x128xf32> to vector<8x128xf32>
      %89 = arith.addf %88, %84 : vector<8x128xf32>
      %90 = arith.negf %89 : vector<8x128xf32>
      %91 = math.exp %90 : vector<8x128xf32>
      %cst_37 = arith.constant 1.000000e+00 : f32
      %92 = vector.broadcast %cst_37 : f32 to vector<8x128xf32>
      %93 = arith.addf %92, %91 : vector<8x128xf32>
      %94 = arith.divf %92, %93 : vector<8x128xf32>
      %95 = arith.index_cast %c5_i32 : i32 to index
      %c0_38 = arith.constant 0 : index
      %c0_39 = arith.constant 0 : index
      %96 = vector.load %arg12[%95, %c0_38, %c0_39] : memref<8x8x128xf32, #tpu.memory_space<vmem>>, vector<1x8x128xf32>
      %97 = vector.shape_cast %96 : vector<1x8x128xf32> to vector<8x128xf32>
      %98 = arith.mulf %94, %78 : vector<8x128xf32>
      %c0_40 = arith.constant 0 : index
      %c0_41 = arith.constant 0 : index
      %99 = vector.load %arg7[%c0_40, %c0_41] : memref<128x128xf32, #tpu.memory_space<vmem>>, vector<128x128xf32>
      %cst_42 = arith.constant dense<0.000000e+00> : vector<8x128xf32>
      %100 = tpu.matmul %98, %99, %cst_42 {dimension_numbers = #tpu.dot_dimension_numbers<[1], [0], [0], [1], [0, 0, 1, 1], [], []>} : vector<8x128xf32>, vector<128x128xf32>, vector<8x128xf32> -> vector<8x128xf32>
      %101 = arith.addf %97, %100 : vector<8x128xf32>
      %102 = math.tanh %101 : vector<8x128xf32>
      %103 = arith.index_cast %c5_i32 : i32 to index
      %c0_43 = arith.constant 0 : index
      %c0_44 = arith.constant 0 : index
      %104 = vector.load %arg11[%103, %c0_43, %c0_44] : memref<8x8x128xf32, #tpu.memory_space<vmem>>, vector<1x8x128xf32>
      %105 = vector.shape_cast %104 : vector<1x8x128xf32> to vector<8x128xf32>
      %106 = arith.addf %105, %85 : vector<8x128xf32>
      %107 = arith.negf %106 : vector<8x128xf32>
      %108 = math.exp %107 : vector<8x128xf32>
      %cst_45 = arith.constant 1.000000e+00 : f32
      %109 = vector.broadcast %cst_45 : f32 to vector<8x128xf32>
      %110 = arith.addf %109, %108 : vector<8x128xf32>
      %111 = arith.divf %109, %110 : vector<8x128xf32>
      %112 = vector.broadcast %81 : vector<8x1xf32> to vector<8x128xf32>
      %113 = arith.mulf %112, %111 : vector<8x128xf32>
      %cst_46 = arith.constant 1.000000e+00 : f32
      %114 = vector.broadcast %cst_46 : f32 to vector<8x128xf32>
      %115 = arith.subf %114, %113 : vector<8x128xf32>
      %116 = arith.mulf %115, %78 : vector<8x128xf32>
      %117 = arith.mulf %113, %102 : vector<8x128xf32>
      %118 = arith.addf %116, %117 : vector<8x128xf32>
      %119 = vector.broadcast %57 : i32 to vector<8x1xi32>
      %120 = arith.cmpi slt, %13, %119 : vector<8x1xi32>
      %121 = vector.shape_cast %120 : vector<8x1xi1> to vector<8x1xi1>
      %122 = vector.broadcast %121 : vector<8x1xi1> to vector<8x128xi1>
      %123 = arith.select %122, %118, %78 : vector<8x128xi1>, vector<8x128xf32>
      %c0_47 = arith.constant 0 : index
      %c0_48 = arith.constant 0 : index
      %124 = vector.load %arg13[%c0_47, %c0_48] : memref<8x128xf32, #tpu.memory_space<vmem>>, vector<8x128xf32>
      tpu.vector_store %arg13[%c0_47, %c0_48], %123 {strides = array<i32>} : memref<8x128xf32, #tpu.memory_space<vmem>>, vector<8x128xf32>,
      %cst_49 = arith.constant 0.000000e+00 : f32
      %125 = vector.shape_cast %120 : vector<8x1xi1> to vector<8x1xi1>
      %126 = vector.broadcast %125 : vector<8x1xi1> to vector<8x128xi1>
      %127 = vector.broadcast %cst_49 : f32 to vector<8x128xf32>
      %128 = arith.select %126, %118, %127 : vector<8x128xi1>, vector<8x128xf32>
      %129 = arith.index_cast %c5_i32 : i32 to index
      %c0_50 = arith.constant 0 : index
      %c0_51 = arith.constant 0 : index
      %130 = vector.load %arg9[%129, %c0_50, %c0_51] : memref<8x8x128xf32, #tpu.memory_space<vmem>>, vector<1x8x128xf32>
      %131 = vector.shape_cast %130 : vector<1x8x128xf32> to vector<8x128xf32>
      %132 = vector.shape_cast %128 : vector<8x128xf32> to vector<1x8x128xf32>
      tpu.vector_store %arg9[%129, %c0_50, %c0_51], %132 {strides = array<i32>} : memref<8x8x128xf32, #tpu.memory_space<vmem>>, vector<1x8x128xf32>,
    } else {
    }
    %c6_i32 = arith.constant 6 : i32
    %c8_i32_23 = arith.constant 8 : i32
    %62 = arith.muli %arg1, %c8_i32_23 : i32
    %63 = arith.addi %62, %c6_i32 : i32
    %64 = arith.index_cast %63 : i32 to index
    %65 = memref.load %arg2[%64] : memref<16xi32, #tpu.memory_space<smem>>
    %c8_i32_24 = arith.constant 8 : i32
    %66 = arith.muli %arg0, %c8_i32_24 : i32
    %67 = arith.cmpi sgt, %65, %66 : i32
    %68 = arith.extui %67 : i1 to i32
    %c0_i32_25 = arith.constant 0 : i32
    %69 = arith.cmpi ne, %68, %c0_i32_25 : i32
    scf.if %69 {
      %c0 = arith.constant 0 : index
      %c0_30 = arith.constant 0 : index
      %78 = vector.load %arg13[%c0, %c0_30] : memref<8x128xf32, #tpu.memory_space<vmem>>, vector<8x128xf32>
      %79 = arith.index_cast %c6_i32 : i32 to index
      %c0_31 = arith.constant 0 : index
      %c0_32 = arith.constant 0 : index
      %80 = vector.load %arg4[%79, %c0_31, %c0_32] : memref<8x8x1xf32, #tpu.memory_space<vmem>>, vector<1x8x1xf32>
      %81 = vector.shape_cast %80 : vector<1x8x1xf32> to vector<8x1xf32>
      %c0_33 = arith.constant 0 : index
      %c0_34 = arith.constant 0 : index
      %82 = vector.load %arg6[%c0_33, %c0_34] : memref<128x256xf32, #tpu.memory_space<vmem>>, vector<128x256xf32>
      %cst = arith.constant dense<0.000000e+00> : vector<8x256xf32>
      %83 = tpu.matmul %78, %82, %cst {dimension_numbers = #tpu.dot_dimension_numbers<[1], [0], [0], [1], [0, 0, 1, 1], [], []>} : vector<8x128xf32>, vector<128x256xf32>, vector<8x256xf32> -> vector<8x256xf32>
      %84 = vector.extract_strided_slice %83 {offsets = [0, 0], sizes = [8, 128], strides = [1, 1]} : vector<8x256xf32> to vector<8x128xf32>
      %85 = vector.extract_strided_slice %83 {offsets = [0, 128], sizes = [8, 128], strides = [1, 1]} : vector<8x256xf32> to vector<8x128xf32>
      %86 = arith.index_cast %c6_i32 : i32 to index
      %c0_35 = arith.constant 0 : index
      %c0_36 = arith.constant 0 : index
      %87 = vector.load %arg10[%86, %c0_35, %c0_36] : memref<8x8x128xf32, #tpu.memory_space<vmem>>, vector<1x8x128xf32>
      %88 = vector.shape_cast %87 : vector<1x8x128xf32> to vector<8x128xf32>
      %89 = arith.addf %88, %84 : vector<8x128xf32>
      %90 = arith.negf %89 : vector<8x128xf32>
      %91 = math.exp %90 : vector<8x128xf32>
      %cst_37 = arith.constant 1.000000e+00 : f32
      %92 = vector.broadcast %cst_37 : f32 to vector<8x128xf32>
      %93 = arith.addf %92, %91 : vector<8x128xf32>
      %94 = arith.divf %92, %93 : vector<8x128xf32>
      %95 = arith.index_cast %c6_i32 : i32 to index
      %c0_38 = arith.constant 0 : index
      %c0_39 = arith.constant 0 : index
      %96 = vector.load %arg12[%95, %c0_38, %c0_39] : memref<8x8x128xf32, #tpu.memory_space<vmem>>, vector<1x8x128xf32>
      %97 = vector.shape_cast %96 : vector<1x8x128xf32> to vector<8x128xf32>
      %98 = arith.mulf %94, %78 : vector<8x128xf32>
      %c0_40 = arith.constant 0 : index
      %c0_41 = arith.constant 0 : index
      %99 = vector.load %arg7[%c0_40, %c0_41] : memref<128x128xf32, #tpu.memory_space<vmem>>, vector<128x128xf32>
      %cst_42 = arith.constant dense<0.000000e+00> : vector<8x128xf32>
      %100 = tpu.matmul %98, %99, %cst_42 {dimension_numbers = #tpu.dot_dimension_numbers<[1], [0], [0], [1], [0, 0, 1, 1], [], []>} : vector<8x128xf32>, vector<128x128xf32>, vector<8x128xf32> -> vector<8x128xf32>
      %101 = arith.addf %97, %100 : vector<8x128xf32>
      %102 = math.tanh %101 : vector<8x128xf32>
      %103 = arith.index_cast %c6_i32 : i32 to index
      %c0_43 = arith.constant 0 : index
      %c0_44 = arith.constant 0 : index
      %104 = vector.load %arg11[%103, %c0_43, %c0_44] : memref<8x8x128xf32, #tpu.memory_space<vmem>>, vector<1x8x128xf32>
      %105 = vector.shape_cast %104 : vector<1x8x128xf32> to vector<8x128xf32>
      %106 = arith.addf %105, %85 : vector<8x128xf32>
      %107 = arith.negf %106 : vector<8x128xf32>
      %108 = math.exp %107 : vector<8x128xf32>
      %cst_45 = arith.constant 1.000000e+00 : f32
      %109 = vector.broadcast %cst_45 : f32 to vector<8x128xf32>
      %110 = arith.addf %109, %108 : vector<8x128xf32>
      %111 = arith.divf %109, %110 : vector<8x128xf32>
      %112 = vector.broadcast %81 : vector<8x1xf32> to vector<8x128xf32>
      %113 = arith.mulf %112, %111 : vector<8x128xf32>
      %cst_46 = arith.constant 1.000000e+00 : f32
      %114 = vector.broadcast %cst_46 : f32 to vector<8x128xf32>
      %115 = arith.subf %114, %113 : vector<8x128xf32>
      %116 = arith.mulf %115, %78 : vector<8x128xf32>
      %117 = arith.mulf %113, %102 : vector<8x128xf32>
      %118 = arith.addf %116, %117 : vector<8x128xf32>
      %119 = vector.broadcast %65 : i32 to vector<8x1xi32>
      %120 = arith.cmpi slt, %13, %119 : vector<8x1xi32>
      %121 = vector.shape_cast %120 : vector<8x1xi1> to vector<8x1xi1>
      %122 = vector.broadcast %121 : vector<8x1xi1> to vector<8x128xi1>
      %123 = arith.select %122, %118, %78 : vector<8x128xi1>, vector<8x128xf32>
      %c0_47 = arith.constant 0 : index
      %c0_48 = arith.constant 0 : index
      %124 = vector.load %arg13[%c0_47, %c0_48] : memref<8x128xf32, #tpu.memory_space<vmem>>, vector<8x128xf32>
      tpu.vector_store %arg13[%c0_47, %c0_48], %123 {strides = array<i32>} : memref<8x128xf32, #tpu.memory_space<vmem>>, vector<8x128xf32>,
      %cst_49 = arith.constant 0.000000e+00 : f32
      %125 = vector.shape_cast %120 : vector<8x1xi1> to vector<8x1xi1>
      %126 = vector.broadcast %125 : vector<8x1xi1> to vector<8x128xi1>
      %127 = vector.broadcast %cst_49 : f32 to vector<8x128xf32>
      %128 = arith.select %126, %118, %127 : vector<8x128xi1>, vector<8x128xf32>
      %129 = arith.index_cast %c6_i32 : i32 to index
      %c0_50 = arith.constant 0 : index
      %c0_51 = arith.constant 0 : index
      %130 = vector.load %arg9[%129, %c0_50, %c0_51] : memref<8x8x128xf32, #tpu.memory_space<vmem>>, vector<1x8x128xf32>
      %131 = vector.shape_cast %130 : vector<1x8x128xf32> to vector<8x128xf32>
      %132 = vector.shape_cast %128 : vector<8x128xf32> to vector<1x8x128xf32>
      tpu.vector_store %arg9[%129, %c0_50, %c0_51], %132 {strides = array<i32>} : memref<8x8x128xf32, #tpu.memory_space<vmem>>, vector<1x8x128xf32>,
    } else {
    }
    %c7_i32 = arith.constant 7 : i32
    %c8_i32_26 = arith.constant 8 : i32
    %70 = arith.muli %arg1, %c8_i32_26 : i32
    %71 = arith.addi %70, %c7_i32 : i32
    %72 = arith.index_cast %71 : i32 to index
    %73 = memref.load %arg2[%72] : memref<16xi32, #tpu.memory_space<smem>>
    %c8_i32_27 = arith.constant 8 : i32
    %74 = arith.muli %arg0, %c8_i32_27 : i32
    %75 = arith.cmpi sgt, %73, %74 : i32
    %76 = arith.extui %75 : i1 to i32
    %c0_i32_28 = arith.constant 0 : i32
    %77 = arith.cmpi ne, %76, %c0_i32_28 : i32
    scf.if %77 {
      %c0 = arith.constant 0 : index
      %c0_30 = arith.constant 0 : index
      %78 = vector.load %arg13[%c0, %c0_30] : memref<8x128xf32, #tpu.memory_space<vmem>>, vector<8x128xf32>
      %79 = arith.index_cast %c7_i32 : i32 to index
      %c0_31 = arith.constant 0 : index
      %c0_32 = arith.constant 0 : index
      %80 = vector.load %arg4[%79, %c0_31, %c0_32] : memref<8x8x1xf32, #tpu.memory_space<vmem>>, vector<1x8x1xf32>
      %81 = vector.shape_cast %80 : vector<1x8x1xf32> to vector<8x1xf32>
      %c0_33 = arith.constant 0 : index
      %c0_34 = arith.constant 0 : index
      %82 = vector.load %arg6[%c0_33, %c0_34] : memref<128x256xf32, #tpu.memory_space<vmem>>, vector<128x256xf32>
      %cst = arith.constant dense<0.000000e+00> : vector<8x256xf32>
      %83 = tpu.matmul %78, %82, %cst {dimension_numbers = #tpu.dot_dimension_numbers<[1], [0], [0], [1], [0, 0, 1, 1], [], []>} : vector<8x128xf32>, vector<128x256xf32>, vector<8x256xf32> -> vector<8x256xf32>
      %84 = vector.extract_strided_slice %83 {offsets = [0, 0], sizes = [8, 128], strides = [1, 1]} : vector<8x256xf32> to vector<8x128xf32>
      %85 = vector.extract_strided_slice %83 {offsets = [0, 128], sizes = [8, 128], strides = [1, 1]} : vector<8x256xf32> to vector<8x128xf32>
      %86 = arith.index_cast %c7_i32 : i32 to index
      %c0_35 = arith.constant 0 : index
      %c0_36 = arith.constant 0 : index
      %87 = vector.load %arg10[%86, %c0_35, %c0_36] : memref<8x8x128xf32, #tpu.memory_space<vmem>>, vector<1x8x128xf32>
      %88 = vector.shape_cast %87 : vector<1x8x128xf32> to vector<8x128xf32>
      %89 = arith.addf %88, %84 : vector<8x128xf32>
      %90 = arith.negf %89 : vector<8x128xf32>
      %91 = math.exp %90 : vector<8x128xf32>
      %cst_37 = arith.constant 1.000000e+00 : f32
      %92 = vector.broadcast %cst_37 : f32 to vector<8x128xf32>
      %93 = arith.addf %92, %91 : vector<8x128xf32>
      %94 = arith.divf %92, %93 : vector<8x128xf32>
      %95 = arith.index_cast %c7_i32 : i32 to index
      %c0_38 = arith.constant 0 : index
      %c0_39 = arith.constant 0 : index
      %96 = vector.load %arg12[%95, %c0_38, %c0_39] : memref<8x8x128xf32, #tpu.memory_space<vmem>>, vector<1x8x128xf32>
      %97 = vector.shape_cast %96 : vector<1x8x128xf32> to vector<8x128xf32>
      %98 = arith.mulf %94, %78 : vector<8x128xf32>
      %c0_40 = arith.constant 0 : index
      %c0_41 = arith.constant 0 : index
      %99 = vector.load %arg7[%c0_40, %c0_41] : memref<128x128xf32, #tpu.memory_space<vmem>>, vector<128x128xf32>
      %cst_42 = arith.constant dense<0.000000e+00> : vector<8x128xf32>
      %100 = tpu.matmul %98, %99, %cst_42 {dimension_numbers = #tpu.dot_dimension_numbers<[1], [0], [0], [1], [0, 0, 1, 1], [], []>} : vector<8x128xf32>, vector<128x128xf32>, vector<8x128xf32> -> vector<8x128xf32>
      %101 = arith.addf %97, %100 : vector<8x128xf32>
      %102 = math.tanh %101 : vector<8x128xf32>
      %103 = arith.index_cast %c7_i32 : i32 to index
      %c0_43 = arith.constant 0 : index
      %c0_44 = arith.constant 0 : index
      %104 = vector.load %arg11[%103, %c0_43, %c0_44] : memref<8x8x128xf32, #tpu.memory_space<vmem>>, vector<1x8x128xf32>
      %105 = vector.shape_cast %104 : vector<1x8x128xf32> to vector<8x128xf32>
      %106 = arith.addf %105, %85 : vector<8x128xf32>
      %107 = arith.negf %106 : vector<8x128xf32>
      %108 = math.exp %107 : vector<8x128xf32>
      %cst_45 = arith.constant 1.000000e+00 : f32
      %109 = vector.broadcast %cst_45 : f32 to vector<8x128xf32>
      %110 = arith.addf %109, %108 : vector<8x128xf32>
      %111 = arith.divf %109, %110 : vector<8x128xf32>
      %112 = vector.broadcast %81 : vector<8x1xf32> to vector<8x128xf32>
      %113 = arith.mulf %112, %111 : vector<8x128xf32>
      %cst_46 = arith.constant 1.000000e+00 : f32
      %114 = vector.broadcast %cst_46 : f32 to vector<8x128xf32>
      %115 = arith.subf %114, %113 : vector<8x128xf32>
      %116 = arith.mulf %115, %78 : vector<8x128xf32>
      %117 = arith.mulf %113, %102 : vector<8x128xf32>
      %118 = arith.addf %116, %117 : vector<8x128xf32>
      %119 = vector.broadcast %73 : i32 to vector<8x1xi32>
      %120 = arith.cmpi slt, %13, %119 : vector<8x1xi32>
      %121 = vector.shape_cast %120 : vector<8x1xi1> to vector<8x1xi1>
      %122 = vector.broadcast %121 : vector<8x1xi1> to vector<8x128xi1>
      %123 = arith.select %122, %118, %78 : vector<8x128xi1>, vector<8x128xf32>
      %c0_47 = arith.constant 0 : index
      %c0_48 = arith.constant 0 : index
      %124 = vector.load %arg13[%c0_47, %c0_48] : memref<8x128xf32, #tpu.memory_space<vmem>>, vector<8x128xf32>
      tpu.vector_store %arg13[%c0_47, %c0_48], %123 {strides = array<i32>} : memref<8x128xf32, #tpu.memory_space<vmem>>, vector<8x128xf32>,
      %cst_49 = arith.constant 0.000000e+00 : f32
      %125 = vector.shape_cast %120 : vector<8x1xi1> to vector<8x1xi1>
      %126 = vector.broadcast %125 : vector<8x1xi1> to vector<8x128xi1>
      %127 = vector.broadcast %cst_49 : f32 to vector<8x128xf32>
      %128 = arith.select %126, %118, %127 : vector<8x128xi1>, vector<8x128xf32>
      %129 = arith.index_cast %c7_i32 : i32 to index
      %c0_50 = arith.constant 0 : index
      %c0_51 = arith.constant 0 : index
      %130 = vector.load %arg9[%129, %c0_50, %c0_51] : memref<8x8x128xf32, #tpu.memory_space<vmem>>, vector<1x8x128xf32>
      %131 = vector.shape_cast %130 : vector<1x8x128xf32> to vector<8x128xf32>
      %132 = vector.shape_cast %128 : vector<8x128xf32> to vector<1x8x128xf32>
      tpu.vector_store %arg9[%129, %c0_50, %c0_51], %132 {strides = array<i32>} : memref<8x8x128xf32, #tpu.memory_space<vmem>>, vector<1x8x128xf32>,
    } else {
    }
    %c8_i32_29 = arith.constant 8 : i32
    return
  }
  func.func @transform_0(%arg0: i32, %arg1: i32, %arg2: memref<16xi32, #tpu.memory_space<smem>>) -> (i32, i32, i32) {
    %c0_i32 = arith.constant 0 : i32
    %c0_i32_0 = arith.constant 0 : i32
    return %arg1, %arg0, %c0_i32 : i32, i32, i32
  }
  func.func @transform_1(%arg0: i32, %arg1: i32, %arg2: memref<16xi32, #tpu.memory_space<smem>>) -> (i32, i32, i32) {
    %c0_i32 = arith.constant 0 : i32
    %c0_i32_0 = arith.constant 0 : i32
    return %arg1, %arg0, %c0_i32 : i32, i32, i32
  }
  func.func @transform_2(%arg0: i32, %arg1: i32, %arg2: memref<16xi32, #tpu.memory_space<smem>>) -> (i32, i32) {
    %c0_i32 = arith.constant 0 : i32
    %c0_i32_0 = arith.constant 0 : i32
    %c0_i32_1 = arith.constant 0 : i32
    return %c0_i32, %c0_i32_0 : i32, i32
  }
  func.func @transform_3(%arg0: i32, %arg1: i32, %arg2: memref<16xi32, #tpu.memory_space<smem>>) -> (i32, i32) {
    %c0_i32 = arith.constant 0 : i32
    %c0_i32_0 = arith.constant 0 : i32
    %c0_i32_1 = arith.constant 0 : i32
    return %c0_i32, %c0_i32_0 : i32, i32
  }
  func.func @transform_4(%arg0: i32, %arg1: i32, %arg2: memref<16xi32, #tpu.memory_space<smem>>) -> (i32, i32) {
    %c0_i32 = arith.constant 0 : i32
    %c0_i32_0 = arith.constant 0 : i32
    %c0_i32_1 = arith.constant 0 : i32
    return %c0_i32, %c0_i32_0 : i32, i32
  }
  func.func @transform_5(%arg0: i32, %arg1: i32, %arg2: memref<16xi32, #tpu.memory_space<smem>>) -> (i32, i32) {
    %c0_i32 = arith.constant 0 : i32
    %c0_i32_0 = arith.constant 0 : i32
    %c0_i32_1 = arith.constant 0 : i32
    return %c0_i32, %c0_i32_0 : i32, i32
  }
  func.func @transform_6(%arg0: i32, %arg1: i32, %arg2: memref<16xi32, #tpu.memory_space<smem>>) -> (i32, i32, i32) {
    %c0_i32 = arith.constant 0 : i32
    %c0_i32_0 = arith.constant 0 : i32
    return %arg1, %arg0, %c0_i32 : i32, i32, i32
  }
}

</mosaic_0001>

<llo_original>
// kernel: tpu_custom_call.1
$region0: #{tpu_custom_call.1}
  #allocation0 [shape = 'u32[]', space=smem, size = 0x4, offset = 0x4, fixed_abs, tag = 'smem constant byte address 0x4 - core index']
  #allocation1 [shape = 'u32[144,128]{1,0:T(1,128)}', space=vmem, size = 0x12000, scoped, tag = 'internal scratch']
  #allocation2 [shape = 'f32[8,8,128]{2,1,0:T(8,128)}', space=vmem, size = 0x8000, scoped, tag = 'scratch operand']
  #allocation3 [shape = 'f32[8,8,128]{2,1,0:T(8,128)}', space=vmem, size = 0x8000, scoped, tag = 'scratch operand']
  #allocation4 [shape = 'f32[8,8,128]{2,1,0:T(8,128)}', space=vmem, size = 0x8000, scoped, tag = 'scratch operand']
  #allocation5 [shape = 'f32[8,128]{1,0:T(8,128)}', space=vmem, size = 0x1000, scoped, tag = 'scratch operand']
  #allocation6 [shape = 's32[1]{0}', space=sflag, size = 0x4, scoped, tag = 'scoped memory for tpu_custom_call.1']
  #allocation7 [shape = 'u8[512]{0}', space=smem, size = 0x200, scoped, tag = 'prefetched SMEM operand 0']
  %s0 = inlined_call_operand.vmem [shape: s32[16], index: 0, kind: input, shape index: {}]
  %s1 = inlined_call_operand.vmem [shape: f32[16,8,32], index: 1, kind: input, shape index: {}]
  %s2 = inlined_call_operand.vmem [shape: f32[16,8,1], index: 2, kind: input, shape index: {}]
  %s3 = inlined_call_operand.hbm [shape: f32[32,384], index: 3, kind: input, shape index: {}]
  %s4 = inlined_call_operand.hbm [shape: f32[128,256], index: 4, kind: input, shape index: {}]
  %s5 = inlined_call_operand.hbm [shape: f32[128,128], index: 5, kind: input, shape index: {}]
  %s6 = inlined_call_operand.vmem [shape: f32[1,384], index: 6, kind: input, shape index: {}]
  %s7 = inlined_call_operand.hbm [shape: f32[16,8,128], index: 7, kind: output, shape index: {}]
  %s8 = sld [smem:[#allocation0]]
  $region109: #{tpu_custom_call.1} parent=0
    _
  %s10 = ssub.s32 1, %s8
  %s11 = scalar_select 0, %s10, %s8
  %s12 = sshll.u32 %s0, 4
  %s13 = int_to_ptr.vmem [resolvable:$true] %s12
  %15 = dma.vmem_to_smem %s13, 16, [#allocation7], [#allocation6]
  %16 = dma.done [#allocation6], 16
  %17 = sfence
  $region1: #{tpu_custom_call.1} parent=0
    #allocation8 [shape = 'u8[49152]{0}', space=vmem, size = 0xc000, scoped, tag = 'input window, operand 3, single buffered']
    #allocation9 [shape = 's32[2]{0}', space=sflag, size = 0x8, scoped, tag = 'scoped memory for tpu_custom_call.1']
    #allocation10 [shape = 's32[2]{0}', space=sflag, size = 0x8, scoped, tag = 'scoped memory for tpu_custom_call.1']
    #allocation11 [shape = 'u8[131072]{0}', space=vmem, size = 0x20000, scoped, tag = 'input window, operand 4, single buffered']
    #allocation12 [shape = 's32[1]{0}', space=sflag, size = 0x4, scoped, tag = 'scoped memory for tpu_custom_call.1']
    #allocation13 [shape = 'u8[65536]{0}', space=vmem, size = 0x10000, scoped, tag = 'input window, operand 5, single buffered']
    #allocation14 [shape = 'u8[65536]{0}', space=vmem, size = 0x10000, scoped, tag = 'output window, operand 0']
    %18 = vsyncpa [#allocation9], 0
    %19 = vsyncpa [#allocation12], 0
    %20 = vsyncpa [#allocation10], 0
    %s21 = scalar_lea.sflag [#allocation10], 1
    %22 = vsyncpa %s21, 0
    loop: start=0, step=1, limit=4
    $region2: #{tpu_custom_call.1} parent=1 // loop_pre_header
      _
    $region3: #{tpu_custom_call.1} parent=1 // loop_header
      %s24 = sphi 0, %s28
      %p25 = scmp.ge.s32.totalorder %s24, 4
      %s31 = sphi 0, %s43
      %s32 = sphi 0, %s39
      %s33 = sphi 0, %s31
      %s34 = sphi 0, %s32
      %s35 = sphi 0, %s33
      %s36 = sphi 0, %s34
      %s48 = sphi 0, %s50
      %s51 = sphi 0, %s48
      %s52 = sphi 0, %s51
      %s68 = sphi 0, %s52
      %s76 = sphi 0, %s78
      %s79 = sphi 0, %s76
      %s80 = sphi 0, %s79
      %s96 = sphi 0, %s80
      %s100 = sphi 0, %s100
      %s102 = sphi 0, %s100
      %s103 = sphi 0, %s102
      %s117 = sphi 0, %s103
      %s121 = sphi 0, %s121
      %s123 = sphi 0, %s121
      %s124 = sphi 0, %s123
      %s138 = sphi 0, %s124
      %s142 = sphi 0, %s142
      %s144 = sphi 0, %s142
      %s145 = sphi 0, %s144
      %s159 = sphi 0, %s145
      %s163 = sphi 0, %s163
      %s165 = sphi 0, %s163
      %s166 = sphi 0, %s165
      %s180 = sphi 0, %s166
      %s188 = sphi 0, %s190
      %s191 = sphi 0, %s188
      %s192 = sphi 0, %s191
      %s208 = sphi 0, %s192
    $region4: #{tpu_custom_call.1} parent=1 // loop_header_branch
      %27 = sbr.rel (%p25) target = $region8
    $region5: #{tpu_custom_call.1} parent=1 // loop_body
      %s29 = ssub.s32 %s24, 1
      %s30 = ssub.s32 %s24, 2
      %s37 = sadd.s32 1, %s32
      %p38 = scmp.ge.s32.totalorder %s37, 2
      %s39 = scalar_select %p38, 0, %s37
      %s40 = sadd.s32 1, %s31
      %s41 = scalar_select %p38, %s40, %s31
      %p42 = scmp.ge.s32.totalorder %s41, 1
      %s43 = scalar_select %p42, 0, %s41
      %s44 = ssub.s32 %s32, %s39
      %s45 = ssub.s32 %s31, %s43
      %s46 = sor.u32 %s44, %s45
      %p47 = scmp.eq.s32.totalorder %s46, 0
      %s49 = sadd.s32 %s48, 1
      %s50 = scalar_select %p47, %s48, %s49
      %p53 = pneg %p47
      %p54 = scmp.eq.s32.totalorder %s24, 1
      %p55 = por %p53, %p54
      %p56 = scmp.ne.s32.totalorder %s48, %s51
      %p57 = scmp.eq.s32.totalorder %s24, 0
      %p58 = por %p56, %p57
      %p59 = scmp.ne.s32.totalorder %s48, %s51
      %p60 = scmp.eq.s32.totalorder %s29, 1
      %p61 = por %p59, %p60
      %p62 = scmp.ne.s32.totalorder %s51, %s52
      %p63 = scmp.eq.s32.totalorder %s29, 0
      %p64 = por %p62, %p63
      %p65 = scmp.ne.s32.totalorder %s51, %s52
      %p66 = scmp.eq.s32.totalorder %s30, 1
      %p67 = por %p65, %p66
      %p69 = scmp.ne.s32.totalorder %s52, %s68
      %p70 = scmp.eq.s32.totalorder %s30, 0
      %p71 = por %p69, %p70
      %s72 = ssub.s32 %s32, %s39
      %s73 = ssub.s32 %s31, %s43
      %s74 = sor.u32 %s72, %s73
      %p75 = scmp.eq.s32.totalorder %s74, 0
      %s77 = sadd.s32 %s76, 1
      %s78 = scalar_select %p75, %s76, %s77
      %p81 = pneg %p75
      %p82 = scmp.eq.s32.totalorder %s24, 1
      %p83 = por %p81, %p82
      %p84 = scmp.ne.s32.totalorder %s76, %s79
      %p85 = scmp.eq.s32.totalorder %s24, 0
      %p86 = por %p84, %p85
      %p87 = scmp.ne.s32.totalorder %s76, %s79
      %p88 = scmp.eq.s32.totalorder %s29, 1
      %p89 = por %p87, %p88
      %p90 = scmp.ne.s32.totalorder %s79, %s80
      %p91 = scmp.eq.s32.totalorder %s29, 0
      %p92 = por %p90, %p91
      %p93 = scmp.ne.s32.totalorder %s79, %s80
      %p94 = scmp.eq.s32.totalorder %s30, 1
      %p95 = por %p93, %p94
      %p97 = scmp.ne.s32.totalorder %s80, %s96
      %p98 = scmp.eq.s32.totalorder %s30, 0
      %p99 = por %p97, %p98
      %s101 = sadd.s32 %s100, 1
      %p104 = scmp.eq.s32.totalorder %s24, 1
      %p105 = scmp.ne.s32.totalorder %s100, %s102
      %p106 = scmp.eq.s32.totalorder %s24, 0
      %p107 = por %p105, %p106
      %p108 = scmp.ne.s32.totalorder %s100, %s102
      %p109 = scmp.eq.s32.totalorder %s29, 1
      %p110 = por %p108, %p109
      %p111 = scmp.ne.s32.totalorder %s102, %s103
      %p112 = scmp.eq.s32.totalorder %s29, 0
      %p113 = por %p111, %p112
      %p114 = scmp.ne.s32.totalorder %s102, %s103
      %p115 = scmp.eq.s32.totalorder %s30, 1
      %p116 = por %p114, %p115
      %p118 = scmp.ne.s32.totalorder %s103, %s117
      %p119 = scmp.eq.s32.totalorder %s30, 0
      %p120 = por %p118, %p119
      %s122 = sadd.s32 %s121, 1
      %p125 = scmp.eq.s32.totalorder %s24, 1
      %p126 = scmp.ne.s32.totalorder %s121, %s123
      %p127 = scmp.eq.s32.totalorder %s24, 0
      %p128 = por %p126, %p127
      %p129 = scmp.ne.s32.totalorder %s121, %s123
      %p130 = scmp.eq.s32.totalorder %s29, 1
      %p131 = por %p129, %p130
      %p132 = scmp.ne.s32.totalorder %s123, %s124
      %p133 = scmp.eq.s32.totalorder %s29, 0
      %p134 = por %p132, %p133
      %p135 = scmp.ne.s32.totalorder %s123, %s124
      %p136 = scmp.eq.s32.totalorder %s30, 1
      %p137 = por %p135, %p136
      %p139 = scmp.ne.s32.totalorder %s124, %s138
      %p140 = scmp.eq.s32.totalorder %s30, 0
      %p141 = por %p139, %p140
      %s143 = sadd.s32 %s142, 1
      %p146 = scmp.eq.s32.totalorder %s24, 1
      %p147 = scmp.ne.s32.totalorder %s142, %s144
      %p148 = scmp.eq.s32.totalorder %s24, 0
      %p149 = por %p147, %p148
      %p150 = scmp.ne.s32.totalorder %s142, %s144
      %p151 = scmp.eq.s32.totalorder %s29, 1
      %p152 = por %p150, %p151
      %p153 = scmp.ne.s32.totalorder %s144, %s145
      %p154 = scmp.eq.s32.totalorder %s29, 0
      %p155 = por %p153, %p154
      %p156 = scmp.ne.s32.totalorder %s144, %s145
      %p157 = scmp.eq.s32.totalorder %s30, 1
      %p158 = por %p156, %p157
      %p160 = scmp.ne.s32.totalorder %s145, %s159
      %p161 = scmp.eq.s32.totalorder %s30, 0
      %p162 = por %p160, %p161
      %s164 = sadd.s32 %s163, 1
      %p167 = scmp.eq.s32.totalorder %s24, 1
      %p168 = scmp.ne.s32.totalorder %s163, %s165
      %p169 = scmp.eq.s32.totalorder %s24, 0
      %p170 = por %p168, %p169
      %p171 = scmp.ne.s32.totalorder %s163, %s165
      %p172 = scmp.eq.s32.totalorder %s29, 1
      %p173 = por %p171, %p172
      %p174 = scmp.ne.s32.totalorder %s165, %s166
      %p175 = scmp.eq.s32.totalorder %s29, 0
      %p176 = por %p174, %p175
      %p177 = scmp.ne.s32.totalorder %s165, %s166
      %p178 = scmp.eq.s32.totalorder %s30, 1
      %p179 = por %p177, %p178
      %p181 = scmp.ne.s32.totalorder %s166, %s180
      %p182 = scmp.eq.s32.totalorder %s30, 0
      %p183 = por %p181, %p182
      %s184 = ssub.s32 %s32, %s39
      %s185 = ssub.s32 %s31, %s43
      %s186 = sor.u32 %s184, %s185
      %p187 = scmp.eq.s32.totalorder %s186, 0
      %s189 = sadd.s32 %s188, 1
      %s190 = scalar_select %p187, %s188, %s189
      %p193 = pneg %p187
      %p194 = scmp.eq.s32.totalorder %s24, 1
      %p195 = por %p193, %p194
      %p196 = scmp.ne.s32.totalorder %s188, %s191
      %p197 = scmp.eq.s32.totalorder %s24, 0
      %p198 = por %p196, %p197
      %p199 = scmp.ne.s32.totalorder %s188, %s191
      %p200 = scmp.eq.s32.totalorder %s29, 1
      %p201 = por %p199, %p200
      %p202 = scmp.ne.s32.totalorder %s191, %s192
      %p203 = scmp.eq.s32.totalorder %s29, 0
      %p204 = por %p202, %p203
      %p205 = scmp.ne.s32.totalorder %s191, %s192
      %p206 = scmp.eq.s32.totalorder %s30, 1
      %p207 = por %p205, %p206
      %p209 = scmp.ne.s32.totalorder %s192, %s208
      %p210 = scmp.eq.s32.totalorder %s30, 0
      %p211 = por %p209, %p210
      %p212 = scmp.le.s32.totalorder 1, %s24
      %p213 = scmp.lt.s32.totalorder %s24, 3
      %p214 = pnand %p212, %p213
      %p215 = pneg %p214
      // Predicated region
      $region9: #{tpu_custom_call.1} parent=5 // pred_check
        _
      $region10: #{tpu_custom_call.1} parent=5 // pred_check_branch
        %217 = sbr.rel (%p214) target = $region12
      $region11: #{tpu_custom_call.1} parent=5 // pred_region
        %s218 = ssub.s32 %s24, 1
        // Predicated region
        $region13: #{tpu_custom_call.1} parent=11 // pred_check
          %p219 = pneg %p113
        $region14: #{tpu_custom_call.1} parent=11 // pred_check_branch
          %221 = sbr.rel (%p219) target = $region16
        $region15: #{tpu_custom_call.1} parent=11 // pred_region
          %s223 = ssub.s32 1536, 1536
          %224 = vsyncadd [#allocation9], %s223
          %s225 = sshll.u32 [#allocation8], 4
          %s226 = int_to_ptr.vmem [resolvable:$true] %s225
          %231 = dma.hbm_to_vmem [thread:$0]  %s3, 1536, %s226, [#allocation9], 384, 384, 24
        $region16: #{tpu_custom_call.1} parent=11 // pred_fallthru
          _
        // Predicated region
        $region17: #{tpu_custom_call.1} parent=11 // pred_check
          %p232 = pneg %p134
        $region18: #{tpu_custom_call.1} parent=11 // pred_check_branch
          %234 = sbr.rel (%p232) target = $region20
        $region19: #{tpu_custom_call.1} parent=11 // pred_region
          %s236 = ssub.s32 4096, 4096
          %237 = vsyncadd [#allocation12], %s236
          %s238 = sshll.u32 [#allocation11], 4
          %s239 = int_to_ptr.vmem [resolvable:$true] %s238
          %244 = dma.hbm_to_vmem [thread:$0]  %s4, 4096, %s239, [#allocation12], 256, 256, 16
        $region20: #{tpu_custom_call.1} parent=11 // pred_fallthru
          _
        // Predicated region
        $region21: #{tpu_custom_call.1} parent=11 // pred_check
          %p245 = pneg %p155
        $region22: #{tpu_custom_call.1} parent=11 // pred_check_branch
          %247 = sbr.rel (%p245) target = $region24
        $region23: #{tpu_custom_call.1} parent=11 // pred_region
          %s249 = ssub.s32 2048, 2048
          %250 = vsyncadd [#allocation12], %s249
          %s251 = sshll.u32 [#allocation13], 4
          %s252 = int_to_ptr.vmem [resolvable:$true] %s251
          %257 = dma.hbm_to_vmem [thread:$0]  %s5, 2048, %s252, [#allocation12], 128, 128, 8
        $region24: #{tpu_custom_call.1} parent=11 // pred_fallthru
          _
        // Predicated region
        $region25: #{tpu_custom_call.1} parent=11 // pred_check
          %p258 = pneg %p176
        $region26: #{tpu_custom_call.1} parent=11 // pred_check_branch
          %260 = sbr.rel (%p258) target = $region28
        $region27: #{tpu_custom_call.1} parent=11 // pred_region
          _
        $region28: #{tpu_custom_call.1} parent=11 // pred_fallthru
          _
      $region12: #{tpu_custom_call.1} parent=5 // pred_fallthru
        _
      %p261 = scmp.lt.s32.totalorder %s24, 2
      // Predicated region
      $region29: #{tpu_custom_call.1} parent=5 // pred_check
        %p262 = pneg %p261
      $region30: #{tpu_custom_call.1} parent=5 // pred_check_branch
        %264 = sbr.rel (%p262) target = $region32
      $region31: #{tpu_custom_call.1} parent=5 // pred_region
        // Predicated region
        $region33: #{tpu_custom_call.1} parent=31 // pred_check
          %p265 = pneg %p58
        $region34: #{tpu_custom_call.1} parent=31 // pred_check_branch
          %267 = sbr.rel (%p265) target = $region36
        $region35: #{tpu_custom_call.1} parent=31 // pred_region
          %s268 = smul.u32 8, %s32
          %p269 = scmp.lt.s32.totalorder %s268, 15
          %s270 = scalar_select %p269, %s268, 15
          %p271 = scmp.lt.s32.totalorder %s31, 0
          %s272 = scalar_select %p271, %s31, 0
          %s273 = sadd.s32 %s272, %s270
          %s274 = smul.addr %s273, 8
          %s275 = scalar_lea.vmem %s1, %s274
          %s276 = smul.u32 8, %s32
        $region36: #{tpu_custom_call.1} parent=31 // pred_fallthru
          _
        // Predicated region
        $region37: #{tpu_custom_call.1} parent=31 // pred_check
          %p277 = pneg %p86
        $region38: #{tpu_custom_call.1} parent=31 // pred_check_branch
          %279 = sbr.rel (%p277) target = $region40
        $region39: #{tpu_custom_call.1} parent=31 // pred_region
          %s280 = smul.u32 8, %s32
          %p281 = scmp.lt.s32.totalorder %s280, 15
          %s282 = scalar_select %p281, %s280, 15
          %p283 = scmp.lt.s32.totalorder %s31, 0
          %s284 = scalar_select %p283, %s31, 0
          %s285 = sadd.s32 %s284, %s282
          %s286 = smul.addr %s285, 8
          %s287 = scalar_lea.vmem %s2, %s286
          %s288 = smul.u32 8, %s32
        $region40: #{tpu_custom_call.1} parent=31 // pred_fallthru
          _
      $region32: #{tpu_custom_call.1} parent=5 // pred_fallthru
        _
      %p289 = scmp.le.s32.totalorder 1, %s24
      %p290 = scmp.lt.s32.totalorder %s24, 3
      %p291 = pnand %p289, %p290
      %p292 = pneg %p291
      // Predicated region
      $region41: #{tpu_custom_call.1} parent=5 // pred_check
        _
      $region42: #{tpu_custom_call.1} parent=5 // pred_check_branch
        %294 = sbr.rel (%p291) target = $region44
      $region43: #{tpu_custom_call.1} parent=5 // pred_region
        %s295 = ssub.s32 %s24, 1
        // Predicated region
        $region45: #{tpu_custom_call.1} parent=43 // pred_check
          %p296 = pneg %p113
        $region46: #{tpu_custom_call.1} parent=43 // pred_check_branch
          %298 = sbr.rel (%p296) target = $region48
        $region47: #{tpu_custom_call.1} parent=43 // pred_region
          %299 = dma.done [#allocation9], 1536
        $region48: #{tpu_custom_call.1} parent=43 // pred_fallthru
          _
        // Predicated region
        $region49: #{tpu_custom_call.1} parent=43 // pred_check
          %p300 = pneg %p134
        $region50: #{tpu_custom_call.1} parent=43 // pred_check_branch
          %302 = sbr.rel (%p300) target = $region52
        $region51: #{tpu_custom_call.1} parent=43 // pred_region
          %303 = dma.done [#allocation12], 4096
        $region52: #{tpu_custom_call.1} parent=43 // pred_fallthru
          _
        // Predicated region
        $region53: #{tpu_custom_call.1} parent=43 // pred_check
          %p304 = pneg %p155
        $region54: #{tpu_custom_call.1} parent=43 // pred_check_branch
          %306 = sbr.rel (%p304) target = $region56
        $region55: #{tpu_custom_call.1} parent=43 // pred_region
          %307 = dma.done [#allocation12], 2048
        $region56: #{tpu_custom_call.1} parent=43 // pred_fallthru
          _
        %s308 = smul.u32 8, %s34
        %p309 = scmp.lt.s32.totalorder %s308, 15
        %s310 = scalar_select %p309, %s308, 15
        %p311 = scmp.lt.s32.totalorder %s33, 0
        %s312 = scalar_select %p311, %s33, 0
        %s313 = sadd.s32 %s312, %s310
        %s314 = smul.addr %s313, 8
        %s315 = scalar_lea.vmem %s1, %s314
        %p316 = pneg %p64
        %p317 = pneg %p61
        %s318 = smul.u32 8, %s34
        %p319 = scmp.lt.s32.totalorder %s318, 15
        %s320 = scalar_select %p319, %s318, 15
        %p321 = scmp.lt.s32.totalorder %s33, 0
        %s322 = scalar_select %p321, %s33, 0
        %s323 = sadd.s32 %s322, %s320
        %s324 = smul.addr %s323, 8
        %s325 = scalar_lea.vmem %s2, %s324
        %p326 = pneg %p92
        %p327 = pneg %p89
        %p328 = pneg %p113
        %p329 = pneg %p110
        %p330 = pneg %p134
        %p331 = pneg %p131
        %p332 = pneg %p155
        %p333 = pneg %p152
        %p334 = pneg %p176
        %p335 = pneg %p173
        %p336 = pneg %p204
        %p337 = pneg %p201
        %s338 = sand.u32 %s191, 1
        %s339 = scalar_lea.sflag [#allocation10], %s338
        %s340 = sand.u32 %s191, 1
        %s341 = smul.addr %s340, 64
        %s342 = scalar_lea.vmem [#allocation14], %s341
        %s343 = smul.u32 8, %s34
        %p344 = scmp.lt.s32.totalorder %s343, 15
        %s345 = scalar_select %p344, %s343, 15
        %p346 = scmp.lt.s32.totalorder %s33, 0
        %s347 = scalar_select %p346, %s33, 0
        %s348 = sadd.s32 %s347, %s345
        %s349 = smul.addr %s348, 8
        %s350 = scalar_lea.vmem %s1, %s349
        %s351 = smul.u32 8, %s34
        %s352 = smul.u32 8, %s34
        %p353 = scmp.lt.s32.totalorder %s352, 15
        %s354 = scalar_select %p353, %s352, 15
        %p355 = scmp.lt.s32.totalorder %s33, 0
        %s356 = scalar_select %p355, %s33, 0
        %s357 = sadd.s32 %s356, %s354
        %s358 = smul.addr %s357, 8
        %s359 = scalar_lea.vmem %s2, %s358
        %s360 = smul.u32 8, %s34
        %s361 = smul.u32 8, %s34
        %p362 = scmp.eq.s32.totalorder %s34, 0
        // Predicated region
        $region57: #{tpu_custom_call.1} parent=43 // pred_check
          %p363 = pneg %p362
        $region58: #{tpu_custom_call.1} parent=43 // pred_check_branch
          %365 = sbr.rel (%p363) target = $region60
        $region59: #{tpu_custom_call.1} parent=43 // pred_region
          %366 = vst [vmem:[#allocation5] sm:$0xff] 0.0
        $region60: #{tpu_custom_call.1} parent=43 // pred_fallthru
          _
        %s367 = smul.u32 %s34, 8
        %s368 = sld [smem:[#allocation7 + %s367]]
        %s369 = smul.u32 %s33, 8
        %p370 = scmp.gt.s32.totalorder %s368, %s369
        // Predicated region
        $region61: #{tpu_custom_call.1} parent=43 // pred_check
          %p371 = pneg %p370
        $region62: #{tpu_custom_call.1} parent=43 // pred_check_branch
          %373 = sbr.rel (%p371) target = $region64
        $region63: #{tpu_custom_call.1} parent=43 // pred_region
          %v374 = vld [vmem:[%s350] sm:$0xff]
          %v375 = vld [vmem:[%s350 + $0x8] sm:$0xff]
          %v376 = vld [vmem:[%s350 + $0x10] sm:$0xff]
          %v377 = vld [vmem:[%s350 + $0x18] sm:$0xff]
          %v378 = vld [vmem:[%s350 + $0x20] sm:$0xff]
          %v379 = vld [vmem:[%s350 + $0x28] sm:$0xff]
          %v380 = vld [vmem:[%s350 + $0x30] sm:$0xff]
          %v381 = vld [vmem:[%s350 + $0x38] sm:$0xff]
          %v382 = vld [vmem:[#allocation8] sm:$0xff]
          %v383 = vld [vmem:[#allocation8 + $0x8] sm:$0xff]
          %v384 = vld [vmem:[#allocation8 + $0x10] sm:$0xff]
          %v385 = vld [vmem:[#allocation8 + $0x18] sm:$0xff]
          %v386 = vld [vmem:[#allocation8 + $0x20] sm:$0xff]
          %v387 = vld [vmem:[#allocation8 + $0x28] sm:$0xff]
          %v388 = vld [vmem:[#allocation8 + $0x30] sm:$0xff]
          %v389 = vld [vmem:[#allocation8 + $0x38] sm:$0xff]
          %v390 = vld [vmem:[#allocation8 + $0x40] sm:$0xff]
          %v391 = vld [vmem:[#allocation8 + $0x48] sm:$0xff]
          %v392 = vld [vmem:[#allocation8 + $0x50] sm:$0xff]
          %v393 = vld [vmem:[#allocation8 + $0x58] sm:$0xff]
          %v394 = vld [vmem:[%s6] sm:$0x7]
          %v396 = vlaneseq
          %v397 = vshrl.u32 %v396, 7
          %v398 = vsub.s32 0, %v397
          %v399 = vrot.slane %v394, %v398
          %v400 = vlaneseq
          %v401 = vshrl.u32 %v400, 7
          %v402 = vsub.s32 1, %v401
          %v403 = vrot.slane %v394, %v402
          %v404 = vlaneseq
          %v405 = vshrl.u32 %v404, 7
          %v406 = vsub.s32 2, %v405
          %v407 = vrot.slane %v394, %v406
          %vm411 = vcmask 261120
          %v413 = vsel %vm411, %v374, 0
          %v416 = vsel %vm411, %v375, 0
          %v419 = vsel %vm411, %v376, 0
          %v422 = vsel %vm411, %v377, 0
          %v425 = vsel %vm411, %v378, 0
          %v428 = vsel %vm411, %v379, 0
          %v431 = vsel %vm411, %v380, 0
          %v434 = vsel %vm411, %v381, 0
          %436 = vmatprep.subr.mxu0 %v383
          %437 = vmatpush1.msra.mxu0 %v382
          %438 = vmatprep.subr.mxu0 %v386
          %439 = vmatpush1.msra.mxu0 %v385
          %440 = vmatprep.subr.mxu0 %v389
          %441 = vmatpush1.msra.mxu0 %v388
          %442 = vmatprep.subr.mxu0 %v392
          %443 = vmatpush1.msra.mxu0 %v391
          %444 = vmatprep.subr.mxu0 0.0
          %445 = vmatpush1.msra.mxu0 0.0
          %446 = vmatprep.subr.mxu0 0.0
          %447 = vmatpush1.msra.mxu0 0.0
          %448 = vmatprep.subr.mxu0 0.0
          %449 = vmatpush1.msra.mxu0 0.0
          %450 = vmatprep.subr.mxu0 0.0
          %451 = vmatpush1.msra.mxu0 0.0
          %452 = vmatprep.subr.mxu0 0.0
          %453 = vmatpush1.msra.mxu0 0.0
          %454 = vmatprep.subr.mxu0 0.0
          %455 = vmatpush1.msra.mxu0 0.0
          %456 = vmatprep.subr.mxu0 0.0
          %457 = vmatpush1.msra.mxu0 0.0
          %458 = vmatprep.subr.mxu0 0.0
          %459 = vmatpush1.msra.mxu0 0.0
          %460 = vmatprep.subr.mxu0 0.0
          %461 = vmatpush1.msra.mxu0 0.0
          %462 = vmatprep.subr.mxu0 0.0
          %463 = vmatpush1.msra.mxu0 0.0
          %464 = vmatprep.subr.mxu0 0.0
          %465 = vmatpush1.msra.mxu0 0.0
          %466 = vmatprep.subr.mxu0 0.0
          %467 = vmatpush1.msra.mxu0 0.0
          %468 = vmatprep.subr.mxu0 0.0
          %469 = vmatpush1.msra.mxu0 0.0
          %470 = vmatprep.subr.mxu0 0.0
          %471 = vmatpush1.msra.mxu0 0.0
          %472 = vmatprep.subr.mxu0 0.0
          %473 = vmatpush1.msra.mxu0 0.0
          %474 = vmatprep.subr.mxu0 0.0
          %475 = vmatpush1.msra.mxu0 0.0
          %476 = vmatprep.subr.mxu0 0.0
          %477 = vmatpush1.msra.mxu0 0.0
          %478 = vmatprep.subr.mxu0 0.0
          %479 = vmatpush1.msra.mxu0 0.0
          %480 = vmatprep.subr.mxu0 0.0
          %481 = vmatpush1.msra.mxu0 0.0
          %482 = vmatprep.subr.mxu0 0.0
          %483 = vmatpush1.msra.mxu0 0.0
          %484 = vmatprep.subr.mxu0 0.0
          %485 = vmatpush1.msra.mxu0 0.0
          %486 = vmatprep.subr.mxu0 0.0
          %487 = vmatpush1.msra.mxu0 0.0
          %488 = vmatprep.subr.mxu0 0.0
          %489 = vmatpush1.msra.mxu0 0.0
          %490 = vmatprep.subr.mxu0 0.0
          %491 = vmatpush1.msra.mxu0 0.0
          %492 = vmatprep.subr.mxu0 0.0
          %493 = vmatpush1.msra.mxu0 0.0
          %494 = vmatprep.subr.mxu0 0.0
          %495 = vmatpush1.msra.mxu0 0.0
          %496 = vmatprep.subr.mxu0 0.0
          %497 = vmatpush1.msra.mxu0 0.0
          %498 = vmatprep.subr.mxu0 0.0
          %499 = vmatpush1.msra.mxu0 0.0
          %500 = vmatprep.mubr.f32.mxu0 0.0
          %501 = vmatmul.mubr.f32.gmra.mrb[0].mxu0 %v413
          %v502 = vpop.f32.mrb[0].mxu0
          %v503 = vadd.f32 %v399, %v502
          %v504 = vpop.f32.mrb[0].mxu0
          %v505 = vadd.f32 %v403, %v504
          %506 = vmatprep.mubr.f32.mxu0 0.0
          %507 = vmatmul.mubr.f32.gmra.mrb[0].mxu0 %v416
          %v508 = vpop.f32.mrb[0].mxu0
          %v509 = vadd.f32 %v399, %v508
          %v510 = vpop.f32.mrb[0].mxu0
          %v511 = vadd.f32 %v403, %v510
          %512 = vmatprep.mubr.f32.mxu0 0.0
          %513 = vmatmul.mubr.f32.gmra.mrb[0].mxu0 %v419
          %v514 = vpop.f32.mrb[0].mxu0
          %v515 = vadd.f32 %v399, %v514
          %v516 = vpop.f32.mrb[0].mxu0
          %v517 = vadd.f32 %v403, %v516
          %518 = vmatprep.mubr.f32.mxu0 0.0
          %519 = vmatmul.mubr.f32.gmra.mrb[0].mxu0 %v422
          %v520 = vpop.f32.mrb[0].mxu0
          %v521 = vadd.f32 %v399, %v520
          %v522 = vpop.f32.mrb[0].mxu0
          %v523 = vadd.f32 %v403, %v522
          %524 = vmatprep.mubr.f32.mxu0 0.0
          %525 = vmatmul.mubr.f32.gmra.mrb[0].mxu0 %v425
          %v526 = vpop.f32.mrb[0].mxu0
          %v527 = vadd.f32 %v399, %v526
          %v528 = vpop.f32.mrb[0].mxu0
          %v529 = vadd.f32 %v403, %v528
          %530 = vmatprep.mubr.f32.mxu0 0.0
          %531 = vmatmul.mubr.f32.gmra.mrb[0].mxu0 %v428
          %v532 = vpop.f32.mrb[0].mxu0
          %v533 = vadd.f32 %v399, %v532
          %v534 = vpop.f32.mrb[0].mxu0
          %v535 = vadd.f32 %v403, %v534
          %536 = vmatprep.mubr.f32.mxu0 0.0
          %537 = vmatmul.mubr.f32.gmra.mrb[0].mxu0 %v431
          %v538 = vpop.f32.mrb[0].mxu0
          %v539 = vadd.f32 %v399, %v538
          %v540 = vpop.f32.mrb[0].mxu0
          %v541 = vadd.f32 %v403, %v540
          %542 = vmatprep.mubr.f32.mxu0 0.0
          %543 = vmatmul.mubr.f32.gmra.mrb[0].mxu0 %v434
          %v544 = vpop.f32.mrb[0].mxu0
          %v545 = vadd.f32 %v399, %v544
          %v546 = vpop.f32.mrb[0].mxu0
          %v547 = vadd.f32 %v403, %v546
          %548 = vdwg.mxu0
          %549 = vmatprep.subr.mxu0 0.0
          %550 = vmatpush1.msra.mxu0 %v384
          %551 = vmatprep.subr.mxu0 0.0
          %552 = vmatpush1.msra.mxu0 %v387
          %553 = vmatprep.subr.mxu0 0.0
          %554 = vmatpush1.msra.mxu0 %v390
          %555 = vmatprep.subr.mxu0 0.0
          %556 = vmatpush1.msra.mxu0 %v393
          %557 = vmatprep.subr.mxu0 0.0
          %558 = vmatpush1.msra.mxu0 0.0
          %559 = vmatprep.subr.mxu0 0.0
          %560 = vmatpush1.msra.mxu0 0.0
          %561 = vmatprep.subr.mxu0 0.0
          %562 = vmatpush1.msra.mxu0 0.0
          %563 = vmatprep.subr.mxu0 0.0
          %564 = vmatpush1.msra.mxu0 0.0
          %565 = vmatprep.subr.mxu0 0.0
          %566 = vmatpush1.msra.mxu0 0.0
          %567 = vmatprep.subr.mxu0 0.0
          %568 = vmatpush1.msra.mxu0 0.0
          %569 = vmatprep.subr.mxu0 0.0
          %570 = vmatpush1.msra.mxu0 0.0
          %571 = vmatprep.subr.mxu0 0.0
          %572 = vmatpush1.msra.mxu0 0.0
          %573 = vmatprep.subr.mxu0 0.0
          %574 = vmatpush1.msra.mxu0 0.0
          %575 = vmatprep.subr.mxu0 0.0
          %576 = vmatpush1.msra.mxu0 0.0
          %577 = vmatprep.subr.mxu0 0.0
          %578 = vmatpush1.msra.mxu0 0.0
          %579 = vmatprep.subr.mxu0 0.0
          %580 = vmatpush1.msra.mxu0 0.0
          %581 = vmatprep.subr.mxu0 0.0
          %582 = vmatpush1.msra.mxu0 0.0
          %583 = vmatprep.subr.mxu0 0.0
          %584 = vmatpush1.msra.mxu0 0.0
          %585 = vmatprep.subr.mxu0 0.0
          %586 = vmatpush1.msra.mxu0 0.0
          %587 = vmatprep.subr.mxu0 0.0
          %588 = vmatpush1.msra.mxu0 0.0
          %589 = vmatprep.subr.mxu0 0.0
          %590 = vmatpush1.msra.mxu0 0.0
          %591 = vmatprep.subr.mxu0 0.0
          %592 = vmatpush1.msra.mxu0 0.0
          %593 = vmatprep.subr.mxu0 0.0
          %594 = vmatpush1.msra.mxu0 0.0
          %595 = vmatprep.subr.mxu0 0.0
          %596 = vmatpush1.msra.mxu0 0.0
          %597 = vmatprep.subr.mxu0 0.0
          %598 = vmatpush1.msra.mxu0 0.0
          %599 = vmatprep.subr.mxu0 0.0
          %600 = vmatpush1.msra.mxu0 0.0
          %601 = vmatprep.subr.mxu0 0.0
          %602 = vmatpush1.msra.mxu0 0.0
          %603 = vmatprep.subr.mxu0 0.0
          %604 = vmatpush1.msra.mxu0 0.0
          %605 = vmatprep.subr.mxu0 0.0
          %606 = vmatpush1.msra.mxu0 0.0
          %607 = vmatprep.subr.mxu0 0.0
          %608 = vmatpush1.msra.mxu0 0.0
          %609 = vmatprep.subr.mxu0 0.0
          %610 = vmatpush1.msra.mxu0 0.0
          %611 = vmatprep.subr.mxu0 0.0
          %612 = vmatpush1.msra.mxu0 0.0
          %613 = vmatprep.mubr.f32.mxu0 0.0
          %614 = vmatmul.mubr.f32.gmra.mrb[0].mxu0 %v413
          %v615 = vpop.f32.mrb[0].mxu0
          %v616 = vadd.f32 %v407, %v615
          %v617 = vpop.f32.mrb[0].mxu0
          %618 = vmatprep.mubr.f32.mxu0 0.0
          %619 = vmatmul.mubr.f32.gmra.mrb[0].mxu0 %v416
          %v620 = vpop.f32.mrb[0].mxu0
          %v621 = vadd.f32 %v407, %v620
          %v622 = vpop.f32.mrb[0].mxu0
          %623 = vmatprep.mubr.f32.mxu0 0.0
          %624 = vmatmul.mubr.f32.gmra.mrb[0].mxu0 %v419
          %v625 = vpop.f32.mrb[0].mxu0
          %v626 = vadd.f32 %v407, %v625
          %v627 = vpop.f32.mrb[0].mxu0
          %628 = vmatprep.mubr.f32.mxu0 0.0
          %629 = vmatmul.mubr.f32.gmra.mrb[0].mxu0 %v422
          %v630 = vpop.f32.mrb[0].mxu0
          %v631 = vadd.f32 %v407, %v630
          %v632 = vpop.f32.mrb[0].mxu0
          %633 = vmatprep.mubr.f32.mxu0 0.0
          %634 = vmatmul.mubr.f32.gmra.mrb[0].mxu0 %v425
          %v635 = vpop.f32.mrb[0].mxu0
          %v636 = vadd.f32 %v407, %v635
          %v637 = vpop.f32.mrb[0].mxu0
          %638 = vmatprep.mubr.f32.mxu0 0.0
          %639 = vmatmul.mubr.f32.gmra.mrb[0].mxu0 %v428
          %v640 = vpop.f32.mrb[0].mxu0
          %v641 = vadd.f32 %v407, %v640
          %v642 = vpop.f32.mrb[0].mxu0
          %643 = vmatprep.mubr.f32.mxu0 0.0
          %644 = vmatmul.mubr.f32.gmra.mrb[0].mxu0 %v431
          %v645 = vpop.f32.mrb[0].mxu0
          %v646 = vadd.f32 %v407, %v645
          %v647 = vpop.f32.mrb[0].mxu0
          %648 = vmatprep.mubr.f32.mxu0 0.0
          %649 = vmatmul.mubr.f32.gmra.mrb[0].mxu0 %v434
          %v650 = vpop.f32.mrb[0].mxu0
          %v651 = vadd.f32 %v407, %v650
          %v652 = vpop.f32.mrb[0].mxu0
          %653 = vdwg.mxu0
          %654 = vst [vmem:[#allocation2] sm:$0xff] %v503
          %655 = vst [vmem:[#allocation2 + $0x8] sm:$0xff] %v509
          %656 = vst [vmem:[#allocation2 + $0x10] sm:$0xff] %v515
          %657 = vst [vmem:[#allocation2 + $0x18] sm:$0xff] %v521
          %658 = vst [vmem:[#allocation2 + $0x20] sm:$0xff] %v527
          %659 = vst [vmem:[#allocation2 + $0x28] sm:$0xff] %v533
          %660 = vst [vmem:[#allocation2 + $0x30] sm:$0xff] %v539
          %661 = vst [vmem:[#allocation2 + $0x38] sm:$0xff] %v545
          %662 = vst [vmem:[#allocation3] sm:$0xff] %v505
          %663 = vst [vmem:[#allocation3 + $0x8] sm:$0xff] %v511
          %664 = vst [vmem:[#allocation3 + $0x10] sm:$0xff] %v517
          %665 = vst [vmem:[#allocation3 + $0x18] sm:$0xff] %v523
          %666 = vst [vmem:[#allocation3 + $0x20] sm:$0xff] %v529
          %667 = vst [vmem:[#allocation3 + $0x28] sm:$0xff] %v535
          %668 = vst [vmem:[#allocation3 + $0x30] sm:$0xff] %v541
          %669 = vst [vmem:[#allocation3 + $0x38] sm:$0xff] %v547
          %670 = vst [vmem:[#allocation4] sm:$0xff] %v616
          %671 = vst [vmem:[#allocation4 + $0x8] sm:$0xff] %v621
          %672 = vst [vmem:[#allocation4 + $0x10] sm:$0xff] %v626
          %673 = vst [vmem:[#allocation4 + $0x18] sm:$0xff] %v631
          %674 = vst [vmem:[#allocation4 + $0x20] sm:$0xff] %v636
          %675 = vst [vmem:[#allocation4 + $0x28] sm:$0xff] %v641
          %676 = vst [vmem:[#allocation4 + $0x30] sm:$0xff] %v646
          %677 = vst [vmem:[#allocation4 + $0x38] sm:$0xff] %v651
        $region64: #{tpu_custom_call.1} parent=43 // pred_fallthru
          _
        %v678 = vlaneseq
        %v679 = vshrl.u32 %v678, 7
        %v680 = vstv %s369
        %v681 = vadd.s32 %v679, %v680
        %s682 = sld [smem:[#allocation7 + %s367]]
        %p683 = scmp.gt.s32.totalorder %s682, %s369
        // Predicated region
        $region65: #{tpu_custom_call.1} parent=43 // pred_check
          %p684 = pneg %p683
        $region66: #{tpu_custom_call.1} parent=43 // pred_check_branch
          %686 = sbr.rel (%p684) target = $region68
        $region67: #{tpu_custom_call.1} parent=43 // pred_region
          %v687 = vld [vmem:[#allocation5] sm:$0xff]
          %v688 = vld [vmem:[%s359] sm:$0xff]
          %v689 = vld [vmem:[#allocation11] sm:$0xff]
          %v690 = vld [vmem:[#allocation11 + $0x8] sm:$0xff]
          %v691 = vld [vmem:[#allocation11 + $0x10] sm:$0xff]
          %v692 = vld [vmem:[#allocation11 + $0x18] sm:$0xff]
          %v693 = vld [vmem:[#allocation11 + $0x20] sm:$0xff]
          %v694 = vld [vmem:[#allocation11 + $0x28] sm:$0xff]
          %v695 = vld [vmem:[#allocation11 + $0x30] sm:$0xff]
          %v696 = vld [vmem:[#allocation11 + $0x38] sm:$0xff]
          %v697 = vld [vmem:[#allocation11 + $0x40] sm:$0xff]
          %v698 = vld [vmem:[#allocation11 + $0x48] sm:$0xff]
          %v699 = vld [vmem:[#allocation11 + $0x50] sm:$0xff]
          %v700 = vld [vmem:[#allocation11 + $0x58] sm:$0xff]
          %v701 = vld [vmem:[#allocation11 + $0x60] sm:$0xff]
          %v702 = vld [vmem:[#allocation11 + $0x68] sm:$0xff]
          %v703 = vld [vmem:[#allocation11 + $0x70] sm:$0xff]
          %v704 = vld [vmem:[#allocation11 + $0x78] sm:$0xff]
          %v705 = vld [vmem:[#allocation11 + $0x80] sm:$0xff]
          %v706 = vld [vmem:[#allocation11 + $0x88] sm:$0xff]
          %v707 = vld [vmem:[#allocation11 + $0x90] sm:$0xff]
          %v708 = vld [vmem:[#allocation11 + $0x98] sm:$0xff]
          %v709 = vld [vmem:[#allocation11 + $0xa0] sm:$0xff]
          %v710 = vld [vmem:[#allocation11 + $0xa8] sm:$0xff]
          %v711 = vld [vmem:[#allocation11 + $0xb0] sm:$0xff]
          %v712 = vld [vmem:[#allocation11 + $0xb8] sm:$0xff]
          %v713 = vld [vmem:[#allocation11 + $0xc0] sm:$0xff]
          %v714 = vld [vmem:[#allocation11 + $0xc8] sm:$0xff]
          %v715 = vld [vmem:[#allocation11 + $0xd0] sm:$0xff]
          %v716 = vld [vmem:[#allocation11 + $0xd8] sm:$0xff]
          %v717 = vld [vmem:[#allocation11 + $0xe0] sm:$0xff]
          %v718 = vld [vmem:[#allocation11 + $0xe8] sm:$0xff]
          %v719 = vld [vmem:[#allocation11 + $0xf0] sm:$0xff]
          %v720 = vld [vmem:[#allocation11 + $0xf8] sm:$0xff]
          %721 = vmatprep.subr.mxu0 %v690
          %722 = vmatpush1.msra.mxu0 %v689
          %723 = vmatprep.subr.mxu0 %v692
          %724 = vmatpush1.msra.mxu0 %v691
          %725 = vmatprep.subr.mxu0 %v694
          %726 = vmatpush1.msra.mxu0 %v693
          %727 = vmatprep.subr.mxu0 %v696
          %728 = vmatpush1.msra.mxu0 %v695
          %729 = vmatprep.subr.mxu0 %v698
          %730 = vmatpush1.msra.mxu0 %v697
          %731 = vmatprep.subr.mxu0 %v700
          %732 = vmatpush1.msra.mxu0 %v699
          %733 = vmatprep.subr.mxu0 %v702
          %734 = vmatpush1.msra.mxu0 %v701
          %735 = vmatprep.subr.mxu0 %v704
          %736 = vmatpush1.msra.mxu0 %v703
          %737 = vmatprep.subr.mxu0 %v706
          %738 = vmatpush1.msra.mxu0 %v705
          %739 = vmatprep.subr.mxu0 %v708
          %740 = vmatpush1.msra.mxu0 %v707
          %741 = vmatprep.subr.mxu0 %v710
          %742 = vmatpush1.msra.mxu0 %v709
          %743 = vmatprep.subr.mxu0 %v712
          %744 = vmatpush1.msra.mxu0 %v711
          %745 = vmatprep.subr.mxu0 %v714
          %746 = vmatpush1.msra.mxu0 %v713
          %747 = vmatprep.subr.mxu0 %v716
          %748 = vmatpush1.msra.mxu0 %v715
          %749 = vmatprep.subr.mxu0 %v718
          %750 = vmatpush1.msra.mxu0 %v717
          %751 = vmatprep.subr.mxu0 %v720
          %752 = vmatpush1.msra.mxu0 %v719
          %753 = vmatprep.subr.mxu0 0.0
          %754 = vmatpush1.msra.mxu0 0.0
          %755 = vmatprep.subr.mxu0 0.0
          %756 = vmatpush1.msra.mxu0 0.0
          %757 = vmatprep.subr.mxu0 0.0
          %758 = vmatpush1.msra.mxu0 0.0
          %759 = vmatprep.subr.mxu0 0.0
          %760 = vmatpush1.msra.mxu0 0.0
          %761 = vmatprep.subr.mxu0 0.0
          %762 = vmatpush1.msra.mxu0 0.0
          %763 = vmatprep.subr.mxu0 0.0
          %764 = vmatpush1.msra.mxu0 0.0
          %765 = vmatprep.subr.mxu0 0.0
          %766 = vmatpush1.msra.mxu0 0.0
          %767 = vmatprep.subr.mxu0 0.0
          %768 = vmatpush1.msra.mxu0 0.0
          %769 = vmatprep.subr.mxu0 0.0
          %770 = vmatpush1.msra.mxu0 0.0
          %771 = vmatprep.subr.mxu0 0.0
          %772 = vmatpush1.msra.mxu0 0.0
          %773 = vmatprep.subr.mxu0 0.0
          %774 = vmatpush1.msra.mxu0 0.0
          %775 = vmatprep.subr.mxu0 0.0
          %776 = vmatpush1.msra.mxu0 0.0
          %777 = vmatprep.subr.mxu0 0.0
          %778 = vmatpush1.msra.mxu0 0.0
          %779 = vmatprep.subr.mxu0 0.0
          %780 = vmatpush1.msra.mxu0 0.0
          %781 = vmatprep.subr.mxu0 0.0
          %782 = vmatpush1.msra.mxu0 0.0
          %783 = vmatprep.subr.mxu0 0.0
          %784 = vmatpush1.msra.mxu0 0.0
          %785 = vmatprep.mubr.f32.mxu0 0.0
          %786 = vmatmul.mubr.f32.gmra.mrb[0].mxu0 %v687
          %v787 = vpop.f32.mrb[0].mxu0
          %v788 = vadd.f32 0.0, %v787
          %v789 = vpop.f32.mrb[0].mxu0
          %v790 = vadd.f32 0.0, %v789
          %791 = vdwg.mxu0
          %v792 = vld [vmem:[#allocation2] sm:$0xff]
          %v793 = vadd.f32 %v792, %v788
          %v794 = vxor.u32 %v793, 2147483648
          %v795 = vmul.f32 %v794, 1.442695
          %v796 = vpow.pop %v795
          %v797 = vadd.f32 %v796, 1.0
          %v798 = vrcp.pop %v797
          %v799 = vmul.f32 1.0, %v798
          %v800 = vld [vmem:[#allocation4] sm:$0xff]
          %v801 = vmul.f32 %v799, %v687
          %v802 = vld [vmem:[#allocation13] sm:$0xff]
          %v803 = vld [vmem:[#allocation13 + $0x8] sm:$0xff]
          %v804 = vld [vmem:[#allocation13 + $0x10] sm:$0xff]
          %v805 = vld [vmem:[#allocation13 + $0x18] sm:$0xff]
          %v806 = vld [vmem:[#allocation13 + $0x20] sm:$0xff]
          %v807 = vld [vmem:[#allocation13 + $0x28] sm:$0xff]
          %v808 = vld [vmem:[#allocation13 + $0x30] sm:$0xff]
          %v809 = vld [vmem:[#allocation13 + $0x38] sm:$0xff]
          %v810 = vld [vmem:[#allocation13 + $0x40] sm:$0xff]
          %v811 = vld [vmem:[#allocation13 + $0x48] sm:$0xff]
          %v812 = vld [vmem:[#allocation13 + $0x50] sm:$0xff]
          %v813 = vld [vmem:[#allocation13 + $0x58] sm:$0xff]
          %v814 = vld [vmem:[#allocation13 + $0x60] sm:$0xff]
          %v815 = vld [vmem:[#allocation13 + $0x68] sm:$0xff]
          %v816 = vld [vmem:[#allocation13 + $0x70] sm:$0xff]
          %v817 = vld [vmem:[#allocation13 + $0x78] sm:$0xff]
          %818 = vmatprep.subr.mxu0 0.0
          %819 = vmatpush1.msra.mxu0 %v802
          %820 = vmatprep.subr.mxu0 0.0
          %821 = vmatpush1.msra.mxu0 %v803
          %822 = vmatprep.subr.mxu0 0.0
          %823 = vmatpush1.msra.mxu0 %v804
          %824 = vmatprep.subr.mxu0 0.0
          %825 = vmatpush1.msra.mxu0 %v805
          %826 = vmatprep.subr.mxu0 0.0
          %827 = vmatpush1.msra.mxu0 %v806
          %828 = vmatprep.subr.mxu0 0.0
          %829 = vmatpush1.msra.mxu0 %v807
          %830 = vmatprep.subr.mxu0 0.0
          %831 = vmatpush1.msra.mxu0 %v808
          %832 = vmatprep.subr.mxu0 0.0
          %833 = vmatpush1.msra.mxu0 %v809
          %834 = vmatprep.subr.mxu0 0.0
          %835 = vmatpush1.msra.mxu0 %v810
          %836 = vmatprep.subr.mxu0 0.0
          %837 = vmatpush1.msra.mxu0 %v811
          %838 = vmatprep.subr.mxu0 0.0
          %839 = vmatpush1.msra.mxu0 %v812
          %840 = vmatprep.subr.mxu0 0.0
          %841 = vmatpush1.msra.mxu0 %v813
          %842 = vmatprep.subr.mxu0 0.0
          %843 = vmatpush1.msra.mxu0 %v814
          %844 = vmatprep.subr.mxu0 0.0
          %845 = vmatpush1.msra.mxu0 %v815
          %846 = vmatprep.subr.mxu0 0.0
          %847 = vmatpush1.msra.mxu0 %v816
          %848 = vmatprep.subr.mxu0 0.0
          %849 = vmatpush1.msra.mxu0 %v817
          %850 = vmatprep.subr.mxu0 0.0
          %851 = vmatpush1.msra.mxu0 0.0
          %852 = vmatprep.subr.mxu0 0.0
          %853 = vmatpush1.msra.mxu0 0.0
          %854 = vmatprep.subr.mxu0 0.0
          %855 = vmatpush1.msra.mxu0 0.0
          %856 = vmatprep.subr.mxu0 0.0
          %857 = vmatpush1.msra.mxu0 0.0
          %858 = vmatprep.subr.mxu0 0.0
          %859 = vmatpush1.msra.mxu0 0.0
          %860 = vmatprep.subr.mxu0 0.0
          %861 = vmatpush1.msra.mxu0 0.0
          %862 = vmatprep.subr.mxu0 0.0
          %863 = vmatpush1.msra.mxu0 0.0
          %864 = vmatprep.subr.mxu0 0.0
          %865 = vmatpush1.msra.mxu0 0.0
          %866 = vmatprep.subr.mxu0 0.0
          %867 = vmatpush1.msra.mxu0 0.0
          %868 = vmatprep.subr.mxu0 0.0
          %869 = vmatpush1.msra.mxu0 0.0
          %870 = vmatprep.subr.mxu0 0.0
          %871 = vmatpush1.msra.mxu0 0.0
          %872 = vmatprep.subr.mxu0 0.0
          %873 = vmatpush1.msra.mxu0 0.0
          %874 = vmatprep.subr.mxu0 0.0
          %875 = vmatpush1.msra.mxu0 0.0
          %876 = vmatprep.subr.mxu0 0.0
          %877 = vmatpush1.msra.mxu0 0.0
          %878 = vmatprep.subr.mxu0 0.0
          %879 = vmatpush1.msra.mxu0 0.0
          %880 = vmatprep.subr.mxu0 0.0
          %881 = vmatpush1.msra.mxu0 0.0
          %882 = vmatprep.mubr.f32.mxu0 0.0
          %883 = vmatmul.mubr.f32.gmra.mrb[0].mxu0 %v801
          %v884 = vpop.f32.mrb[0].mxu0
          %v885 = vadd.f32 0.0, %v884
          %v886 = vpop.f32.mrb[0].mxu0
          %887 = vdwg.mxu0
          %v888 = vadd.f32 %v800, %v885
          %v889 = vtanh.pop %v888
          %v890 = vld [vmem:[#allocation3] sm:$0xff]
          %v891 = vadd.f32 %v890, %v790
          %v892 = vxor.u32 %v891, 2147483648
          %v893 = vmul.f32 %v892, 1.442695
          %v894 = vpow.pop %v893
          %v895 = vadd.f32 %v894, 1.0
          %v896 = vrcp.pop %v895
          %v897 = vmul.f32 1.0, %v896
          %899 = vset.pattern.permute.xlu0 0
          %900 = vperm.xlu0 %899, %v688
          %v901 = vpop.permute.xlu0 %900
          %v903 = vmul.f32 %v901, %v897
          %v904 = vsub.f32 1.0, %v903
          %v905 = vmul.f32 %v904, %v687
          %v906 = vmul.f32 %v903, %v889
          %v907 = vadd.f32 %v905, %v906
          %v908 = vstv %s682
          %vm909 = vcmp.lt.s32.totalorder %v681, %v908
          %v910 = vsel %vm909, 1, 0
          %vm911 = vcmp.eq.s32.totalorder %v910, 1
          %v912 = vsel %vm911, %v907, %v687
          %913 = vst [vmem:[#allocation5] sm:$0xff] %v912
          %v914 = vsel %vm911, %v907, 0.0
          %915 = vst [vmem:[%s342] sm:$0xff] %v914
        $region68: #{tpu_custom_call.1} parent=43 // pred_fallthru
          _
        %s916 = sadd.s32 %s367, 1
        %s917 = sld [smem:[#allocation7 + %s916]]
        %p918 = scmp.gt.s32.totalorder %s917, %s369
        // Predicated region
        $region69: #{tpu_custom_call.1} parent=43 // pred_check
          %p919 = pneg %p918
        $region70: #{tpu_custom_call.1} parent=43 // pred_check_branch
          %921 = sbr.rel (%p919) target = $region72
        $region71: #{tpu_custom_call.1} parent=43 // pred_region
          %v922 = vld [vmem:[#allocation5] sm:$0xff]
          %s923 = scalar_lea.vmem %s359, 8
          %v924 = vld [vmem:[%s923] sm:$0xff]
          %v925 = vld [vmem:[#allocation11] sm:$0xff]
          %v926 = vld [vmem:[#allocation11 + $0x8] sm:$0xff]
          %v927 = vld [vmem:[#allocation11 + $0x10] sm:$0xff]
          %v928 = vld [vmem:[#allocation11 + $0x18] sm:$0xff]
          %v929 = vld [vmem:[#allocation11 + $0x20] sm:$0xff]
          %v930 = vld [vmem:[#allocation11 + $0x28] sm:$0xff]
          %v931 = vld [vmem:[#allocation11 + $0x30] sm:$0xff]
          %v932 = vld [vmem:[#allocation11 + $0x38] sm:$0xff]
          %v933 = vld [vmem:[#allocation11 + $0x40] sm:$0xff]
          %v934 = vld [vmem:[#allocation11 + $0x48] sm:$0xff]
          %v935 = vld [vmem:[#allocation11 + $0x50] sm:$0xff]
          %v936 = vld [vmem:[#allocation11 + $0x58] sm:$0xff]
          %v937 = vld [vmem:[#allocation11 + $0x60] sm:$0xff]
          %v938 = vld [vmem:[#allocation11 + $0x68] sm:$0xff]
          %v939 = vld [vmem:[#allocation11 + $0x70] sm:$0xff]
          %v940 = vld [vmem:[#allocation11 + $0x78] sm:$0xff]
          %v941 = vld [vmem:[#allocation11 + $0x80] sm:$0xff]
          %v942 = vld [vmem:[#allocation11 + $0x88] sm:$0xff]
          %v943 = vld [vmem:[#allocation11 + $0x90] sm:$0xff]
          %v944 = vld [vmem:[#allocation11 + $0x98] sm:$0xff]
          %v945 = vld [vmem:[#allocation11 + $0xa0] sm:$0xff]
          %v946 = vld [vmem:[#allocation11 + $0xa8] sm:$0xff]
          %v947 = vld [vmem:[#allocation11 + $0xb0] sm:$0xff]
          %v948 = vld [vmem:[#allocation11 + $0xb8] sm:$0xff]
          %v949 = vld [vmem:[#allocation11 + $0xc0] sm:$0xff]
          %v950 = vld [vmem:[#allocation11 + $0xc8] sm:$0xff]
          %v951 = vld [vmem:[#allocation11 + $0xd0] sm:$0xff]
          %v952 = vld [vmem:[#allocation11 + $0xd8] sm:$0xff]
          %v953 = vld [vmem:[#allocation11 + $0xe0] sm:$0xff]
          %v954 = vld [vmem:[#allocation11 + $0xe8] sm:$0xff]
          %v955 = vld [vmem:[#allocation11 + $0xf0] sm:$0xff]
          %v956 = vld [vmem:[#allocation11 + $0xf8] sm:$0xff]
          %957 = vmatprep.subr.mxu0 %v926
          %958 = vmatpush1.msra.mxu0 %v925
          %959 = vmatprep.subr.mxu0 %v928
          %960 = vmatpush1.msra.mxu0 %v927
          %961 = vmatprep.subr.mxu0 %v930
          %962 = vmatpush1.msra.mxu0 %v929
          %963 = vmatprep.subr.mxu0 %v932
          %964 = vmatpush1.msra.mxu0 %v931
          %965 = vmatprep.subr.mxu0 %v934
          %966 = vmatpush1.msra.mxu0 %v933
          %967 = vmatprep.subr.mxu0 %v936
          %968 = vmatpush1.msra.mxu0 %v935
          %969 = vmatprep.subr.mxu0 %v938
          %970 = vmatpush1.msra.mxu0 %v937
          %971 = vmatprep.subr.mxu0 %v940
          %972 = vmatpush1.msra.mxu0 %v939
          %973 = vmatprep.subr.mxu0 %v942
          %974 = vmatpush1.msra.mxu0 %v941
          %975 = vmatprep.subr.mxu0 %v944
          %976 = vmatpush1.msra.mxu0 %v943
          %977 = vmatprep.subr.mxu0 %v946
          %978 = vmatpush1.msra.mxu0 %v945
          %979 = vmatprep.subr.mxu0 %v948
          %980 = vmatpush1.msra.mxu0 %v947
          %981 = vmatprep.subr.mxu0 %v950
          %982 = vmatpush1.msra.mxu0 %v949
          %983 = vmatprep.subr.mxu0 %v952
          %984 = vmatpush1.msra.mxu0 %v951
          %985 = vmatprep.subr.mxu0 %v954
          %986 = vmatpush1.msra.mxu0 %v953
          %987 = vmatprep.subr.mxu0 %v956
          %988 = vmatpush1.msra.mxu0 %v955
          %989 = vmatprep.subr.mxu0 0.0
          %990 = vmatpush1.msra.mxu0 0.0
          %991 = vmatprep.subr.mxu0 0.0
          %992 = vmatpush1.msra.mxu0 0.0
          %993 = vmatprep.subr.mxu0 0.0
          %994 = vmatpush1.msra.mxu0 0.0
          %995 = vmatprep.subr.mxu0 0.0
          %996 = vmatpush1.msra.mxu0 0.0
          %997 = vmatprep.subr.mxu0 0.0
          %998 = vmatpush1.msra.mxu0 0.0
          %999 = vmatprep.subr.mxu0 0.0
          %1000 = vmatpush1.msra.mxu0 0.0
          %1001 = vmatprep.subr.mxu0 0.0
          %1002 = vmatpush1.msra.mxu0 0.0
          %1003 = vmatprep.subr.mxu0 0.0
          %1004 = vmatpush1.msra.mxu0 0.0
          %1005 = vmatprep.subr.mxu0 0.0
          %1006 = vmatpush1.msra.mxu0 0.0
          %1007 = vmatprep.subr.mxu0 0.0
          %1008 = vmatpush1.msra.mxu0 0.0
          %1009 = vmatprep.subr.mxu0 0.0
          %1010 = vmatpush1.msra.mxu0 0.0
          %1011 = vmatprep.subr.mxu0 0.0
          %1012 = vmatpush1.msra.mxu0 0.0
          %1013 = vmatprep.subr.mxu0 0.0
          %1014 = vmatpush1.msra.mxu0 0.0
          %1015 = vmatprep.subr.mxu0 0.0
          %1016 = vmatpush1.msra.mxu0 0.0
          %1017 = vmatprep.subr.mxu0 0.0
          %1018 = vmatpush1.msra.mxu0 0.0
          %1019 = vmatprep.subr.mxu0 0.0
          %1020 = vmatpush1.msra.mxu0 0.0
          %1021 = vmatprep.mubr.f32.mxu0 0.0
          %1022 = vmatmul.mubr.f32.gmra.mrb[0].mxu0 %v922
          %v1023 = vpop.f32.mrb[0].mxu0
          %v1024 = vadd.f32 0.0, %v1023
          %v1025 = vpop.f32.mrb[0].mxu0
          %v1026 = vadd.f32 0.0, %v1025
          %1027 = vdwg.mxu0
          %s1028 = scalar_lea.vmem [#allocation2], 8
          %v1029 = vld [vmem:[%s1028] sm:$0xff]
          %v1030 = vadd.f32 %v1029, %v1024
          %v1031 = vxor.u32 %v1030, 2147483648
          %v1032 = vmul.f32 %v1031, 1.442695
          %v1033 = vpow.pop %v1032
          %v1034 = vadd.f32 %v1033, 1.0
          %v1035 = vrcp.pop %v1034
          %v1036 = vmul.f32 1.0, %v1035
          %s1037 = scalar_lea.vmem [#allocation4], 8
          %v1038 = vld [vmem:[%s1037] sm:$0xff]
          %v1039 = vmul.f32 %v1036, %v922
          %v1040 = vld [vmem:[#allocation13] sm:$0xff]
          %v1041 = vld [vmem:[#allocation13 + $0x8] sm:$0xff]
          %v1042 = vld [vmem:[#allocation13 + $0x10] sm:$0xff]
          %v1043 = vld [vmem:[#allocation13 + $0x18] sm:$0xff]
          %v1044 = vld [vmem:[#allocation13 + $0x20] sm:$0xff]
          %v1045 = vld [vmem:[#allocation13 + $0x28] sm:$0xff]
          %v1046 = vld [vmem:[#allocation13 + $0x30] sm:$0xff]
          %v1047 = vld [vmem:[#allocation13 + $0x38] sm:$0xff]
          %v1048 = vld [vmem:[#allocation13 + $0x40] sm:$0xff]
          %v1049 = vld [vmem:[#allocation13 + $0x48] sm:$0xff]
          %v1050 = vld [vmem:[#allocation13 + $0x50] sm:$0xff]
          %v1051 = vld [vmem:[#allocation13 + $0x58] sm:$0xff]
          %v1052 = vld [vmem:[#allocation13 + $0x60] sm:$0xff]
          %v1053 = vld [vmem:[#allocation13 + $0x68] sm:$0xff]
          %v1054 = vld [vmem:[#allocation13 + $0x70] sm:$0xff]
          %v1055 = vld [vmem:[#allocation13 + $0x78] sm:$0xff]
          %1056 = vmatprep.subr.mxu0 0.0
          %1057 = vmatpush1.msra.mxu0 %v1040
          %1058 = vmatprep.subr.mxu0 0.0
          %1059 = vmatpush1.msra.mxu0 %v1041
          %1060 = vmatprep.subr.mxu0 0.0
          %1061 = vmatpush1.msra.mxu0 %v1042
          %1062 = vmatprep.subr.mxu0 0.0
          %1063 = vmatpush1.msra.mxu0 %v1043
          %1064 = vmatprep.subr.mxu0 0.0
          %1065 = vmatpush1.msra.mxu0 %v1044
          %1066 = vmatprep.subr.mxu0 0.0
          %1067 = vmatpush1.msra.mxu0 %v1045
          %1068 = vmatprep.subr.mxu0 0.0
          %1069 = vmatpush1.msra.mxu0 %v1046
          %1070 = vmatprep.subr.mxu0 0.0
          %1071 = vmatpush1.msra.mxu0 %v1047
          %1072 = vmatprep.subr.mxu0 0.0
          %1073 = vmatpush1.msra.mxu0 %v1048
          %1074 = vmatprep.subr.mxu0 0.0
          %1075 = vmatpush1.msra.mxu0 %v1049
          %1076 = vmatprep.subr.mxu0 0.0
          %1077 = vmatpush1.msra.mxu0 %v1050
          %1078 = vmatprep.subr.mxu0 0.0
          %1079 = vmatpush1.msra.mxu0 %v1051
          %1080 = vmatprep.subr.mxu0 0.0
          %1081 = vmatpush1.msra.mxu0 %v1052
          %1082 = vmatprep.subr.mxu0 0.0
          %1083 = vmatpush1.msra.mxu0 %v1053
          %1084 = vmatprep.subr.mxu0 0.0
          %1085 = vmatpush1.msra.mxu0 %v1054
          %1086 = vmatprep.subr.mxu0 0.0
          %1087 = vmatpush1.msra.mxu0 %v1055
          %1088 = vmatprep.subr.mxu0 0.0
          %1089 = vmatpush1.msra.mxu0 0.0
          %1090 = vmatprep.subr.mxu0 0.0
          %1091 = vmatpush1.msra.mxu0 0.0
          %1092 = vmatprep.subr.mxu0 0.0
          %1093 = vmatpush1.msra.mxu0 0.0
          %1094 = vmatprep.subr.mxu0 0.0
          %1095 = vmatpush1.msra.mxu0 0.0
          %1096 = vmatprep.subr.mxu0 0.0
          %1097 = vmatpush1.msra.mxu0 0.0
          %1098 = vmatprep.subr.mxu0 0.0
          %1099 = vmatpush1.msra.mxu0 0.0
          %1100 = vmatprep.subr.mxu0 0.0
          %1101 = vmatpush1.msra.mxu0 0.0
          %1102 = vmatprep.subr.mxu0 0.0
          %1103 = vmatpush1.msra.mxu0 0.0
          %1104 = vmatprep.subr.mxu0 0.0
          %1105 = vmatpush1.msra.mxu0 0.0
          %1106 = vmatprep.subr.mxu0 0.0
          %1107 = vmatpush1.msra.mxu0 0.0
          %1108 = vmatprep.subr.mxu0 0.0
          %1109 = vmatpush1.msra.mxu0 0.0
          %1110 = vmatprep.subr.mxu0 0.0
          %1111 = vmatpush1.msra.mxu0 0.0
          %1112 = vmatprep.subr.mxu0 0.0
          %1113 = vmatpush1.msra.mxu0 0.0
          %1114 = vmatprep.subr.mxu0 0.0
          %1115 = vmatpush1.msra.mxu0 0.0
          %1116 = vmatprep.subr.mxu0 0.0
          %1117 = vmatpush1.msra.mxu0 0.0
          %1118 = vmatprep.subr.mxu0 0.0
          %1119 = vmatpush1.msra.mxu0 0.0
          %1120 = vmatprep.mubr.f32.mxu0 0.0
          %1121 = vmatmul.mubr.f32.gmra.mrb[0].mxu0 %v1039
          %v1122 = vpop.f32.mrb[0].mxu0
          %v1123 = vadd.f32 0.0, %v1122
          %v1124 = vpop.f32.mrb[0].mxu0
          %1125 = vdwg.mxu0
          %v1126 = vadd.f32 %v1038, %v1123
          %v1127 = vtanh.pop %v1126
          %s1128 = scalar_lea.vmem [#allocation3], 8
          %v1129 = vld [vmem:[%s1128] sm:$0xff]
          %v1130 = vadd.f32 %v1129, %v1026
          %v1131 = vxor.u32 %v1130, 2147483648
          %v1132 = vmul.f32 %v1131, 1.442695
          %v1133 = vpow.pop %v1132
          %v1134 = vadd.f32 %v1133, 1.0
          %v1135 = vrcp.pop %v1134
          %v1136 = vmul.f32 1.0, %v1135
          %1138 = vset.pattern.permute.xlu0 0
          %1139 = vperm.xlu0 %1138, %v924
          %v1140 = vpop.permute.xlu0 %1139
          %v1142 = vmul.f32 %v1140, %v1136
          %v1143 = vsub.f32 1.0, %v1142
          %v1144 = vmul.f32 %v1143, %v922
          %v1145 = vmul.f32 %v1142, %v1127
          %v1146 = vadd.f32 %v1144, %v1145
          %v1147 = vstv %s917
          %vm1148 = vcmp.lt.s32.totalorder %v681, %v1147
          %v1149 = vsel %vm1148, 1, 0
          %vm1150 = vcmp.eq.s32.totalorder %v1149, 1
          %v1151 = vsel %vm1150, %v1146, %v922
          %1152 = vst [vmem:[#allocation5] sm:$0xff] %v1151
          %v1153 = vsel %vm1150, %v1146, 0.0
          %s1154 = scalar_lea.vmem %s342, 8 [#allocation14]
          %1155 = vst [vmem:[%s1154] sm:$0xff] %v1153
        $region72: #{tpu_custom_call.1} parent=43 // pred_fallthru
          _
        %s1156 = sadd.s32 %s367, 2
        %s1157 = sld [smem:[#allocation7 + %s1156]]
        %p1158 = scmp.gt.s32.totalorder %s1157, %s369
        // Predicated region
        $region73: #{tpu_custom_call.1} parent=43 // pred_check
          %p1159 = pneg %p1158
        $region74: #{tpu_custom_call.1} parent=43 // pred_check_branch
          %1161 = sbr.rel (%p1159) target = $region76
        $region75: #{tpu_custom_call.1} parent=43 // pred_region
          %v1162 = vld [vmem:[#allocation5] sm:$0xff]
          %s1163 = scalar_lea.vmem %s359, 16
          %v1164 = vld [vmem:[%s1163] sm:$0xff]
          %v1165 = vld [vmem:[#allocation11] sm:$0xff]
          %v1166 = vld [vmem:[#allocation11 + $0x8] sm:$0xff]
          %v1167 = vld [vmem:[#allocation11 + $0x10] sm:$0xff]
          %v1168 = vld [vmem:[#allocation11 + $0x18] sm:$0xff]
          %v1169 = vld [vmem:[#allocation11 + $0x20] sm:$0xff]
          %v1170 = vld [vmem:[#allocation11 + $0x28] sm:$0xff]
          %v1171 = vld [vmem:[#allocation11 + $0x30] sm:$0xff]
          %v1172 = vld [vmem:[#allocation11 + $0x38] sm:$0xff]
          %v1173 = vld [vmem:[#allocation11 + $0x40] sm:$0xff]
          %v1174 = vld [vmem:[#allocation11 + $0x48] sm:$0xff]
          %v1175 = vld [vmem:[#allocation11 + $0x50] sm:$0xff]
          %v1176 = vld [vmem:[#allocation11 + $0x58] sm:$0xff]
          %v1177 = vld [vmem:[#allocation11 + $0x60] sm:$0xff]
          %v1178 = vld [vmem:[#allocation11 + $0x68] sm:$0xff]
          %v1179 = vld [vmem:[#allocation11 + $0x70] sm:$0xff]
          %v1180 = vld [vmem:[#allocation11 + $0x78] sm:$0xff]
          %v1181 = vld [vmem:[#allocation11 + $0x80] sm:$0xff]
          %v1182 = vld [vmem:[#allocation11 + $0x88] sm:$0xff]
          %v1183 = vld [vmem:[#allocation11 + $0x90] sm:$0xff]
          %v1184 = vld [vmem:[#allocation11 + $0x98] sm:$0xff]
          %v1185 = vld [vmem:[#allocation11 + $0xa0] sm:$0xff]
          %v1186 = vld [vmem:[#allocation11 + $0xa8] sm:$0xff]
          %v1187 = vld [vmem:[#allocation11 + $0xb0] sm:$0xff]
          %v1188 = vld [vmem:[#allocation11 + $0xb8] sm:$0xff]
          %v1189 = vld [vmem:[#allocation11 + $0xc0] sm:$0xff]
          %v1190 = vld [vmem:[#allocation11 + $0xc8] sm:$0xff]
          %v1191 = vld [vmem:[#allocation11 + $0xd0] sm:$0xff]
          %v1192 = vld [vmem:[#allocation11 + $0xd8] sm:$0xff]
          %v1193 = vld [vmem:[#allocation11 + $0xe0] sm:$0xff]
          %v1194 = vld [vmem:[#allocation11 + $0xe8] sm:$0xff]
          %v1195 = vld [vmem:[#allocation11 + $0xf0] sm:$0xff]
          %v1196 = vld [vmem:[#allocation11 + $0xf8] sm:$0xff]
          %1197 = vmatprep.subr.mxu0 %v1166
          %1198 = vmatpush1.msra.mxu0 %v1165
          %1199 = vmatprep.subr.mxu0 %v1168
          %1200 = vmatpush1.msra.mxu0 %v1167
          %1201 = vmatprep.subr.mxu0 %v1170
          %1202 = vmatpush1.msra.mxu0 %v1169
          %1203 = vmatprep.subr.mxu0 %v1172
          %1204 = vmatpush1.msra.mxu0 %v1171
          %1205 = vmatprep.subr.mxu0 %v1174
          %1206 = vmatpush1.msra.mxu0 %v1173
          %1207 = vmatprep.subr.mxu0 %v1176
          %1208 = vmatpush1.msra.mxu0 %v1175
          %1209 = vmatprep.subr.mxu0 %v1178
          %1210 = vmatpush1.msra.mxu0 %v1177
          %1211 = vmatprep.subr.mxu0 %v1180
          %1212 = vmatpush1.msra.mxu0 %v1179
          %1213 = vmatprep.subr.mxu0 %v1182
          %1214 = vmatpush1.msra.mxu0 %v1181
          %1215 = vmatprep.subr.mxu0 %v1184
          %1216 = vmatpush1.msra.mxu0 %v1183
          %1217 = vmatprep.subr.mxu0 %v1186
          %1218 = vmatpush1.msra.mxu0 %v1185
          %1219 = vmatprep.subr.mxu0 %v1188
          %1220 = vmatpush1.msra.mxu0 %v1187
          %1221 = vmatprep.subr.mxu0 %v1190
          %1222 = vmatpush1.msra.mxu0 %v1189
          %1223 = vmatprep.subr.mxu0 %v1192
          %1224 = vmatpush1.msra.mxu0 %v1191
          %1225 = vmatprep.subr.mxu0 %v1194
          %1226 = vmatpush1.msra.mxu0 %v1193
          %1227 = vmatprep.subr.mxu0 %v1196
          %1228 = vmatpush1.msra.mxu0 %v1195
          %1229 = vmatprep.subr.mxu0 0.0
          %1230 = vmatpush1.msra.mxu0 0.0
          %1231 = vmatprep.subr.mxu0 0.0
          %1232 = vmatpush1.msra.mxu0 0.0
          %1233 = vmatprep.subr.mxu0 0.0
          %1234 = vmatpush1.msra.mxu0 0.0
          %1235 = vmatprep.subr.mxu0 0.0
          %1236 = vmatpush1.msra.mxu0 0.0
          %1237 = vmatprep.subr.mxu0 0.0
          %1238 = vmatpush1.msra.mxu0 0.0
          %1239 = vmatprep.subr.mxu0 0.0
          %1240 = vmatpush1.msra.mxu0 0.0
          %1241 = vmatprep.subr.mxu0 0.0
          %1242 = vmatpush1.msra.mxu0 0.0
          %1243 = vmatprep.subr.mxu0 0.0
          %1244 = vmatpush1.msra.mxu0 0.0
          %1245 = vmatprep.subr.mxu0 0.0
          %1246 = vmatpush1.msra.mxu0 0.0
          %1247 = vmatprep.subr.mxu0 0.0
          %1248 = vmatpush1.msra.mxu0 0.0
          %1249 = vmatprep.subr.mxu0 0.0
          %1250 = vmatpush1.msra.mxu0 0.0
          %1251 = vmatprep.subr.mxu0 0.0
          %1252 = vmatpush1.msra.mxu0 0.0
          %1253 = vmatprep.subr.mxu0 0.0
          %1254 = vmatpush1.msra.mxu0 0.0
          %1255 = vmatprep.subr.mxu0 0.0
          %1256 = vmatpush1.msra.mxu0 0.0
          %1257 = vmatprep.subr.mxu0 0.0
          %1258 = vmatpush1.msra.mxu0 0.0
          %1259 = vmatprep.subr.mxu0 0.0
          %1260 = vmatpush1.msra.mxu0 0.0
          %1261 = vmatprep.mubr.f32.mxu0 0.0
          %1262 = vmatmul.mubr.f32.gmra.mrb[0].mxu0 %v1162
          %v1263 = vpop.f32.mrb[0].mxu0
          %v1264 = vadd.f32 0.0, %v1263
          %v1265 = vpop.f32.mrb[0].mxu0
          %v1266 = vadd.f32 0.0, %v1265
          %1267 = vdwg.mxu0
          %s1268 = scalar_lea.vmem [#allocation2], 16
          %v1269 = vld [vmem:[%s1268] sm:$0xff]
          %v1270 = vadd.f32 %v1269, %v1264
          %v1271 = vxor.u32 %v1270, 2147483648
          %v1272 = vmul.f32 %v1271, 1.442695
          %v1273 = vpow.pop %v1272
          %v1274 = vadd.f32 %v1273, 1.0
          %v1275 = vrcp.pop %v1274
          %v1276 = vmul.f32 1.0, %v1275
          %s1277 = scalar_lea.vmem [#allocation4], 16
          %v1278 = vld [vmem:[%s1277] sm:$0xff]
          %v1279 = vmul.f32 %v1276, %v1162
          %v1280 = vld [vmem:[#allocation13] sm:$0xff]
          %v1281 = vld [vmem:[#allocation13 + $0x8] sm:$0xff]
          %v1282 = vld [vmem:[#allocation13 + $0x10] sm:$0xff]
          %v1283 = vld [vmem:[#allocation13 + $0x18] sm:$0xff]
          %v1284 = vld [vmem:[#allocation13 + $0x20] sm:$0xff]
          %v1285 = vld [vmem:[#allocation13 + $0x28] sm:$0xff]
          %v1286 = vld [vmem:[#allocation13 + $0x30] sm:$0xff]
          %v1287 = vld [vmem:[#allocation13 + $0x38] sm:$0xff]
          %v1288 = vld [vmem:[#allocation13 + $0x40] sm:$0xff]
          %v1289 = vld [vmem:[#allocation13 + $0x48] sm:$0xff]
          %v1290 = vld [vmem:[#allocation13 + $0x50] sm:$0xff]
          %v1291 = vld [vmem:[#allocation13 + $0x58] sm:$0xff]
          %v1292 = vld [vmem:[#allocation13 + $0x60] sm:$0xff]
          %v1293 = vld [vmem:[#allocation13 + $0x68] sm:$0xff]
          %v1294 = vld [vmem:[#allocation13 + $0x70] sm:$0xff]
          %v1295 = vld [vmem:[#allocation13 + $0x78] sm:$0xff]
          %1296 = vmatprep.subr.mxu0 0.0
          %1297 = vmatpush1.msra.mxu0 %v1280
          %1298 = vmatprep.subr.mxu0 0.0
          %1299 = vmatpush1.msra.mxu0 %v1281
          %1300 = vmatprep.subr.mxu0 0.0
          %1301 = vmatpush1.msra.mxu0 %v1282
          %1302 = vmatprep.subr.mxu0 0.0
          %1303 = vmatpush1.msra.mxu0 %v1283
          %1304 = vmatprep.subr.mxu0 0.0
          %1305 = vmatpush1.msra.mxu0 %v1284
          %1306 = vmatprep.subr.mxu0 0.0
          %1307 = vmatpush1.msra.mxu0 %v1285
          %1308 = vmatprep.subr.mxu0 0.0
          %1309 = vmatpush1.msra.mxu0 %v1286
          %1310 = vmatprep.subr.mxu0 0.0
          %1311 = vmatpush1.msra.mxu0 %v1287
          %1312 = vmatprep.subr.mxu0 0.0
          %1313 = vmatpush1.msra.mxu0 %v1288
          %1314 = vmatprep.subr.mxu0 0.0
          %1315 = vmatpush1.msra.mxu0 %v1289
          %1316 = vmatprep.subr.mxu0 0.0
          %1317 = vmatpush1.msra.mxu0 %v1290
          %1318 = vmatprep.subr.mxu0 0.0
          %1319 = vmatpush1.msra.mxu0 %v1291
          %1320 = vmatprep.subr.mxu0 0.0
          %1321 = vmatpush1.msra.mxu0 %v1292
          %1322 = vmatprep.subr.mxu0 0.0
          %1323 = vmatpush1.msra.mxu0 %v1293
          %1324 = vmatprep.subr.mxu0 0.0
          %1325 = vmatpush1.msra.mxu0 %v1294
          %1326 = vmatprep.subr.mxu0 0.0
          %1327 = vmatpush1.msra.mxu0 %v1295
          %1328 = vmatprep.subr.mxu0 0.0
          %1329 = vmatpush1.msra.mxu0 0.0
          %1330 = vmatprep.subr.mxu0 0.0
          %1331 = vmatpush1.msra.mxu0 0.0
          %1332 = vmatprep.subr.mxu0 0.0
          %1333 = vmatpush1.msra.mxu0 0.0
          %1334 = vmatprep.subr.mxu0 0.0
          %1335 = vmatpush1.msra.mxu0 0.0
          %1336 = vmatprep.subr.mxu0 0.0
          %1337 = vmatpush1.msra.mxu0 0.0
          %1338 = vmatprep.subr.mxu0 0.0
          %1339 = vmatpush1.msra.mxu0 0.0
          %1340 = vmatprep.subr.mxu0 0.0
          %1341 = vmatpush1.msra.mxu0 0.0
          %1342 = vmatprep.subr.mxu0 0.0
          %1343 = vmatpush1.msra.mxu0 0.0
          %1344 = vmatprep.subr.mxu0 0.0
          %1345 = vmatpush1.msra.mxu0 0.0
          %1346 = vmatprep.subr.mxu0 0.0
          %1347 = vmatpush1.msra.mxu0 0.0
          %1348 = vmatprep.subr.mxu0 0.0
          %1349 = vmatpush1.msra.mxu0 0.0
          %1350 = vmatprep.subr.mxu0 0.0
          %1351 = vmatpush1.msra.mxu0 0.0
          %1352 = vmatprep.subr.mxu0 0.0
          %1353 = vmatpush1.msra.mxu0 0.0
          %1354 = vmatprep.subr.mxu0 0.0
          %1355 = vmatpush1.msra.mxu0 0.0
          %1356 = vmatprep.subr.mxu0 0.0
          %1357 = vmatpush1.msra.mxu0 0.0
          %1358 = vmatprep.subr.mxu0 0.0
          %1359 = vmatpush1.msra.mxu0 0.0
          %1360 = vmatprep.mubr.f32.mxu0 0.0
          %1361 = vmatmul.mubr.f32.gmra.mrb[0].mxu0 %v1279
          %v1362 = vpop.f32.mrb[0].mxu0
          %v1363 = vadd.f32 0.0, %v1362
          %v1364 = vpop.f32.mrb[0].mxu0
          %1365 = vdwg.mxu0
          %v1366 = vadd.f32 %v1278, %v1363
          %v1367 = vtanh.pop %v1366
          %s1368 = scalar_lea.vmem [#allocation3], 16
          %v1369 = vld [vmem:[%s1368] sm:$0xff]
          %v1370 = vadd.f32 %v1369, %v1266
          %v1371 = vxor.u32 %v1370, 2147483648
          %v1372 = vmul.f32 %v1371, 1.442695
          %v1373 = vpow.pop %v1372
          %v1374 = vadd.f32 %v1373, 1.0
          %v1375 = vrcp.pop %v1374
          %v1376 = vmul.f32 1.0, %v1375
          %1378 = vset.pattern.permute.xlu0 0
          %1379 = vperm.xlu0 %1378, %v1164
          %v1380 = vpop.permute.xlu0 %1379
          %v1382 = vmul.f32 %v1380, %v1376
          %v1383 = vsub.f32 1.0, %v1382
          %v1384 = vmul.f32 %v1383, %v1162
          %v1385 = vmul.f32 %v1382, %v1367
          %v1386 = vadd.f32 %v1384, %v1385
          %v1387 = vstv %s1157
          %vm1388 = vcmp.lt.s32.totalorder %v681, %v1387
          %v1389 = vsel %vm1388, 1, 0
          %vm1390 = vcmp.eq.s32.totalorder %v1389, 1
          %v1391 = vsel %vm1390, %v1386, %v1162
          %1392 = vst [vmem:[#allocation5] sm:$0xff] %v1391
          %v1393 = vsel %vm1390, %v1386, 0.0
          %s1394 = scalar_lea.vmem %s342, 16 [#allocation14]
          %1395 = vst [vmem:[%s1394] sm:$0xff] %v1393
        $region76: #{tpu_custom_call.1} parent=43 // pred_fallthru
          _
        %s1396 = sadd.s32 %s367, 3
        %s1397 = sld [smem:[#allocation7 + %s1396]]
        %p1398 = scmp.gt.s32.totalorder %s1397, %s369
        // Predicated region
        $region77: #{tpu_custom_call.1} parent=43 // pred_check
          %p1399 = pneg %p1398
        $region78: #{tpu_custom_call.1} parent=43 // pred_check_branch
          %1401 = sbr.rel (%p1399) target = $region80
        $region79: #{tpu_custom_call.1} parent=43 // pred_region
          %v1402 = vld [vmem:[#allocation5] sm:$0xff]
          %s1403 = scalar_lea.vmem %s359, 24
          %v1404 = vld [vmem:[%s1403] sm:$0xff]
          %v1405 = vld [vmem:[#allocation11] sm:$0xff]
          %v1406 = vld [vmem:[#allocation11 + $0x8] sm:$0xff]
          %v1407 = vld [vmem:[#allocation11 + $0x10] sm:$0xff]
          %v1408 = vld [vmem:[#allocation11 + $0x18] sm:$0xff]
          %v1409 = vld [vmem:[#allocation11 + $0x20] sm:$0xff]
          %v1410 = vld [vmem:[#allocation11 + $0x28] sm:$0xff]
          %v1411 = vld [vmem:[#allocation11 + $0x30] sm:$0xff]
          %v1412 = vld [vmem:[#allocation11 + $0x38] sm:$0xff]
          %v1413 = vld [vmem:[#allocation11 + $0x40] sm:$0xff]
          %v1414 = vld [vmem:[#allocation11 + $0x48] sm:$0xff]
          %v1415 = vld [vmem:[#allocation11 + $0x50] sm:$0xff]
          %v1416 = vld [vmem:[#allocation11 + $0x58] sm:$0xff]
          %v1417 = vld [vmem:[#allocation11 + $0x60] sm:$0xff]
          %v1418 = vld [vmem:[#allocation11 + $0x68] sm:$0xff]
          %v1419 = vld [vmem:[#allocation11 + $0x70] sm:$0xff]
          %v1420 = vld [vmem:[#allocation11 + $0x78] sm:$0xff]
          %v1421 = vld [vmem:[#allocation11 + $0x80] sm:$0xff]
          %v1422 = vld [vmem:[#allocation11 + $0x88] sm:$0xff]
          %v1423 = vld [vmem:[#allocation11 + $0x90] sm:$0xff]
          %v1424 = vld [vmem:[#allocation11 + $0x98] sm:$0xff]
          %v1425 = vld [vmem:[#allocation11 + $0xa0] sm:$0xff]
          %v1426 = vld [vmem:[#allocation11 + $0xa8] sm:$0xff]
          %v1427 = vld [vmem:[#allocation11 + $0xb0] sm:$0xff]
          %v1428 = vld [vmem:[#allocation11 + $0xb8] sm:$0xff]
          %v1429 = vld [vmem:[#allocation11 + $0xc0] sm:$0xff]
          %v1430 = vld [vmem:[#allocation11 + $0xc8] sm:$0xff]
          %v1431 = vld [vmem:[#allocation11 + $0xd0] sm:$0xff]
          %v1432 = vld [vmem:[#allocation11 + $0xd8] sm:$0xff]
          %v1433 = vld [vmem:[#allocation11 + $0xe0] sm:$0xff]
          %v1434 = vld [vmem:[#allocation11 + $0xe8] sm:$0xff]
          %v1435 = vld [vmem:[#allocation11 + $0xf0] sm:$0xff]
          %v1436 = vld [vmem:[#allocation11 + $0xf8] sm:$0xff]
          %1437 = vmatprep.subr.mxu0 %v1406
          %1438 = vmatpush1.msra.mxu0 %v1405
          %1439 = vmatprep.subr.mxu0 %v1408
          %1440 = vmatpush1.msra.mxu0 %v1407
          %1441 = vmatprep.subr.mxu0 %v1410
          %1442 = vmatpush1.msra.mxu0 %v1409
          %1443 = vmatprep.subr.mxu0 %v1412
          %1444 = vmatpush1.msra.mxu0 %v1411
          %1445 = vmatprep.subr.mxu0 %v1414
          %1446 = vmatpush1.msra.mxu0 %v1413
          %1447 = vmatprep.subr.mxu0 %v1416
          %1448 = vmatpush1.msra.mxu0 %v1415
          %1449 = vmatprep.subr.mxu0 %v1418
          %1450 = vmatpush1.msra.mxu0 %v1417
          %1451 = vmatprep.subr.mxu0 %v1420
          %1452 = vmatpush1.msra.mxu0 %v1419
          %1453 = vmatprep.subr.mxu0 %v1422
          %1454 = vmatpush1.msra.mxu0 %v1421
          %1455 = vmatprep.subr.mxu0 %v1424
          %1456 = vmatpush1.msra.mxu0 %v1423
          %1457 = vmatprep.subr.mxu0 %v1426
          %1458 = vmatpush1.msra.mxu0 %v1425
          %1459 = vmatprep.subr.mxu0 %v1428
          %1460 = vmatpush1.msra.mxu0 %v1427
          %1461 = vmatprep.subr.mxu0 %v1430
          %1462 = vmatpush1.msra.mxu0 %v1429
          %1463 = vmatprep.subr.mxu0 %v1432
          %1464 = vmatpush1.msra.mxu0 %v1431
          %1465 = vmatprep.subr.mxu0 %v1434
          %1466 = vmatpush1.msra.mxu0 %v1433
          %1467 = vmatprep.subr.mxu0 %v1436
          %1468 = vmatpush1.msra.mxu0 %v1435
          %1469 = vmatprep.subr.mxu0 0.0
          %1470 = vmatpush1.msra.mxu0 0.0
          %1471 = vmatprep.subr.mxu0 0.0
          %1472 = vmatpush1.msra.mxu0 0.0
          %1473 = vmatprep.subr.mxu0 0.0
          %1474 = vmatpush1.msra.mxu0 0.0
          %1475 = vmatprep.subr.mxu0 0.0
          %1476 = vmatpush1.msra.mxu0 0.0
          %1477 = vmatprep.subr.mxu0 0.0
          %1478 = vmatpush1.msra.mxu0 0.0
          %1479 = vmatprep.subr.mxu0 0.0
          %1480 = vmatpush1.msra.mxu0 0.0
          %1481 = vmatprep.subr.mxu0 0.0
          %1482 = vmatpush1.msra.mxu0 0.0
          %1483 = vmatprep.subr.mxu0 0.0
          %1484 = vmatpush1.msra.mxu0 0.0
          %1485 = vmatprep.subr.mxu0 0.0
          %1486 = vmatpush1.msra.mxu0 0.0
          %1487 = vmatprep.subr.mxu0 0.0
          %1488 = vmatpush1.msra.mxu0 0.0
          %1489 = vmatprep.subr.mxu0 0.0
          %1490 = vmatpush1.msra.mxu0 0.0
          %1491 = vmatprep.subr.mxu0 0.0
          %1492 = vmatpush1.msra.mxu0 0.0
          %1493 = vmatprep.subr.mxu0 0.0
          %1494 = vmatpush1.msra.mxu0 0.0
          %1495 = vmatprep.subr.mxu0 0.0
          %1496 = vmatpush1.msra.mxu0 0.0
          %1497 = vmatprep.subr.mxu0 0.0
          %1498 = vmatpush1.msra.mxu0 0.0
          %1499 = vmatprep.subr.mxu0 0.0
          %1500 = vmatpush1.msra.mxu0 0.0
          %1501 = vmatprep.mubr.f32.mxu0 0.0
          %1502 = vmatmul.mubr.f32.gmra.mrb[0].mxu0 %v1402
          %v1503 = vpop.f32.mrb[0].mxu0
          %v1504 = vadd.f32 0.0, %v1503
          %v1505 = vpop.f32.mrb[0].mxu0
          %v1506 = vadd.f32 0.0, %v1505
          %1507 = vdwg.mxu0
          %s1508 = scalar_lea.vmem [#allocation2], 24
          %v1509 = vld [vmem:[%s1508] sm:$0xff]
          %v1510 = vadd.f32 %v1509, %v1504
          %v1511 = vxor.u32 %v1510, 2147483648
          %v1512 = vmul.f32 %v1511, 1.442695
          %v1513 = vpow.pop %v1512
          %v1514 = vadd.f32 %v1513, 1.0
          %v1515 = vrcp.pop %v1514
          %v1516 = vmul.f32 1.0, %v1515
          %s1517 = scalar_lea.vmem [#allocation4], 24
          %v1518 = vld [vmem:[%s1517] sm:$0xff]
          %v1519 = vmul.f32 %v1516, %v1402
          %v1520 = vld [vmem:[#allocation13] sm:$0xff]
          %v1521 = vld [vmem:[#allocation13 + $0x8] sm:$0xff]
          %v1522 = vld [vmem:[#allocation13 + $0x10] sm:$0xff]
          %v1523 = vld [vmem:[#allocation13 + $0x18] sm:$0xff]
          %v1524 = vld [vmem:[#allocation13 + $0x20] sm:$0xff]
          %v1525 = vld [vmem:[#allocation13 + $0x28] sm:$0xff]
          %v1526 = vld [vmem:[#allocation13 + $0x30] sm:$0xff]
          %v1527 = vld [vmem:[#allocation13 + $0x38] sm:$0xff]
          %v1528 = vld [vmem:[#allocation13 + $0x40] sm:$0xff]
          %v1529 = vld [vmem:[#allocation13 + $0x48] sm:$0xff]
          %v1530 = vld [vmem:[#allocation13 + $0x50] sm:$0xff]
          %v1531 = vld [vmem:[#allocation13 + $0x58] sm:$0xff]
          %v1532 = vld [vmem:[#allocation13 + $0x60] sm:$0xff]
          %v1533 = vld [vmem:[#allocation13 + $0x68] sm:$0xff]
          %v1534 = vld [vmem:[#allocation13 + $0x70] sm:$0xff]
          %v1535 = vld [vmem:[#allocation13 + $0x78] sm:$0xff]
          %1536 = vmatprep.subr.mxu0 0.0
          %1537 = vmatpush1.msra.mxu0 %v1520
          %1538 = vmatprep.subr.mxu0 0.0
          %1539 = vmatpush1.msra.mxu0 %v1521
          %1540 = vmatprep.subr.mxu0 0.0
          %1541 = vmatpush1.msra.mxu0 %v1522
          %1542 = vmatprep.subr.mxu0 0.0
          %1543 = vmatpush1.msra.mxu0 %v1523
          %1544 = vmatprep.subr.mxu0 0.0
          %1545 = vmatpush1.msra.mxu0 %v1524
          %1546 = vmatprep.subr.mxu0 0.0
          %1547 = vmatpush1.msra.mxu0 %v1525
          %1548 = vmatprep.subr.mxu0 0.0
          %1549 = vmatpush1.msra.mxu0 %v1526
          %1550 = vmatprep.subr.mxu0 0.0
          %1551 = vmatpush1.msra.mxu0 %v1527
          %1552 = vmatprep.subr.mxu0 0.0
          %1553 = vmatpush1.msra.mxu0 %v1528
          %1554 = vmatprep.subr.mxu0 0.0
          %1555 = vmatpush1.msra.mxu0 %v1529
          %1556 = vmatprep.subr.mxu0 0.0
          %1557 = vmatpush1.msra.mxu0 %v1530
          %1558 = vmatprep.subr.mxu0 0.0
          %1559 = vmatpush1.msra.mxu0 %v1531
          %1560 = vmatprep.subr.mxu0 0.0
          %1561 = vmatpush1.msra.mxu0 %v1532
          %1562 = vmatprep.subr.mxu0 0.0
          %1563 = vmatpush1.msra.mxu0 %v1533
          %1564 = vmatprep.subr.mxu0 0.0
          %1565 = vmatpush1.msra.mxu0 %v1534
          %1566 = vmatprep.subr.mxu0 0.0
          %1567 = vmatpush1.msra.mxu0 %v1535
          %1568 = vmatprep.subr.mxu0 0.0
          %1569 = vmatpush1.msra.mxu0 0.0
          %1570 = vmatprep.subr.mxu0 0.0
          %1571 = vmatpush1.msra.mxu0 0.0
          %1572 = vmatprep.subr.mxu0 0.0
          %1573 = vmatpush1.msra.mxu0 0.0
          %1574 = vmatprep.subr.mxu0 0.0
          %1575 = vmatpush1.msra.mxu0 0.0
          %1576 = vmatprep.subr.mxu0 0.0
          %1577 = vmatpush1.msra.mxu0 0.0
          %1578 = vmatprep.subr.mxu0 0.0
          %1579 = vmatpush1.msra.mxu0 0.0
          %1580 = vmatprep.subr.mxu0 0.0
          %1581 = vmatpush1.msra.mxu0 0.0
          %1582 = vmatprep.subr.mxu0 0.0
          %1583 = vmatpush1.msra.mxu0 0.0
          %1584 = vmatprep.subr.mxu0 0.0
          %1585 = vmatpush1.msra.mxu0 0.0
          %1586 = vmatprep.subr.mxu0 0.0
          %1587 = vmatpush1.msra.mxu0 0.0
          %1588 = vmatprep.subr.mxu0 0.0
          %1589 = vmatpush1.msra.mxu0 0.0
          %1590 = vmatprep.subr.mxu0 0.0
          %1591 = vmatpush1.msra.mxu0 0.0
          %1592 = vmatprep.subr.mxu0 0.0
          %1593 = vmatpush1.msra.mxu0 0.0
          %1594 = vmatprep.subr.mxu0 0.0
          %1595 = vmatpush1.msra.mxu0 0.0
          %1596 = vmatprep.subr.mxu0 0.0
          %1597 = vmatpush1.msra.mxu0 0.0
          %1598 = vmatprep.subr.mxu0 0.0
          %1599 = vmatpush1.msra.mxu0 0.0
          %1600 = vmatprep.mubr.f32.mxu0 0.0
          %1601 = vmatmul.mubr.f32.gmra.mrb[0].mxu0 %v1519
          %v1602 = vpop.f32.mrb[0].mxu0
          %v1603 = vadd.f32 0.0, %v1602
          %v1604 = vpop.f32.mrb[0].mxu0
          %1605 = vdwg.mxu0
          %v1606 = vadd.f32 %v1518, %v1603
          %v1607 = vtanh.pop %v1606
          %s1608 = scalar_lea.vmem [#allocation3], 24
          %v1609 = vld [vmem:[%s1608] sm:$0xff]
          %v1610 = vadd.f32 %v1609, %v1506
          %v1611 = vxor.u32 %v1610, 2147483648
          %v1612 = vmul.f32 %v1611, 1.442695
          %v1613 = vpow.pop %v1612
          %v1614 = vadd.f32 %v1613, 1.0
          %v1615 = vrcp.pop %v1614
          %v1616 = vmul.f32 1.0, %v1615
          %1618 = vset.pattern.permute.xlu0 0
          %1619 = vperm.xlu0 %1618, %v1404
          %v1620 = vpop.permute.xlu0 %1619
          %v1622 = vmul.f32 %v1620, %v1616
          %v1623 = vsub.f32 1.0, %v1622
          %v1624 = vmul.f32 %v1623, %v1402
          %v1625 = vmul.f32 %v1622, %v1607
          %v1626 = vadd.f32 %v1624, %v1625
          %v1627 = vstv %s1397
          %vm1628 = vcmp.lt.s32.totalorder %v681, %v1627
          %v1629 = vsel %vm1628, 1, 0
          %vm1630 = vcmp.eq.s32.totalorder %v1629, 1
          %v1631 = vsel %vm1630, %v1626, %v1402
          %1632 = vst [vmem:[#allocation5] sm:$0xff] %v1631
          %v1633 = vsel %vm1630, %v1626, 0.0
          %s1634 = scalar_lea.vmem %s342, 24 [#allocation14]
          %1635 = vst [vmem:[%s1634] sm:$0xff] %v1633
        $region80: #{tpu_custom_call.1} parent=43 // pred_fallthru
          _
        %s1636 = sadd.s32 %s367, 4
        %s1637 = sld [smem:[#allocation7 + %s1636]]
        %p1638 = scmp.gt.s32.totalorder %s1637, %s369
        // Predicated region
        $region81: #{tpu_custom_call.1} parent=43 // pred_check
          %p1639 = pneg %p1638
        $region82: #{tpu_custom_call.1} parent=43 // pred_check_branch
          %1641 = sbr.rel (%p1639) target = $region84
        $region83: #{tpu_custom_call.1} parent=43 // pred_region
          %v1642 = vld [vmem:[#allocation5] sm:$0xff]
          %s1643 = scalar_lea.vmem %s359, 32
          %v1644 = vld [vmem:[%s1643] sm:$0xff]
          %v1645 = vld [vmem:[#allocation11] sm:$0xff]
          %v1646 = vld [vmem:[#allocation11 + $0x8] sm:$0xff]
          %v1647 = vld [vmem:[#allocation11 + $0x10] sm:$0xff]
          %v1648 = vld [vmem:[#allocation11 + $0x18] sm:$0xff]
          %v1649 = vld [vmem:[#allocation11 + $0x20] sm:$0xff]
          %v1650 = vld [vmem:[#allocation11 + $0x28] sm:$0xff]
          %v1651 = vld [vmem:[#allocation11 + $0x30] sm:$0xff]
          %v1652 = vld [vmem:[#allocation11 + $0x38] sm:$0xff]
          %v1653 = vld [vmem:[#allocation11 + $0x40] sm:$0xff]
          %v1654 = vld [vmem:[#allocation11 + $0x48] sm:$0xff]
          %v1655 = vld [vmem:[#allocation11 + $0x50] sm:$0xff]
          %v1656 = vld [vmem:[#allocation11 + $0x58] sm:$0xff]
          %v1657 = vld [vmem:[#allocation11 + $0x60] sm:$0xff]
          %v1658 = vld [vmem:[#allocation11 + $0x68] sm:$0xff]
          %v1659 = vld [vmem:[#allocation11 + $0x70] sm:$0xff]
          %v1660 = vld [vmem:[#allocation11 + $0x78] sm:$0xff]
          %v1661 = vld [vmem:[#allocation11 + $0x80] sm:$0xff]
          %v1662 = vld [vmem:[#allocation11 + $0x88] sm:$0xff]
          %v1663 = vld [vmem:[#allocation11 + $0x90] sm:$0xff]
          %v1664 = vld [vmem:[#allocation11 + $0x98] sm:$0xff]
          %v1665 = vld [vmem:[#allocation11 + $0xa0] sm:$0xff]
          %v1666 = vld [vmem:[#allocation11 + $0xa8] sm:$0xff]
          %v1667 = vld [vmem:[#allocation11 + $0xb0] sm:$0xff]
          %v1668 = vld [vmem:[#allocation11 + $0xb8] sm:$0xff]
          %v1669 = vld [vmem:[#allocation11 + $0xc0] sm:$0xff]
          %v1670 = vld [vmem:[#allocation11 + $0xc8] sm:$0xff]
          %v1671 = vld [vmem:[#allocation11 + $0xd0] sm:$0xff]
          %v1672 = vld [vmem:[#allocation11 + $0xd8] sm:$0xff]
          %v1673 = vld [vmem:[#allocation11 + $0xe0] sm:$0xff]
          %v1674 = vld [vmem:[#allocation11 + $0xe8] sm:$0xff]
          %v1675 = vld [vmem:[#allocation11 + $0xf0] sm:$0xff]
          %v1676 = vld [vmem:[#allocation11 + $0xf8] sm:$0xff]
          %1677 = vmatprep.subr.mxu0 %v1646
          %1678 = vmatpush1.msra.mxu0 %v1645
          %1679 = vmatprep.subr.mxu0 %v1648
          %1680 = vmatpush1.msra.mxu0 %v1647
          %1681 = vmatprep.subr.mxu0 %v1650
          %1682 = vmatpush1.msra.mxu0 %v1649
          %1683 = vmatprep.subr.mxu0 %v1652
          %1684 = vmatpush1.msra.mxu0 %v1651
          %1685 = vmatprep.subr.mxu0 %v1654
          %1686 = vmatpush1.msra.mxu0 %v1653
          %1687 = vmatprep.subr.mxu0 %v1656
          %1688 = vmatpush1.msra.mxu0 %v1655
          %1689 = vmatprep.subr.mxu0 %v1658
          %1690 = vmatpush1.msra.mxu0 %v1657
          %1691 = vmatprep.subr.mxu0 %v1660
          %1692 = vmatpush1.msra.mxu0 %v1659
          %1693 = vmatprep.subr.mxu0 %v1662
          %1694 = vmatpush1.msra.mxu0 %v1661
          %1695 = vmatprep.subr.mxu0 %v1664
          %1696 = vmatpush1.msra.mxu0 %v1663
          %1697 = vmatprep.subr.mxu0 %v1666
          %1698 = vmatpush1.msra.mxu0 %v1665
          %1699 = vmatprep.subr.mxu0 %v1668
          %1700 = vmatpush1.msra.mxu0 %v1667
          %1701 = vmatprep.subr.mxu0 %v1670
          %1702 = vmatpush1.msra.mxu0 %v1669
          %1703 = vmatprep.subr.mxu0 %v1672
          %1704 = vmatpush1.msra.mxu0 %v1671
          %1705 = vmatprep.subr.mxu0 %v1674
          %1706 = vmatpush1.msra.mxu0 %v1673
          %1707 = vmatprep.subr.mxu0 %v1676
          %1708 = vmatpush1.msra.mxu0 %v1675
          %1709 = vmatprep.subr.mxu0 0.0
          %1710 = vmatpush1.msra.mxu0 0.0
          %1711 = vmatprep.subr.mxu0 0.0
          %1712 = vmatpush1.msra.mxu0 0.0
          %1713 = vmatprep.subr.mxu0 0.0
          %1714 = vmatpush1.msra.mxu0 0.0
          %1715 = vmatprep.subr.mxu0 0.0
          %1716 = vmatpush1.msra.mxu0 0.0
          %1717 = vmatprep.subr.mxu0 0.0
          %1718 = vmatpush1.msra.mxu0 0.0
          %1719 = vmatprep.subr.mxu0 0.0
          %1720 = vmatpush1.msra.mxu0 0.0
          %1721 = vmatprep.subr.mxu0 0.0
          %1722 = vmatpush1.msra.mxu0 0.0
          %1723 = vmatprep.subr.mxu0 0.0
          %1724 = vmatpush1.msra.mxu0 0.0
          %1725 = vmatprep.subr.mxu0 0.0
          %1726 = vmatpush1.msra.mxu0 0.0
          %1727 = vmatprep.subr.mxu0 0.0
          %1728 = vmatpush1.msra.mxu0 0.0
          %1729 = vmatprep.subr.mxu0 0.0
          %1730 = vmatpush1.msra.mxu0 0.0
          %1731 = vmatprep.subr.mxu0 0.0
          %1732 = vmatpush1.msra.mxu0 0.0
          %1733 = vmatprep.subr.mxu0 0.0
          %1734 = vmatpush1.msra.mxu0 0.0
          %1735 = vmatprep.subr.mxu0 0.0
          %1736 = vmatpush1.msra.mxu0 0.0
          %1737 = vmatprep.subr.mxu0 0.0
          %1738 = vmatpush1.msra.mxu0 0.0
          %1739 = vmatprep.subr.mxu0 0.0
          %1740 = vmatpush1.msra.mxu0 0.0
          %1741 = vmatprep.mubr.f32.mxu0 0.0
          %1742 = vmatmul.mubr.f32.gmra.mrb[0].mxu0 %v1642
          %v1743 = vpop.f32.mrb[0].mxu0
          %v1744 = vadd.f32 0.0, %v1743
          %v1745 = vpop.f32.mrb[0].mxu0
          %v1746 = vadd.f32 0.0, %v1745
          %1747 = vdwg.mxu0
          %s1748 = scalar_lea.vmem [#allocation2], 32
          %v1749 = vld [vmem:[%s1748] sm:$0xff]
          %v1750 = vadd.f32 %v1749, %v1744
          %v1751 = vxor.u32 %v1750, 2147483648
          %v1752 = vmul.f32 %v1751, 1.442695
          %v1753 = vpow.pop %v1752
          %v1754 = vadd.f32 %v1753, 1.0
          %v1755 = vrcp.pop %v1754
          %v1756 = vmul.f32 1.0, %v1755
          %s1757 = scalar_lea.vmem [#allocation4], 32
          %v1758 = vld [vmem:[%s1757] sm:$0xff]
          %v1759 = vmul.f32 %v1756, %v1642
          %v1760 = vld [vmem:[#allocation13] sm:$0xff]
          %v1761 = vld [vmem:[#allocation13 + $0x8] sm:$0xff]
          %v1762 = vld [vmem:[#allocation13 + $0x10] sm:$0xff]
          %v1763 = vld [vmem:[#allocation13 + $0x18] sm:$0xff]
          %v1764 = vld [vmem:[#allocation13 + $0x20] sm:$0xff]
          %v1765 = vld [vmem:[#allocation13 + $0x28] sm:$0xff]
          %v1766 = vld [vmem:[#allocation13 + $0x30] sm:$0xff]
          %v1767 = vld [vmem:[#allocation13 + $0x38] sm:$0xff]
          %v1768 = vld [vmem:[#allocation13 + $0x40] sm:$0xff]
          %v1769 = vld [vmem:[#allocation13 + $0x48] sm:$0xff]
          %v1770 = vld [vmem:[#allocation13 + $0x50] sm:$0xff]
          %v1771 = vld [vmem:[#allocation13 + $0x58] sm:$0xff]
          %v1772 = vld [vmem:[#allocation13 + $0x60] sm:$0xff]
          %v1773 = vld [vmem:[#allocation13 + $0x68] sm:$0xff]
          %v1774 = vld [vmem:[#allocation13 + $0x70] sm:$0xff]
          %v1775 = vld [vmem:[#allocation13 + $0x78] sm:$0xff]
          %1776 = vmatprep.subr.mxu0 0.0
          %1777 = vmatpush1.msra.mxu0 %v1760
          %1778 = vmatprep.subr.mxu0 0.0
          %1779 = vmatpush1.msra.mxu0 %v1761
          %1780 = vmatprep.subr.mxu0 0.0
          %1781 = vmatpush1.msra.mxu0 %v1762
          %1782 = vmatprep.subr.mxu0 0.0
          %1783 = vmatpush1.msra.mxu0 %v1763
          %1784 = vmatprep.subr.mxu0 0.0
          %1785 = vmatpush1.msra.mxu0 %v1764
          %1786 = vmatprep.subr.mxu0 0.0
          %1787 = vmatpush1.msra.mxu0 %v1765
          %1788 = vmatprep.subr.mxu0 0.0
          %1789 = vmatpush1.msra.mxu0 %v1766
          %1790 = vmatprep.subr.mxu0 0.0
          %1791 = vmatpush1.msra.mxu0 %v1767
          %1792 = vmatprep.subr.mxu0 0.0
          %1793 = vmatpush1.msra.mxu0 %v1768
          %1794 = vmatprep.subr.mxu0 0.0
          %1795 = vmatpush1.msra.mxu0 %v1769
          %1796 = vmatprep.subr.mxu0 0.0
          %1797 = vmatpush1.msra.mxu0 %v1770
          %1798 = vmatprep.subr.mxu0 0.0
          %1799 = vmatpush1.msra.mxu0 %v1771
          %1800 = vmatprep.subr.mxu0 0.0
          %1801 = vmatpush1.msra.mxu0 %v1772
          %1802 = vmatprep.subr.mxu0 0.0
          %1803 = vmatpush1.msra.mxu0 %v1773
          %1804 = vmatprep.subr.mxu0 0.0
          %1805 = vmatpush1.msra.mxu0 %v1774
          %1806 = vmatprep.subr.mxu0 0.0
          %1807 = vmatpush1.msra.mxu0 %v1775
          %1808 = vmatprep.subr.mxu0 0.0
          %1809 = vmatpush1.msra.mxu0 0.0
          %1810 = vmatprep.subr.mxu0 0.0
          %1811 = vmatpush1.msra.mxu0 0.0
          %1812 = vmatprep.subr.mxu0 0.0
          %1813 = vmatpush1.msra.mxu0 0.0
          %1814 = vmatprep.subr.mxu0 0.0
          %1815 = vmatpush1.msra.mxu0 0.0
          %1816 = vmatprep.subr.mxu0 0.0
          %1817 = vmatpush1.msra.mxu0 0.0
          %1818 = vmatprep.subr.mxu0 0.0
          %1819 = vmatpush1.msra.mxu0 0.0
          %1820 = vmatprep.subr.mxu0 0.0
          %1821 = vmatpush1.msra.mxu0 0.0
          %1822 = vmatprep.subr.mxu0 0.0
          %1823 = vmatpush1.msra.mxu0 0.0
          %1824 = vmatprep.subr.mxu0 0.0
          %1825 = vmatpush1.msra.mxu0 0.0
          %1826 = vmatprep.subr.mxu0 0.0
          %1827 = vmatpush1.msra.mxu0 0.0
          %1828 = vmatprep.subr.mxu0 0.0
          %1829 = vmatpush1.msra.mxu0 0.0
          %1830 = vmatprep.subr.mxu0 0.0
          %1831 = vmatpush1.msra.mxu0 0.0
          %1832 = vmatprep.subr.mxu0 0.0
          %1833 = vmatpush1.msra.mxu0 0.0
          %1834 = vmatprep.subr.mxu0 0.0
          %1835 = vmatpush1.msra.mxu0 0.0
          %1836 = vmatprep.subr.mxu0 0.0
          %1837 = vmatpush1.msra.mxu0 0.0
          %1838 = vmatprep.subr.mxu0 0.0
          %1839 = vmatpush1.msra.mxu0 0.0
          %1840 = vmatprep.mubr.f32.mxu0 0.0
          %1841 = vmatmul.mubr.f32.gmra.mrb[0].mxu0 %v1759
          %v1842 = vpop.f32.mrb[0].mxu0
          %v1843 = vadd.f32 0.0, %v1842
          %v1844 = vpop.f32.mrb[0].mxu0
          %1845 = vdwg.mxu0
          %v1846 = vadd.f32 %v1758, %v1843
          %v1847 = vtanh.pop %v1846
          %s1848 = scalar_lea.vmem [#allocation3], 32
          %v1849 = vld [vmem:[%s1848] sm:$0xff]
          %v1850 = vadd.f32 %v1849, %v1746
          %v1851 = vxor.u32 %v1850, 2147483648
          %v1852 = vmul.f32 %v1851, 1.442695
          %v1853 = vpow.pop %v1852
          %v1854 = vadd.f32 %v1853, 1.0
          %v1855 = vrcp.pop %v1854
          %v1856 = vmul.f32 1.0, %v1855
          %1858 = vset.pattern.permute.xlu0 0
          %1859 = vperm.xlu0 %1858, %v1644
          %v1860 = vpop.permute.xlu0 %1859
          %v1862 = vmul.f32 %v1860, %v1856
          %v1863 = vsub.f32 1.0, %v1862
          %v1864 = vmul.f32 %v1863, %v1642
          %v1865 = vmul.f32 %v1862, %v1847
          %v1866 = vadd.f32 %v1864, %v1865
          %v1867 = vstv %s1637
          %vm1868 = vcmp.lt.s32.totalorder %v681, %v1867
          %v1869 = vsel %vm1868, 1, 0
          %vm1870 = vcmp.eq.s32.totalorder %v1869, 1
          %v1871 = vsel %vm1870, %v1866, %v1642
          %1872 = vst [vmem:[#allocation5] sm:$0xff] %v1871
          %v1873 = vsel %vm1870, %v1866, 0.0
          %s1874 = scalar_lea.vmem %s342, 32 [#allocation14]
          %1875 = vst [vmem:[%s1874] sm:$0xff] %v1873
        $region84: #{tpu_custom_call.1} parent=43 // pred_fallthru
          _
        %s1876 = sadd.s32 %s367, 5
        %s1877 = sld [smem:[#allocation7 + %s1876]]
        %p1878 = scmp.gt.s32.totalorder %s1877, %s369
        // Predicated region
        $region85: #{tpu_custom_call.1} parent=43 // pred_check
          %p1879 = pneg %p1878
        $region86: #{tpu_custom_call.1} parent=43 // pred_check_branch
          %1881 = sbr.rel (%p1879) target = $region88
        $region87: #{tpu_custom_call.1} parent=43 // pred_region
          %v1882 = vld [vmem:[#allocation5] sm:$0xff]
          %s1883 = scalar_lea.vmem %s359, 40
          %v1884 = vld [vmem:[%s1883] sm:$0xff]
          %v1885 = vld [vmem:[#allocation11] sm:$0xff]
          %v1886 = vld [vmem:[#allocation11 + $0x8] sm:$0xff]
          %v1887 = vld [vmem:[#allocation11 + $0x10] sm:$0xff]
          %v1888 = vld [vmem:[#allocation11 + $0x18] sm:$0xff]
          %v1889 = vld [vmem:[#allocation11 + $0x20] sm:$0xff]
          %v1890 = vld [vmem:[#allocation11 + $0x28] sm:$0xff]
          %v1891 = vld [vmem:[#allocation11 + $0x30] sm:$0xff]
          %v1892 = vld [vmem:[#allocation11 + $0x38] sm:$0xff]
          %v1893 = vld [vmem:[#allocation11 + $0x40] sm:$0xff]
          %v1894 = vld [vmem:[#allocation11 + $0x48] sm:$0xff]
          %v1895 = vld [vmem:[#allocation11 + $0x50] sm:$0xff]
          %v1896 = vld [vmem:[#allocation11 + $0x58] sm:$0xff]
          %v1897 = vld [vmem:[#allocation11 + $0x60] sm:$0xff]
          %v1898 = vld [vmem:[#allocation11 + $0x68] sm:$0xff]
          %v1899 = vld [vmem:[#allocation11 + $0x70] sm:$0xff]
          %v1900 = vld [vmem:[#allocation11 + $0x78] sm:$0xff]
          %v1901 = vld [vmem:[#allocation11 + $0x80] sm:$0xff]
          %v1902 = vld [vmem:[#allocation11 + $0x88] sm:$0xff]
          %v1903 = vld [vmem:[#allocation11 + $0x90] sm:$0xff]
          %v1904 = vld [vmem:[#allocation11 + $0x98] sm:$0xff]
          %v1905 = vld [vmem:[#allocation11 + $0xa0] sm:$0xff]
          %v1906 = vld [vmem:[#allocation11 + $0xa8] sm:$0xff]
          %v1907 = vld [vmem:[#allocation11 + $0xb0] sm:$0xff]
          %v1908 = vld [vmem:[#allocation11 + $0xb8] sm:$0xff]
          %v1909 = vld [vmem:[#allocation11 + $0xc0] sm:$0xff]
          %v1910 = vld [vmem:[#allocation11 + $0xc8] sm:$0xff]
          %v1911 = vld [vmem:[#allocation11 + $0xd0] sm:$0xff]
          %v1912 = vld [vmem:[#allocation11 + $0xd8] sm:$0xff]
          %v1913 = vld [vmem:[#allocation11 + $0xe0] sm:$0xff]
          %v1914 = vld [vmem:[#allocation11 + $0xe8] sm:$0xff]
          %v1915 = vld [vmem:[#allocation11 + $0xf0] sm:$0xff]
          %v1916 = vld [vmem:[#allocation11 + $0xf8] sm:$0xff]
          %1917 = vmatprep.subr.mxu0 %v1886
          %1918 = vmatpush1.msra.mxu0 %v1885
          %1919 = vmatprep.subr.mxu0 %v1888
          %1920 = vmatpush1.msra.mxu0 %v1887
          %1921 = vmatprep.subr.mxu0 %v1890
          %1922 = vmatpush1.msra.mxu0 %v1889
          %1923 = vmatprep.subr.mxu0 %v1892
          %1924 = vmatpush1.msra.mxu0 %v1891
          %1925 = vmatprep.subr.mxu0 %v1894
          %1926 = vmatpush1.msra.mxu0 %v1893
          %1927 = vmatprep.subr.mxu0 %v1896
          %1928 = vmatpush1.msra.mxu0 %v1895
          %1929 = vmatprep.subr.mxu0 %v1898
          %1930 = vmatpush1.msra.mxu0 %v1897
          %1931 = vmatprep.subr.mxu0 %v1900
          %1932 = vmatpush1.msra.mxu0 %v1899
          %1933 = vmatprep.subr.mxu0 %v1902
          %1934 = vmatpush1.msra.mxu0 %v1901
          %1935 = vmatprep.subr.mxu0 %v1904
          %1936 = vmatpush1.msra.mxu0 %v1903
          %1937 = vmatprep.subr.mxu0 %v1906
          %1938 = vmatpush1.msra.mxu0 %v1905
          %1939 = vmatprep.subr.mxu0 %v1908
          %1940 = vmatpush1.msra.mxu0 %v1907
          %1941 = vmatprep.subr.mxu0 %v1910
          %1942 = vmatpush1.msra.mxu0 %v1909
          %1943 = vmatprep.subr.mxu0 %v1912
          %1944 = vmatpush1.msra.mxu0 %v1911
          %1945 = vmatprep.subr.mxu0 %v1914
          %1946 = vmatpush1.msra.mxu0 %v1913
          %1947 = vmatprep.subr.mxu0 %v1916
          %1948 = vmatpush1.msra.mxu0 %v1915
          %1949 = vmatprep.subr.mxu0 0.0
          %1950 = vmatpush1.msra.mxu0 0.0
          %1951 = vmatprep.subr.mxu0 0.0
          %1952 = vmatpush1.msra.mxu0 0.0
          %1953 = vmatprep.subr.mxu0 0.0
          %1954 = vmatpush1.msra.mxu0 0.0
          %1955 = vmatprep.subr.mxu0 0.0
          %1956 = vmatpush1.msra.mxu0 0.0
          %1957 = vmatprep.subr.mxu0 0.0
          %1958 = vmatpush1.msra.mxu0 0.0
          %1959 = vmatprep.subr.mxu0 0.0
          %1960 = vmatpush1.msra.mxu0 0.0
          %1961 = vmatprep.subr.mxu0 0.0
          %1962 = vmatpush1.msra.mxu0 0.0
          %1963 = vmatprep.subr.mxu0 0.0
          %1964 = vmatpush1.msra.mxu0 0.0
          %1965 = vmatprep.subr.mxu0 0.0
          %1966 = vmatpush1.msra.mxu0 0.0
          %1967 = vmatprep.subr.mxu0 0.0
          %1968 = vmatpush1.msra.mxu0 0.0
          %1969 = vmatprep.subr.mxu0 0.0
          %1970 = vmatpush1.msra.mxu0 0.0
          %1971 = vmatprep.subr.mxu0 0.0
          %1972 = vmatpush1.msra.mxu0 0.0
          %1973 = vmatprep.subr.mxu0 0.0
          %1974 = vmatpush1.msra.mxu0 0.0
          %1975 = vmatprep.subr.mxu0 0.0
          %1976 = vmatpush1.msra.mxu0 0.0
          %1977 = vmatprep.subr.mxu0 0.0
          %1978 = vmatpush1.msra.mxu0 0.0
          %1979 = vmatprep.subr.mxu0 0.0
          %1980 = vmatpush1.msra.mxu0 0.0
          %1981 = vmatprep.mubr.f32.mxu0 0.0
          %1982 = vmatmul.mubr.f32.gmra.mrb[0].mxu0 %v1882
          %v1983 = vpop.f32.mrb[0].mxu0
          %v1984 = vadd.f32 0.0, %v1983
          %v1985 = vpop.f32.mrb[0].mxu0
          %v1986 = vadd.f32 0.0, %v1985
          %1987 = vdwg.mxu0
          %s1988 = scalar_lea.vmem [#allocation2], 40
          %v1989 = vld [vmem:[%s1988] sm:$0xff]
          %v1990 = vadd.f32 %v1989, %v1984
          %v1991 = vxor.u32 %v1990, 2147483648
          %v1992 = vmul.f32 %v1991, 1.442695
          %v1993 = vpow.pop %v1992
          %v1994 = vadd.f32 %v1993, 1.0
          %v1995 = vrcp.pop %v1994
          %v1996 = vmul.f32 1.0, %v1995
          %s1997 = scalar_lea.vmem [#allocation4], 40
          %v1998 = vld [vmem:[%s1997] sm:$0xff]
          %v1999 = vmul.f32 %v1996, %v1882
          %v2000 = vld [vmem:[#allocation13] sm:$0xff]
          %v2001 = vld [vmem:[#allocation13 + $0x8] sm:$0xff]
          %v2002 = vld [vmem:[#allocation13 + $0x10] sm:$0xff]
          %v2003 = vld [vmem:[#allocation13 + $0x18] sm:$0xff]
          %v2004 = vld [vmem:[#allocation13 + $0x20] sm:$0xff]
          %v2005 = vld [vmem:[#allocation13 + $0x28] sm:$0xff]
          %v2006 = vld [vmem:[#allocation13 + $0x30] sm:$0xff]
          %v2007 = vld [vmem:[#allocation13 + $0x38] sm:$0xff]
          %v2008 = vld [vmem:[#allocation13 + $0x40] sm:$0xff]
          %v2009 = vld [vmem:[#allocation13 + $0x48] sm:$0xff]
          %v2010 = vld [vmem:[#allocation13 + $0x50] sm:$0xff]
          %v2011 = vld [vmem:[#allocation13 + $0x58] sm:$0xff]
          %v2012 = vld [vmem:[#allocation13 + $0x60] sm:$0xff]
          %v2013 = vld [vmem:[#allocation13 + $0x68] sm:$0xff]
          %v2014 = vld [vmem:[#allocation13 + $0x70] sm:$0xff]
          %v2015 = vld [vmem:[#allocation13 + $0x78] sm:$0xff]
          %2016 = vmatprep.subr.mxu0 0.0
          %2017 = vmatpush1.msra.mxu0 %v2000
          %2018 = vmatprep.subr.mxu0 0.0
          %2019 = vmatpush1.msra.mxu0 %v2001
          %2020 = vmatprep.subr.mxu0 0.0
          %2021 = vmatpush1.msra.mxu0 %v2002
          %2022 = vmatprep.subr.mxu0 0.0
          %2023 = vmatpush1.msra.mxu0 %v2003
          %2024 = vmatprep.subr.mxu0 0.0
          %2025 = vmatpush1.msra.mxu0 %v2004
          %2026 = vmatprep.subr.mxu0 0.0
          %2027 = vmatpush1.msra.mxu0 %v2005
          %2028 = vmatprep.subr.mxu0 0.0
          %2029 = vmatpush1.msra.mxu0 %v2006
          %2030 = vmatprep.subr.mxu0 0.0
          %2031 = vmatpush1.msra.mxu0 %v2007
          %2032 = vmatprep.subr.mxu0 0.0
          %2033 = vmatpush1.msra.mxu0 %v2008
          %2034 = vmatprep.subr.mxu0 0.0
          %2035 = vmatpush1.msra.mxu0 %v2009
          %2036 = vmatprep.subr.mxu0 0.0
          %2037 = vmatpush1.msra.mxu0 %v2010
          %2038 = vmatprep.subr.mxu0 0.0
          %2039 = vmatpush1.msra.mxu0 %v2011
          %2040 = vmatprep.subr.mxu0 0.0
          %2041 = vmatpush1.msra.mxu0 %v2012
          %2042 = vmatprep.subr.mxu0 0.0
          %2043 = vmatpush1.msra.mxu0 %v2013
          %2044 = vmatprep.subr.mxu0 0.0
          %2045 = vmatpush1.msra.mxu0 %v2014
          %2046 = vmatprep.subr.mxu0 0.0
          %2047 = vmatpush1.msra.mxu0 %v2015
          %2048 = vmatprep.subr.mxu0 0.0
          %2049 = vmatpush1.msra.mxu0 0.0
          %2050 = vmatprep.subr.mxu0 0.0
          %2051 = vmatpush1.msra.mxu0 0.0
          %2052 = vmatprep.subr.mxu0 0.0
          %2053 = vmatpush1.msra.mxu0 0.0
          %2054 = vmatprep.subr.mxu0 0.0
          %2055 = vmatpush1.msra.mxu0 0.0
          %2056 = vmatprep.subr.mxu0 0.0
          %2057 = vmatpush1.msra.mxu0 0.0
          %2058 = vmatprep.subr.mxu0 0.0
          %2059 = vmatpush1.msra.mxu0 0.0
          %2060 = vmatprep.subr.mxu0 0.0
          %2061 = vmatpush1.msra.mxu0 0.0
          %2062 = vmatprep.subr.mxu0 0.0
          %2063 = vmatpush1.msra.mxu0 0.0
          %2064 = vmatprep.subr.mxu0 0.0
          %2065 = vmatpush1.msra.mxu0 0.0
          %2066 = vmatprep.subr.mxu0 0.0
          %2067 = vmatpush1.msra.mxu0 0.0
          %2068 = vmatprep.subr.mxu0 0.0
          %2069 = vmatpush1.msra.mxu0 0.0
          %2070 = vmatprep.subr.mxu0 0.0
          %2071 = vmatpush1.msra.mxu0 0.0
          %2072 = vmatprep.subr.mxu0 0.0
          %2073 = vmatpush1.msra.mxu0 0.0
          %2074 = vmatprep.subr.mxu0 0.0
          %2075 = vmatpush1.msra.mxu0 0.0
          %2076 = vmatprep.subr.mxu0 0.0
          %2077 = vmatpush1.msra.mxu0 0.0
          %2078 = vmatprep.subr.mxu0 0.0
          %2079 = vmatpush1.msra.mxu0 0.0
          %2080 = vmatprep.mubr.f32.mxu0 0.0
          %2081 = vmatmul.mubr.f32.gmra.mrb[0].mxu0 %v1999
          %v2082 = vpop.f32.mrb[0].mxu0
          %v2083 = vadd.f32 0.0, %v2082
          %v2084 = vpop.f32.mrb[0].mxu0
          %2085 = vdwg.mxu0
          %v2086 = vadd.f32 %v1998, %v2083
          %v2087 = vtanh.pop %v2086
          %s2088 = scalar_lea.vmem [#allocation3], 40
          %v2089 = vld [vmem:[%s2088] sm:$0xff]
          %v2090 = vadd.f32 %v2089, %v1986
          %v2091 = vxor.u32 %v2090, 2147483648
          %v2092 = vmul.f32 %v2091, 1.442695
          %v2093 = vpow.pop %v2092
          %v2094 = vadd.f32 %v2093, 1.0
          %v2095 = vrcp.pop %v2094
          %v2096 = vmul.f32 1.0, %v2095
          %2098 = vset.pattern.permute.xlu0 0
          %2099 = vperm.xlu0 %2098, %v1884
          %v2100 = vpop.permute.xlu0 %2099
          %v2102 = vmul.f32 %v2100, %v2096
          %v2103 = vsub.f32 1.0, %v2102
          %v2104 = vmul.f32 %v2103, %v1882
          %v2105 = vmul.f32 %v2102, %v2087
          %v2106 = vadd.f32 %v2104, %v2105
          %v2107 = vstv %s1877
          %vm2108 = vcmp.lt.s32.totalorder %v681, %v2107
          %v2109 = vsel %vm2108, 1, 0
          %vm2110 = vcmp.eq.s32.totalorder %v2109, 1
          %v2111 = vsel %vm2110, %v2106, %v1882
          %2112 = vst [vmem:[#allocation5] sm:$0xff] %v2111
          %v2113 = vsel %vm2110, %v2106, 0.0
          %s2114 = scalar_lea.vmem %s342, 40 [#allocation14]
          %2115 = vst [vmem:[%s2114] sm:$0xff] %v2113
        $region88: #{tpu_custom_call.1} parent=43 // pred_fallthru
          _
        %s2116 = sadd.s32 %s367, 6
        %s2117 = sld [smem:[#allocation7 + %s2116]]
        %p2118 = scmp.gt.s32.totalorder %s2117, %s369
        // Predicated region
        $region89: #{tpu_custom_call.1} parent=43 // pred_check
          %p2119 = pneg %p2118
        $region90: #{tpu_custom_call.1} parent=43 // pred_check_branch
          %2121 = sbr.rel (%p2119) target = $region92
        $region91: #{tpu_custom_call.1} parent=43 // pred_region
          %v2122 = vld [vmem:[#allocation5] sm:$0xff]
          %s2123 = scalar_lea.vmem %s359, 48
          %v2124 = vld [vmem:[%s2123] sm:$0xff]
          %v2125 = vld [vmem:[#allocation11] sm:$0xff]
          %v2126 = vld [vmem:[#allocation11 + $0x8] sm:$0xff]
          %v2127 = vld [vmem:[#allocation11 + $0x10] sm:$0xff]
          %v2128 = vld [vmem:[#allocation11 + $0x18] sm:$0xff]
          %v2129 = vld [vmem:[#allocation11 + $0x20] sm:$0xff]
          %v2130 = vld [vmem:[#allocation11 + $0x28] sm:$0xff]
          %v2131 = vld [vmem:[#allocation11 + $0x30] sm:$0xff]
          %v2132 = vld [vmem:[#allocation11 + $0x38] sm:$0xff]
          %v2133 = vld [vmem:[#allocation11 + $0x40] sm:$0xff]
          %v2134 = vld [vmem:[#allocation11 + $0x48] sm:$0xff]
          %v2135 = vld [vmem:[#allocation11 + $0x50] sm:$0xff]
          %v2136 = vld [vmem:[#allocation11 + $0x58] sm:$0xff]
          %v2137 = vld [vmem:[#allocation11 + $0x60] sm:$0xff]
          %v2138 = vld [vmem:[#allocation11 + $0x68] sm:$0xff]
          %v2139 = vld [vmem:[#allocation11 + $0x70] sm:$0xff]
          %v2140 = vld [vmem:[#allocation11 + $0x78] sm:$0xff]
          %v2141 = vld [vmem:[#allocation11 + $0x80] sm:$0xff]
          %v2142 = vld [vmem:[#allocation11 + $0x88] sm:$0xff]
          %v2143 = vld [vmem:[#allocation11 + $0x90] sm:$0xff]
          %v2144 = vld [vmem:[#allocation11 + $0x98] sm:$0xff]
          %v2145 = vld [vmem:[#allocation11 + $0xa0] sm:$0xff]
          %v2146 = vld [vmem:[#allocation11 + $0xa8] sm:$0xff]
          %v2147 = vld [vmem:[#allocation11 + $0xb0] sm:$0xff]
          %v2148 = vld [vmem:[#allocation11 + $0xb8] sm:$0xff]
          %v2149 = vld [vmem:[#allocation11 + $0xc0] sm:$0xff]
          %v2150 = vld [vmem:[#allocation11 + $0xc8] sm:$0xff]
          %v2151 = vld [vmem:[#allocation11 + $0xd0] sm:$0xff]
          %v2152 = vld [vmem:[#allocation11 + $0xd8] sm:$0xff]
          %v2153 = vld [vmem:[#allocation11 + $0xe0] sm:$0xff]
          %v2154 = vld [vmem:[#allocation11 + $0xe8] sm:$0xff]
          %v2155 = vld [vmem:[#allocation11 + $0xf0] sm:$0xff]
          %v2156 = vld [vmem:[#allocation11 + $0xf8] sm:$0xff]
          %2157 = vmatprep.subr.mxu0 %v2126
          %2158 = vmatpush1.msra.mxu0 %v2125
          %2159 = vmatprep.subr.mxu0 %v2128
          %2160 = vmatpush1.msra.mxu0 %v2127
          %2161 = vmatprep.subr.mxu0 %v2130
          %2162 = vmatpush1.msra.mxu0 %v2129
          %2163 = vmatprep.subr.mxu0 %v2132
          %2164 = vmatpush1.msra.mxu0 %v2131
          %2165 = vmatprep.subr.mxu0 %v2134
          %2166 = vmatpush1.msra.mxu0 %v2133
          %2167 = vmatprep.subr.mxu0 %v2136
          %2168 = vmatpush1.msra.mxu0 %v2135
          %2169 = vmatprep.subr.mxu0 %v2138
          %2170 = vmatpush1.msra.mxu0 %v2137
          %2171 = vmatprep.subr.mxu0 %v2140
          %2172 = vmatpush1.msra.mxu0 %v2139
          %2173 = vmatprep.subr.mxu0 %v2142
          %2174 = vmatpush1.msra.mxu0 %v2141
          %2175 = vmatprep.subr.mxu0 %v2144
          %2176 = vmatpush1.msra.mxu0 %v2143
          %2177 = vmatprep.subr.mxu0 %v2146
          %2178 = vmatpush1.msra.mxu0 %v2145
          %2179 = vmatprep.subr.mxu0 %v2148
          %2180 = vmatpush1.msra.mxu0 %v2147
          %2181 = vmatprep.subr.mxu0 %v2150
          %2182 = vmatpush1.msra.mxu0 %v2149
          %2183 = vmatprep.subr.mxu0 %v2152
          %2184 = vmatpush1.msra.mxu0 %v2151
          %2185 = vmatprep.subr.mxu0 %v2154
          %2186 = vmatpush1.msra.mxu0 %v2153
          %2187 = vmatprep.subr.mxu0 %v2156
          %2188 = vmatpush1.msra.mxu0 %v2155
          %2189 = vmatprep.subr.mxu0 0.0
          %2190 = vmatpush1.msra.mxu0 0.0
          %2191 = vmatprep.subr.mxu0 0.0
          %2192 = vmatpush1.msra.mxu0 0.0
          %2193 = vmatprep.subr.mxu0 0.0
          %2194 = vmatpush1.msra.mxu0 0.0
          %2195 = vmatprep.subr.mxu0 0.0
          %2196 = vmatpush1.msra.mxu0 0.0
          %2197 = vmatprep.subr.mxu0 0.0
          %2198 = vmatpush1.msra.mxu0 0.0
          %2199 = vmatprep.subr.mxu0 0.0
          %2200 = vmatpush1.msra.mxu0 0.0
          %2201 = vmatprep.subr.mxu0 0.0
          %2202 = vmatpush1.msra.mxu0 0.0
          %2203 = vmatprep.subr.mxu0 0.0
          %2204 = vmatpush1.msra.mxu0 0.0
          %2205 = vmatprep.subr.mxu0 0.0
          %2206 = vmatpush1.msra.mxu0 0.0
          %2207 = vmatprep.subr.mxu0 0.0
          %2208 = vmatpush1.msra.mxu0 0.0
          %2209 = vmatprep.subr.mxu0 0.0
          %2210 = vmatpush1.msra.mxu0 0.0
          %2211 = vmatprep.subr.mxu0 0.0
          %2212 = vmatpush1.msra.mxu0 0.0
          %2213 = vmatprep.subr.mxu0 0.0
          %2214 = vmatpush1.msra.mxu0 0.0
          %2215 = vmatprep.subr.mxu0 0.0
          %2216 = vmatpush1.msra.mxu0 0.0
          %2217 = vmatprep.subr.mxu0 0.0
          %2218 = vmatpush1.msra.mxu0 0.0
          %2219 = vmatprep.subr.mxu0 0.0
          %2220 = vmatpush1.msra.mxu0 0.0
          %2221 = vmatprep.mubr.f32.mxu0 0.0
          %2222 = vmatmul.mubr.f32.gmra.mrb[0].mxu0 %v2122
          %v2223 = vpop.f32.mrb[0].mxu0
          %v2224 = vadd.f32 0.0, %v2223
          %v2225 = vpop.f32.mrb[0].mxu0
          %v2226 = vadd.f32 0.0, %v2225
          %2227 = vdwg.mxu0
          %s2228 = scalar_lea.vmem [#allocation2], 48
          %v2229 = vld [vmem:[%s2228] sm:$0xff]
          %v2230 = vadd.f32 %v2229, %v2224
          %v2231 = vxor.u32 %v2230, 2147483648
          %v2232 = vmul.f32 %v2231, 1.442695
          %v2233 = vpow.pop %v2232
          %v2234 = vadd.f32 %v2233, 1.0
          %v2235 = vrcp.pop %v2234
          %v2236 = vmul.f32 1.0, %v2235
          %s2237 = scalar_lea.vmem [#allocation4], 48
          %v2238 = vld [vmem:[%s2237] sm:$0xff]
          %v2239 = vmul.f32 %v2236, %v2122
          %v2240 = vld [vmem:[#allocation13] sm:$0xff]
          %v2241 = vld [vmem:[#allocation13 + $0x8] sm:$0xff]
          %v2242 = vld [vmem:[#allocation13 + $0x10] sm:$0xff]
          %v2243 = vld [vmem:[#allocation13 + $0x18] sm:$0xff]
          %v2244 = vld [vmem:[#allocation13 + $0x20] sm:$0xff]
          %v2245 = vld [vmem:[#allocation13 + $0x28] sm:$0xff]
          %v2246 = vld [vmem:[#allocation13 + $0x30] sm:$0xff]
          %v2247 = vld [vmem:[#allocation13 + $0x38] sm:$0xff]
          %v2248 = vld [vmem:[#allocation13 + $0x40] sm:$0xff]
          %v2249 = vld [vmem:[#allocation13 + $0x48] sm:$0xff]
          %v2250 = vld [vmem:[#allocation13 + $0x50] sm:$0xff]
          %v2251 = vld [vmem:[#allocation13 + $0x58] sm:$0xff]
          %v2252 = vld [vmem:[#allocation13 + $0x60] sm:$0xff]
          %v2253 = vld [vmem:[#allocation13 + $0x68] sm:$0xff]
          %v2254 = vld [vmem:[#allocation13 + $0x70] sm:$0xff]
          %v2255 = vld [vmem:[#allocation13 + $0x78] sm:$0xff]
          %2256 = vmatprep.subr.mxu0 0.0
          %2257 = vmatpush1.msra.mxu0 %v2240
          %2258 = vmatprep.subr.mxu0 0.0
          %2259 = vmatpush1.msra.mxu0 %v2241
          %2260 = vmatprep.subr.mxu0 0.0
          %2261 = vmatpush1.msra.mxu0 %v2242
          %2262 = vmatprep.subr.mxu0 0.0
          %2263 = vmatpush1.msra.mxu0 %v2243
          %2264 = vmatprep.subr.mxu0 0.0
          %2265 = vmatpush1.msra.mxu0 %v2244
          %2266 = vmatprep.subr.mxu0 0.0
          %2267 = vmatpush1.msra.mxu0 %v2245
          %2268 = vmatprep.subr.mxu0 0.0
          %2269 = vmatpush1.msra.mxu0 %v2246
          %2270 = vmatprep.subr.mxu0 0.0
          %2271 = vmatpush1.msra.mxu0 %v2247
          %2272 = vmatprep.subr.mxu0 0.0
          %2273 = vmatpush1.msra.mxu0 %v2248
          %2274 = vmatprep.subr.mxu0 0.0
          %2275 = vmatpush1.msra.mxu0 %v2249
          %2276 = vmatprep.subr.mxu0 0.0
          %2277 = vmatpush1.msra.mxu0 %v2250
          %2278 = vmatprep.subr.mxu0 0.0
          %2279 = vmatpush1.msra.mxu0 %v2251
          %2280 = vmatprep.subr.mxu0 0.0
          %2281 = vmatpush1.msra.mxu0 %v2252
          %2282 = vmatprep.subr.mxu0 0.0
          %2283 = vmatpush1.msra.mxu0 %v2253
          %2284 = vmatprep.subr.mxu0 0.0
          %2285 = vmatpush1.msra.mxu0 %v2254
          %2286 = vmatprep.subr.mxu0 0.0
          %2287 = vmatpush1.msra.mxu0 %v2255
          %2288 = vmatprep.subr.mxu0 0.0
          %2289 = vmatpush1.msra.mxu0 0.0
          %2290 = vmatprep.subr.mxu0 0.0
          %2291 = vmatpush1.msra.mxu0 0.0
          %2292 = vmatprep.subr.mxu0 0.0
          %2293 = vmatpush1.msra.mxu0 0.0
          %2294 = vmatprep.subr.mxu0 0.0
          %2295 = vmatpush1.msra.mxu0 0.0
          %2296 = vmatprep.subr.mxu0 0.0
          %2297 = vmatpush1.msra.mxu0 0.0
          %2298 = vmatprep.subr.mxu0 0.0
          %2299 = vmatpush1.msra.mxu0 0.0
          %2300 = vmatprep.subr.mxu0 0.0
          %2301 = vmatpush1.msra.mxu0 0.0
          %2302 = vmatprep.subr.mxu0 0.0
          %2303 = vmatpush1.msra.mxu0 0.0
          %2304 = vmatprep.subr.mxu0 0.0
          %2305 = vmatpush1.msra.mxu0 0.0
          %2306 = vmatprep.subr.mxu0 0.0
          %2307 = vmatpush1.msra.mxu0 0.0
          %2308 = vmatprep.subr.mxu0 0.0
          %2309 = vmatpush1.msra.mxu0 0.0
          %2310 = vmatprep.subr.mxu0 0.0
          %2311 = vmatpush1.msra.mxu0 0.0
          %2312 = vmatprep.subr.mxu0 0.0
          %2313 = vmatpush1.msra.mxu0 0.0
          %2314 = vmatprep.subr.mxu0 0.0
          %2315 = vmatpush1.msra.mxu0 0.0
          %2316 = vmatprep.subr.mxu0 0.0
          %2317 = vmatpush1.msra.mxu0 0.0
          %2318 = vmatprep.subr.mxu0 0.0
          %2319 = vmatpush1.msra.mxu0 0.0
          %2320 = vmatprep.mubr.f32.mxu0 0.0
          %2321 = vmatmul.mubr.f32.gmra.mrb[0].mxu0 %v2239
          %v2322 = vpop.f32.mrb[0].mxu0
          %v2323 = vadd.f32 0.0, %v2322
          %v2324 = vpop.f32.mrb[0].mxu0
          %2325 = vdwg.mxu0
          %v2326 = vadd.f32 %v2238, %v2323
          %v2327 = vtanh.pop %v2326
          %s2328 = scalar_lea.vmem [#allocation3], 48
          %v2329 = vld [vmem:[%s2328] sm:$0xff]
          %v2330 = vadd.f32 %v2329, %v2226
          %v2331 = vxor.u32 %v2330, 2147483648
          %v2332 = vmul.f32 %v2331, 1.442695
          %v2333 = vpow.pop %v2332
          %v2334 = vadd.f32 %v2333, 1.0
          %v2335 = vrcp.pop %v2334
          %v2336 = vmul.f32 1.0, %v2335
          %2338 = vset.pattern.permute.xlu0 0
          %2339 = vperm.xlu0 %2338, %v2124
          %v2340 = vpop.permute.xlu0 %2339
          %v2342 = vmul.f32 %v2340, %v2336
          %v2343 = vsub.f32 1.0, %v2342
          %v2344 = vmul.f32 %v2343, %v2122
          %v2345 = vmul.f32 %v2342, %v2327
          %v2346 = vadd.f32 %v2344, %v2345
          %v2347 = vstv %s2117
          %vm2348 = vcmp.lt.s32.totalorder %v681, %v2347
          %v2349 = vsel %vm2348, 1, 0
          %vm2350 = vcmp.eq.s32.totalorder %v2349, 1
          %v2351 = vsel %vm2350, %v2346, %v2122
          %2352 = vst [vmem:[#allocation5] sm:$0xff] %v2351
          %v2353 = vsel %vm2350, %v2346, 0.0
          %s2354 = scalar_lea.vmem %s342, 48 [#allocation14]
          %2355 = vst [vmem:[%s2354] sm:$0xff] %v2353
        $region92: #{tpu_custom_call.1} parent=43 // pred_fallthru
          _
        %s2356 = sadd.s32 %s367, 7
        %s2357 = sld [smem:[#allocation7 + %s2356]]
        %p2358 = scmp.gt.s32.totalorder %s2357, %s369
        // Predicated region
        $region93: #{tpu_custom_call.1} parent=43 // pred_check
          %p2359 = pneg %p2358
        $region94: #{tpu_custom_call.1} parent=43 // pred_check_branch
          %2361 = sbr.rel (%p2359) target = $region96
        $region95: #{tpu_custom_call.1} parent=43 // pred_region
          %v2362 = vld [vmem:[#allocation5] sm:$0xff]
          %s2363 = scalar_lea.vmem %s359, 56
          %v2364 = vld [vmem:[%s2363] sm:$0xff]
          %v2365 = vld [vmem:[#allocation11] sm:$0xff]
          %v2366 = vld [vmem:[#allocation11 + $0x8] sm:$0xff]
          %v2367 = vld [vmem:[#allocation11 + $0x10] sm:$0xff]
          %v2368 = vld [vmem:[#allocation11 + $0x18] sm:$0xff]
          %v2369 = vld [vmem:[#allocation11 + $0x20] sm:$0xff]
          %v2370 = vld [vmem:[#allocation11 + $0x28] sm:$0xff]
          %v2371 = vld [vmem:[#allocation11 + $0x30] sm:$0xff]
          %v2372 = vld [vmem:[#allocation11 + $0x38] sm:$0xff]
          %v2373 = vld [vmem:[#allocation11 + $0x40] sm:$0xff]
          %v2374 = vld [vmem:[#allocation11 + $0x48] sm:$0xff]
          %v2375 = vld [vmem:[#allocation11 + $0x50] sm:$0xff]
          %v2376 = vld [vmem:[#allocation11 + $0x58] sm:$0xff]
          %v2377 = vld [vmem:[#allocation11 + $0x60] sm:$0xff]
          %v2378 = vld [vmem:[#allocation11 + $0x68] sm:$0xff]
          %v2379 = vld [vmem:[#allocation11 + $0x70] sm:$0xff]
          %v2380 = vld [vmem:[#allocation11 + $0x78] sm:$0xff]
          %v2381 = vld [vmem:[#allocation11 + $0x80] sm:$0xff]
          %v2382 = vld [vmem:[#allocation11 + $0x88] sm:$0xff]
          %v2383 = vld [vmem:[#allocation11 + $0x90] sm:$0xff]
          %v2384 = vld [vmem:[#allocation11 + $0x98] sm:$0xff]
          %v2385 = vld [vmem:[#allocation11 + $0xa0] sm:$0xff]
          %v2386 = vld [vmem:[#allocation11 + $0xa8] sm:$0xff]
          %v2387 = vld [vmem:[#allocation11 + $0xb0] sm:$0xff]
          %v2388 = vld [vmem:[#allocation11 + $0xb8] sm:$0xff]
          %v2389 = vld [vmem:[#allocation11 + $0xc0] sm:$0xff]
          %v2390 = vld [vmem:[#allocation11 + $0xc8] sm:$0xff]
          %v2391 = vld [vmem:[#allocation11 + $0xd0] sm:$0xff]
          %v2392 = vld [vmem:[#allocation11 + $0xd8] sm:$0xff]
          %v2393 = vld [vmem:[#allocation11 + $0xe0] sm:$0xff]
          %v2394 = vld [vmem:[#allocation11 + $0xe8] sm:$0xff]
          %v2395 = vld [vmem:[#allocation11 + $0xf0] sm:$0xff]
          %v2396 = vld [vmem:[#allocation11 + $0xf8] sm:$0xff]
          %2397 = vmatprep.subr.mxu0 %v2366
          %2398 = vmatpush1.msra.mxu0 %v2365
          %2399 = vmatprep.subr.mxu0 %v2368
          %2400 = vmatpush1.msra.mxu0 %v2367
          %2401 = vmatprep.subr.mxu0 %v2370
          %2402 = vmatpush1.msra.mxu0 %v2369
          %2403 = vmatprep.subr.mxu0 %v2372
          %2404 = vmatpush1.msra.mxu0 %v2371
          %2405 = vmatprep.subr.mxu0 %v2374
          %2406 = vmatpush1.msra.mxu0 %v2373
          %2407 = vmatprep.subr.mxu0 %v2376
          %2408 = vmatpush1.msra.mxu0 %v2375
          %2409 = vmatprep.subr.mxu0 %v2378
          %2410 = vmatpush1.msra.mxu0 %v2377
          %2411 = vmatprep.subr.mxu0 %v2380
          %2412 = vmatpush1.msra.mxu0 %v2379
          %2413 = vmatprep.subr.mxu0 %v2382
          %2414 = vmatpush1.msra.mxu0 %v2381
          %2415 = vmatprep.subr.mxu0 %v2384
          %2416 = vmatpush1.msra.mxu0 %v2383
          %2417 = vmatprep.subr.mxu0 %v2386
          %2418 = vmatpush1.msra.mxu0 %v2385
          %2419 = vmatprep.subr.mxu0 %v2388
          %2420 = vmatpush1.msra.mxu0 %v2387
          %2421 = vmatprep.subr.mxu0 %v2390
          %2422 = vmatpush1.msra.mxu0 %v2389
          %2423 = vmatprep.subr.mxu0 %v2392
          %2424 = vmatpush1.msra.mxu0 %v2391
          %2425 = vmatprep.subr.mxu0 %v2394
          %2426 = vmatpush1.msra.mxu0 %v2393
          %2427 = vmatprep.subr.mxu0 %v2396
          %2428 = vmatpush1.msra.mxu0 %v2395
          %2429 = vmatprep.subr.mxu0 0.0
          %2430 = vmatpush1.msra.mxu0 0.0
          %2431 = vmatprep.subr.mxu0 0.0
          %2432 = vmatpush1.msra.mxu0 0.0
          %2433 = vmatprep.subr.mxu0 0.0
          %2434 = vmatpush1.msra.mxu0 0.0
          %2435 = vmatprep.subr.mxu0 0.0
          %2436 = vmatpush1.msra.mxu0 0.0
          %2437 = vmatprep.subr.mxu0 0.0
          %2438 = vmatpush1.msra.mxu0 0.0
          %2439 = vmatprep.subr.mxu0 0.0
          %2440 = vmatpush1.msra.mxu0 0.0
          %2441 = vmatprep.subr.mxu0 0.0
          %2442 = vmatpush1.msra.mxu0 0.0
          %2443 = vmatprep.subr.mxu0 0.0
          %2444 = vmatpush1.msra.mxu0 0.0
          %2445 = vmatprep.subr.mxu0 0.0
          %2446 = vmatpush1.msra.mxu0 0.0
          %2447 = vmatprep.subr.mxu0 0.0
          %2448 = vmatpush1.msra.mxu0 0.0
          %2449 = vmatprep.subr.mxu0 0.0
          %2450 = vmatpush1.msra.mxu0 0.0
          %2451 = vmatprep.subr.mxu0 0.0
          %2452 = vmatpush1.msra.mxu0 0.0
          %2453 = vmatprep.subr.mxu0 0.0
          %2454 = vmatpush1.msra.mxu0 0.0
          %2455 = vmatprep.subr.mxu0 0.0
          %2456 = vmatpush1.msra.mxu0 0.0
          %2457 = vmatprep.subr.mxu0 0.0
          %2458 = vmatpush1.msra.mxu0 0.0
          %2459 = vmatprep.subr.mxu0 0.0
          %2460 = vmatpush1.msra.mxu0 0.0
          %2461 = vmatprep.mubr.f32.mxu0 0.0
          %2462 = vmatmul.mubr.f32.gmra.mrb[0].mxu0 %v2362
          %v2463 = vpop.f32.mrb[0].mxu0
          %v2464 = vadd.f32 0.0, %v2463
          %v2465 = vpop.f32.mrb[0].mxu0
          %v2466 = vadd.f32 0.0, %v2465
          %2467 = vdwg.mxu0
          %s2468 = scalar_lea.vmem [#allocation2], 56
          %v2469 = vld [vmem:[%s2468] sm:$0xff]
          %v2470 = vadd.f32 %v2469, %v2464
          %v2471 = vxor.u32 %v2470, 2147483648
          %v2472 = vmul.f32 %v2471, 1.442695
          %v2473 = vpow.pop %v2472
          %v2474 = vadd.f32 %v2473, 1.0
          %v2475 = vrcp.pop %v2474
          %v2476 = vmul.f32 1.0, %v2475
          %s2477 = scalar_lea.vmem [#allocation4], 56
          %v2478 = vld [vmem:[%s2477] sm:$0xff]
          %v2479 = vmul.f32 %v2476, %v2362
          %v2480 = vld [vmem:[#allocation13] sm:$0xff]
          %v2481 = vld [vmem:[#allocation13 + $0x8] sm:$0xff]
          %v2482 = vld [vmem:[#allocation13 + $0x10] sm:$0xff]
          %v2483 = vld [vmem:[#allocation13 + $0x18] sm:$0xff]
          %v2484 = vld [vmem:[#allocation13 + $0x20] sm:$0xff]
          %v2485 = vld [vmem:[#allocation13 + $0x28] sm:$0xff]
          %v2486 = vld [vmem:[#allocation13 + $0x30] sm:$0xff]
          %v2487 = vld [vmem:[#allocation13 + $0x38] sm:$0xff]
          %v2488 = vld [vmem:[#allocation13 + $0x40] sm:$0xff]
          %v2489 = vld [vmem:[#allocation13 + $0x48] sm:$0xff]
          %v2490 = vld [vmem:[#allocation13 + $0x50] sm:$0xff]
          %v2491 = vld [vmem:[#allocation13 + $0x58] sm:$0xff]
          %v2492 = vld [vmem:[#allocation13 + $0x60] sm:$0xff]
          %v2493 = vld [vmem:[#allocation13 + $0x68] sm:$0xff]
          %v2494 = vld [vmem:[#allocation13 + $0x70] sm:$0xff]
          %v2495 = vld [vmem:[#allocation13 + $0x78] sm:$0xff]
          %2496 = vmatprep.subr.mxu0 0.0
          %2497 = vmatpush1.msra.mxu0 %v2480
          %2498 = vmatprep.subr.mxu0 0.0
          %2499 = vmatpush1.msra.mxu0 %v2481
          %2500 = vmatprep.subr.mxu0 0.0
          %2501 = vmatpush1.msra.mxu0 %v2482
          %2502 = vmatprep.subr.mxu0 0.0
          %2503 = vmatpush1.msra.mxu0 %v2483
          %2504 = vmatprep.subr.mxu0 0.0
          %2505 = vmatpush1.msra.mxu0 %v2484
          %2506 = vmatprep.subr.mxu0 0.0
          %2507 = vmatpush1.msra.mxu0 %v2485
          %2508 = vmatprep.subr.mxu0 0.0
          %2509 = vmatpush1.msra.mxu0 %v2486
          %2510 = vmatprep.subr.mxu0 0.0
          %2511 = vmatpush1.msra.mxu0 %v2487
          %2512 = vmatprep.subr.mxu0 0.0
          %2513 = vmatpush1.msra.mxu0 %v2488
          %2514 = vmatprep.subr.mxu0 0.0
          %2515 = vmatpush1.msra.mxu0 %v2489
          %2516 = vmatprep.subr.mxu0 0.0
          %2517 = vmatpush1.msra.mxu0 %v2490
          %2518 = vmatprep.subr.mxu0 0.0
          %2519 = vmatpush1.msra.mxu0 %v2491
          %2520 = vmatprep.subr.mxu0 0.0
          %2521 = vmatpush1.msra.mxu0 %v2492
          %2522 = vmatprep.subr.mxu0 0.0
          %2523 = vmatpush1.msra.mxu0 %v2493
          %2524 = vmatprep.subr.mxu0 0.0
          %2525 = vmatpush1.msra.mxu0 %v2494
          %2526 = vmatprep.subr.mxu0 0.0
          %2527 = vmatpush1.msra.mxu0 %v2495
          %2528 = vmatprep.subr.mxu0 0.0
          %2529 = vmatpush1.msra.mxu0 0.0
          %2530 = vmatprep.subr.mxu0 0.0
          %2531 = vmatpush1.msra.mxu0 0.0
          %2532 = vmatprep.subr.mxu0 0.0
          %2533 = vmatpush1.msra.mxu0 0.0
          %2534 = vmatprep.subr.mxu0 0.0
          %2535 = vmatpush1.msra.mxu0 0.0
          %2536 = vmatprep.subr.mxu0 0.0
          %2537 = vmatpush1.msra.mxu0 0.0
          %2538 = vmatprep.subr.mxu0 0.0
          %2539 = vmatpush1.msra.mxu0 0.0
          %2540 = vmatprep.subr.mxu0 0.0
          %2541 = vmatpush1.msra.mxu0 0.0
          %2542 = vmatprep.subr.mxu0 0.0
          %2543 = vmatpush1.msra.mxu0 0.0
          %2544 = vmatprep.subr.mxu0 0.0
          %2545 = vmatpush1.msra.mxu0 0.0
          %2546 = vmatprep.subr.mxu0 0.0
          %2547 = vmatpush1.msra.mxu0 0.0
          %2548 = vmatprep.subr.mxu0 0.0
          %2549 = vmatpush1.msra.mxu0 0.0
          %2550 = vmatprep.subr.mxu0 0.0
          %2551 = vmatpush1.msra.mxu0 0.0
          %2552 = vmatprep.subr.mxu0 0.0
          %2553 = vmatpush1.msra.mxu0 0.0
          %2554 = vmatprep.subr.mxu0 0.0
          %2555 = vmatpush1.msra.mxu0 0.0
          %2556 = vmatprep.subr.mxu0 0.0
          %2557 = vmatpush1.msra.mxu0 0.0
          %2558 = vmatprep.subr.mxu0 0.0
          %2559 = vmatpush1.msra.mxu0 0.0
          %2560 = vmatprep.mubr.f32.mxu0 0.0
          %2561 = vmatmul.mubr.f32.gmra.mrb[0].mxu0 %v2479
          %v2562 = vpop.f32.mrb[0].mxu0
          %v2563 = vadd.f32 0.0, %v2562
          %v2564 = vpop.f32.mrb[0].mxu0
          %2565 = vdwg.mxu0
          %v2566 = vadd.f32 %v2478, %v2563
          %v2567 = vtanh.pop %v2566
          %s2568 = scalar_lea.vmem [#allocation3], 56
          %v2569 = vld [vmem:[%s2568] sm:$0xff]
          %v2570 = vadd.f32 %v2569, %v2466
          %v2571 = vxor.u32 %v2570, 2147483648
          %v2572 = vmul.f32 %v2571, 1.442695
          %v2573 = vpow.pop %v2572
          %v2574 = vadd.f32 %v2573, 1.0
          %v2575 = vrcp.pop %v2574
          %v2576 = vmul.f32 1.0, %v2575
          %2578 = vset.pattern.permute.xlu0 0
          %2579 = vperm.xlu0 %2578, %v2364
          %v2580 = vpop.permute.xlu0 %2579
          %v2582 = vmul.f32 %v2580, %v2576
          %v2583 = vsub.f32 1.0, %v2582
          %v2584 = vmul.f32 %v2583, %v2362
          %v2585 = vmul.f32 %v2582, %v2567
          %v2586 = vadd.f32 %v2584, %v2585
          %v2587 = vstv %s2357
          %vm2588 = vcmp.lt.s32.totalorder %v681, %v2587
          %v2589 = vsel %vm2588, 1, 0
          %vm2590 = vcmp.eq.s32.totalorder %v2589, 1
          %v2591 = vsel %vm2590, %v2586, %v2362
          %2592 = vst [vmem:[#allocation5] sm:$0xff] %v2591
          %v2593 = vsel %vm2590, %v2586, 0.0
          %s2594 = scalar_lea.vmem %s342, 56 [#allocation14]
          %2595 = vst [vmem:[%s2594] sm:$0xff] %v2593
        $region96: #{tpu_custom_call.1} parent=43 // pred_fallthru
          _
        %s2596 = sand.u32 %s191, 1
        %s2597 = scalar_lea.sflag [#allocation10], %s2596
        %s2598 = sand.u32 %s191, 1
        %s2599 = smul.addr %s2598, 64
        %s2600 = scalar_lea.vmem [#allocation14], %s2599
        // Predicated region
        $region97: #{tpu_custom_call.1} parent=43 // pred_check
          %p2601 = pneg %p201
        $region98: #{tpu_custom_call.1} parent=43 // pred_check_branch
          %2603 = sbr.rel (%p2601) target = $region100
        $region99: #{tpu_custom_call.1} parent=43 // pred_region
          %s2604 = smul.u32 8, %s34
          %s2606 = ssub.s32 1024, 1024
          %2607 = vsyncadd %s2597, %s2606
          %s2608 = sadd.s32 %s33, %s2604
          %s2609 = smul.addr %s2608, 128
          %s2610 = scalar_lea.hbm %s7, %s2609
          %s2611 = sshll.u32 %s2600, 4
          %s2612 = int_to_ptr.vmem [resolvable:$true] %s2611
          %2617 = dma.vmem_to_hbm [thread:$0]  %s2612, 1024, %s2610, %s2597, 128, 128, 8
        $region100: #{tpu_custom_call.1} parent=43 // pred_fallthru
          _
      $region44: #{tpu_custom_call.1} parent=5 // pred_fallthru
        _
      %p2618 = scmp.le.s32.totalorder 2, %s24
      // Predicated region
      $region101: #{tpu_custom_call.1} parent=5 // pred_check
        %p2619 = pneg %p2618
      $region102: #{tpu_custom_call.1} parent=5 // pred_check_branch
        %2621 = sbr.rel (%p2619) target = $region104
      $region103: #{tpu_custom_call.1} parent=5 // pred_region
        %s2622 = ssub.s32 %s24, 2
        // Predicated region
        $region105: #{tpu_custom_call.1} parent=103 // pred_check
          %p2623 = pneg %p207
        $region106: #{tpu_custom_call.1} parent=103 // pred_check_branch
          %2625 = sbr.rel (%p2623) target = $region108
        $region107: #{tpu_custom_call.1} parent=103 // pred_region
          %s2626 = sand.u32 %s192, 1
          %s2627 = scalar_lea.sflag [#allocation10], %s2626
          %s2628 = sand.u32 %s192, 1
          %s2629 = smul.addr %s2628, 64
          %s2630 = scalar_lea.vmem [#allocation14], %s2629
          %2631 = dma.done %s2627, 1024
        $region108: #{tpu_custom_call.1} parent=103 // pred_fallthru
          _
      $region104: #{tpu_custom_call.1} parent=5 // pred_fallthru
        _
    $region6: #{tpu_custom_call.1} parent=1 // loop_footer
      %s28 = sadd.s32 1, %s24
    $region7: #{tpu_custom_call.1} parent=1 // loop_footer_branch
      %23 = sbr.rel target = $region3
    $region8: #{tpu_custom_call.1} parent=1 // loop_exit
      _
    %2632 = vsyncpa [#allocation9], 1
    %s2633 = scalar_lea.sflag [#allocation9], 1
    %2634 = vsyncpa %s2633, 1
    %2635 = vsyncpa [#allocation12], 1
    %2636 = vsyncpa [#allocation10], 1
    %s2637 = scalar_lea.sflag [#allocation10], 1
    %2638 = vsyncpa %s2637, 1

</llo_original>
